<compile_context>
chip_gen: v5e
topology: v5e:2x2
jax: 0.10.0
libtpu: 0.0.40
codegen_flags: <defaults>
</compile_context>

<pallas_src>
import functools

import jax
import jax.numpy as jnp
from jax.experimental import pallas as pl
from jax.experimental.pallas import tpu as pltpu

ACT_DTYPE = jnp.bfloat16          # matmul-operand / activation dtype
VMEM_LIMIT = 48 * 1024 * 1024     # explicit scoped-VMEM cap (headroom on v7x's 64 MiB)


# ------------------------------- tiling utils ------------------------------

def _sublane(dtype):
    """Second-to-last-dim alignment for a dtype: 8 (f32), 16 (bf16), 32 (int8/fp8)."""
    return max(8, 32 // jnp.dtype(dtype).itemsize)


def _pick_tile(d, pref, align):
    """Largest aligned tile <= pref that divides d, else the full dim."""
    if d <= pref:
        return d
    t = (pref // align) * align
    while t >= align:
        if d % t == 0:
            return t
        t -= align
    # TODO(synk): dims with no aligned divisor fall back to the full extent
    # (fine for toy shapes; production shapes should be padded to 128-multiples).
    return d


# ----------------------------- Pallas kernels -----------------------------

def _linear_kernel(x_ref, w_ref, b_ref, o_ref, acc_ref, *, act):
    k = pl.program_id(2)

    @pl.when(k == 0)
    def _():
        acc_ref[...] = jnp.zeros_like(acc_ref)

    # bf16 x bf16 -> f32 accumulate (native MXU rate).
    acc_ref[...] += jnp.dot(x_ref[...], w_ref[...],
                            preferred_element_type=jnp.float32)

    @pl.when(k == pl.num_programs(2) - 1)
    def _():
        y = acc_ref[...] + b_ref[...].astype(jnp.float32)
        if act == "gelu":
            # TODO(synk): UER/PyTorch use exact erf-GELU; tanh approximation used here.
            c = 0.7978845608028654  # sqrt(2/pi)
            y = 0.5 * y * (1.0 + jnp.tanh(c * (y + 0.044715 * y * y * y)))
        o_ref[...] = y.astype(o_ref.dtype)


def linear(x, w, b, act=None):
    """y = act(x @ w + b), tiled (M,N,K) with f32 accumulation; bf16 operands."""
    M, K = x.shape
    N = w.shape[1]
    tm = _pick_tile(M, 256, _sublane(x.dtype))
    tn = _pick_tile(N, 256, 128)
    tk = _pick_tile(K, 512, 128)
    return pl.pallas_call(
        functools.partial(_linear_kernel, act=act),
        out_shape=jax.ShapeDtypeStruct((M, N), x.dtype),
        grid=(M // tm, N // tn, K // tk),
        in_specs=[pl.BlockSpec((tm, tk), lambda i, j, k: (i, k)),
                  pl.BlockSpec((tk, tn), lambda i, j, k: (k, j)),
                  pl.BlockSpec((1, tn), lambda i, j, k: (0, j))],
        out_specs=pl.BlockSpec((tm, tn), lambda i, j, k: (i, j)),
        scratch_shapes=[pltpu.VMEM((tm, tn), jnp.float32)],
        compiler_params=pltpu.CompilerParams(
            dimension_semantics=("parallel", "parallel", "arbitrary"),
            vmem_limit_bytes=VMEM_LIMIT),
    )(x, w, b.reshape(1, N))


def _ln_math(x, g, b, eps):
    mu = jnp.mean(x, axis=-1, keepdims=True)
    var = jnp.mean((x - mu) * (x - mu), axis=-1, keepdims=True)
    y = (x - mu) * jax.lax.rsqrt(var + eps)
    return y * g + b


def _embed_ln_kernel(wg_ref, sg_ref, pos_ref, g_ref, b_ref, o_ref, *, eps):
    # Fused: (word_emb + seg_emb + pos_emb) followed by LayerNorm, all in f32.
    x = (wg_ref[0].astype(jnp.float32)
         + sg_ref[0].astype(jnp.float32)
         + pos_ref[...].astype(jnp.float32))
    y = _ln_math(x, g_ref[...].astype(jnp.float32), b_ref[...].astype(jnp.float32), eps)
    o_ref[0] = y.astype(o_ref.dtype)


def embed_layernorm(wg, sg, pos, g, b, eps=1e-6):
    """LayerNorm(word_gather + seg_gather + pos_emb) without materializing the sum."""
    B, S, H = wg.shape
    ts = _pick_tile(S, 256, _sublane(wg.dtype))
    blk = pl.BlockSpec((1, ts, H), lambda bi, si: (bi, si, 0))
    return pl.pallas_call(
        functools.partial(_embed_ln_kernel, eps=eps),
        out_shape=jax.ShapeDtypeStruct((B, S, H), wg.dtype),
        grid=(B, S // ts),
        in_specs=[blk, blk,
                  pl.BlockSpec((ts, H), lambda bi, si: (si, 0)),
                  pl.BlockSpec((1, H), lambda bi, si: (0, 0)),
                  pl.BlockSpec((1, H), lambda bi, si: (0, 0))],
        out_specs=blk,
        compiler_params=pltpu.CompilerParams(
            dimension_semantics=("parallel", "parallel")),
    )(wg, sg, pos, g.reshape(1, H), b.reshape(1, H))


def _add_ln_kernel(x_ref, r_ref, g_ref, b_ref, o_ref, *, eps):
    x = x_ref[...].astype(jnp.float32) + r_ref[...].astype(jnp.float32)
    y = _ln_math(x, g_ref[...].astype(jnp.float32), b_ref[...].astype(jnp.float32), eps)
    o_ref[...] = y.astype(o_ref.dtype)


def _ln_kernel(x_ref, g_ref, b_ref, o_ref, *, eps):
    x = x_ref[...].astype(jnp.float32)
    y = _ln_math(x, g_ref[...].astype(jnp.float32), b_ref[...].astype(jnp.float32), eps)
    o_ref[...] = y.astype(o_ref.dtype)


def layernorm(x, g, b, residual=None, eps=1e-6):
    """LayerNorm(x [+ residual]), row-tiled; residual add fused in-kernel."""
    M, H = x.shape
    tm = _pick_tile(M, 512, _sublane(x.dtype))
    row_spec = pl.BlockSpec((tm, H), lambda i: (i, 0))
    gb_spec = pl.BlockSpec((1, H), lambda i: (0, 0))
    cp = pltpu.CompilerParams(dimension_semantics=("parallel",))
    if residual is None:
        return pl.pallas_call(
            functools.partial(_ln_kernel, eps=eps),
            out_shape=jax.ShapeDtypeStruct((M, H), x.dtype),
            grid=(M // tm,),
            in_specs=[row_spec, gb_spec, gb_spec],
            out_specs=row_spec,
            compiler_params=cp,
        )(x, g.reshape(1, H), b.reshape(1, H))
    return pl.pallas_call(
        functools.partial(_add_ln_kernel, eps=eps),
        out_shape=jax.ShapeDtypeStruct((M, H), x.dtype),
        grid=(M // tm,),
        in_specs=[row_spec, row_spec, gb_spec, gb_spec],
        out_specs=row_spec,
        compiler_params=cp,
    )(x, residual, g.reshape(1, H), b.reshape(1, H))


def _attn_kernel(q_ref, k_ref, v_ref, bias_ref, o_ref, m_sc, l_sc, acc_sc, *, nH, Dh):
    """Flash-style attention. q/k/v blocks are (1, tq|tk, H) column slices of the fused
    [B,S,3H] qkv buffer (no XLA transposes). Online softmax over the kv grid axis, per
    head; 1/sqrt(Dh) is pre-folded into Wq. Output is one lane-dense (tq, H) store."""
    kv = pl.program_id(2)

    @pl.when(kv == 0)
    def _():
        m_sc[...] = jnp.full_like(m_sc, -1e30)
        l_sc[...] = jnp.zeros_like(l_sc)
        acc_sc[...] = jnp.zeros_like(acc_sc)

    q = q_ref[0]                                   # (tq, H) bf16 (already scaled)
    k = k_ref[0]                                   # (tk, H) bf16
    v = v_ref[0]                                   # (tk, H) bf16
    bias = bias_ref[0].astype(jnp.float32)         # (1, tk) additive key mask

    for h in range(nH):                            # static head loop
        sl = slice(h * Dh, (h + 1) * Dh)
        s = jax.lax.dot_general(q[:, sl], k[:, sl], (((1,), (1,)), ((), ())),
                                preferred_element_type=jnp.float32)   # (tq, tk)
        s = s + bias
        m_prev = m_sc[h]                                               # (tq, 1)
        m_new = jnp.maximum(m_prev, jnp.max(s, axis=-1, keepdims=True))
        alpha = jnp.exp(m_prev - m_new)
        p = jnp.exp(s - m_new)
        l_sc[h] = alpha * l_sc[h] + jnp.sum(p, axis=-1, keepdims=True)
        acc_sc[:, sl] = alpha * acc_sc[:, sl] + jnp.dot(
            p.astype(v.dtype), v[:, sl], preferred_element_type=jnp.float32)
        m_sc[h] = m_new

    @pl.when(kv == pl.num_programs(2) - 1)
    def _():
        tq = acc_sc.shape[0]
        inv = jnp.concatenate(
            [jnp.broadcast_to(pl.reciprocal(l_sc[h], approx=True), (tq, Dh))
             for h in range(nH)], axis=-1)                              # (tq, H)
        o_ref[0] = (acc_sc[...] * inv).astype(o_ref.dtype)              # lane-dense store


def attention(qkv, bias, *, nH, Dh):
    """qkv: [B,S,3H] fused projections; bias: [B,1,S] additive key mask.
    Returns [B,S,H] context with heads concatenated on the lane axis."""
    B, S, threeH = qkv.shape
    H = threeH // 3
    tq = _pick_tile(S, 256, _sublane(qkv.dtype))
    tk = _pick_tile(S, 512, 128)
    q_spec = pl.BlockSpec((1, tq, H), lambda b, i, j: (b, i, 0))
    k_spec = pl.BlockSpec((1, tk, H), lambda b, i, j: (b, j, 1))
    v_spec = pl.BlockSpec((1, tk, H), lambda b, i, j: (b, j, 2))
    return pl.pallas_call(
        functools.partial(_attn_kernel, nH=nH, Dh=Dh),
        out_shape=jax.ShapeDtypeStruct((B, S, H), qkv.dtype),
        grid=(B, S // tq, S // tk),
        in_specs=[q_spec, k_spec, v_spec,
                  pl.BlockSpec((1, 1, tk), lambda b, i, j: (b, 0, j))],
        out_specs=pl.BlockSpec((1, tq, H), lambda b, i, j: (b, i, 0)),
        scratch_shapes=[pltpu.VMEM((nH, tq, 1), jnp.float32),
                        pltpu.VMEM((nH, tq, 1), jnp.float32),
                        pltpu.VMEM((tq, H), jnp.float32)],
        compiler_params=pltpu.CompilerParams(
            dimension_semantics=("parallel", "parallel", "arbitrary"),
            vmem_limit_bytes=VMEM_LIMIT),
    )(qkv, qkv, qkv, bias)


def _mlm_loss_kernel(h_ref, wt_ref, b_ref, tgt_ref, nll_ref, pred_ref,
                     m_sc, l_sc, tl_sc, ai_sc, *, tv):
    """Streams vocab tiles: logits tile = h @ Wt_tile + b_tile; keeps online
    max / sum-exp / target logit / argmax in scratch; flushes per-row NLL and
    argmax-correctness at the last vocab tile. Logits never hit HBM."""
    j = pl.program_id(1)

    @pl.when(j == 0)
    def _():
        m_sc[...] = jnp.full_like(m_sc, -1e30)
        l_sc[...] = jnp.zeros_like(l_sc)
        tl_sc[...] = jnp.zeros_like(tl_sc)
        ai_sc[...] = jnp.zeros_like(ai_sc)

    # (tm, tv) bf16 x bf16 -> f32; weight pre-transposed to [H,V] so no in-kernel transpose.
    logits = jnp.dot(h_ref[...], wt_ref[...], preferred_element_type=jnp.float32)
    logits = logits + b_ref[...].astype(jnp.float32)

    col0 = j * tv
    cols = col0 + jax.lax.broadcasted_iota(jnp.int32, logits.shape, 1)

    # target-logit gather for rows whose target id falls inside this tile
    tgt = tgt_ref[...]                                   # (tm, 1) int32
    hit = cols == tgt
    tl_sc[...] += jnp.sum(jnp.where(hit, logits, 0.0), axis=-1, keepdims=True)

    # online softmax statistics + running argmax
    # (argmax tracked as f32 column index: exact while V < 2^24, fine for real vocabs)
    tile_max = jnp.max(logits, axis=-1, keepdims=True)
    cols_f = cols.astype(jnp.float32)
    tile_arg = jnp.min(jnp.where(logits == tile_max, cols_f, 1e30),
                       axis=-1, keepdims=True)

    m_prev = m_sc[...]
    m_new = jnp.maximum(m_prev, tile_max)
    l_sc[...] = l_sc[...] * jnp.exp(m_prev - m_new) + jnp.sum(
        jnp.exp(logits - m_new), axis=-1, keepdims=True)
    ai_sc[...] = jnp.where(tile_max > m_prev, tile_arg, ai_sc[...])
    m_sc[...] = m_new

    @pl.when(j == pl.num_programs(1) - 1)
    def _():
        lse = m_sc[...] + jnp.log(l_sc[...])
        nll_ref[...] = (lse - tl_sc[...]).astype(nll_ref.dtype)
        pred_ref[...] = (ai_sc[...] == tgt_ref[...].astype(jnp.float32)).astype(
            pred_ref.dtype)


def mlm_loss(h, w_t, out_bias, tgt_flat):
    """Fused tied-vocab projection + online log-softmax NLL + argmax check.
    w_t is [H,V] (one-time XLA transpose of the tied word embedding).
    Returns per-row (nll, correct_flag), both [M]."""
    M, H = h.shape
    V = w_t.shape[1]
    # Large row tile so the [H,V] vocab weight is streamed from HBM as few times as possible.
    # TODO(synk): for very large M, reorder to vocab-outer with full-M scratch so the
    # weight is fetched exactly once.
    tm = _pick_tile(M, 1024, _sublane(h.dtype))
    tv = _pick_tile(V, 512, 128)
    nll, pred = pl.pallas_call(
        functools.partial(_mlm_loss_kernel, tv=tv),
        out_shape=(jax.ShapeDtypeStruct((M, 1), jnp.float32),
                   jax.ShapeDtypeStruct((M, 1), jnp.float32)),
        grid=(M // tm, V // tv),
        in_specs=[pl.BlockSpec((tm, H), lambda i, j: (i, 0)),
                  pl.BlockSpec((H, tv), lambda i, j: (0, j)),
                  pl.BlockSpec((1, tv), lambda i, j: (0, j)),
                  pl.BlockSpec((tm, 1), lambda i, j: (i, 0))],
        out_specs=(pl.BlockSpec((tm, 1), lambda i, j: (i, 0)),
                   pl.BlockSpec((tm, 1), lambda i, j: (i, 0))),
        scratch_shapes=[pltpu.VMEM((tm, 1), jnp.float32),
                        pltpu.VMEM((tm, 1), jnp.float32),
                        pltpu.VMEM((tm, 1), jnp.float32),
                        pltpu.VMEM((tm, 1), jnp.float32)],
        compiler_params=pltpu.CompilerParams(
            dimension_semantics=("parallel", "arbitrary"),
            vmem_limit_bytes=VMEM_LIMIT),
    )(h, w_t, out_bias.reshape(1, V), tgt_flat.reshape(M, 1).astype(jnp.int32))
    return nll[:, 0], pred[:, 0]


# ------------------------------ model (glue) -------------------------------

def init_params(key, V, S_max, H, nH, FFN):
    Dh = H // nH
    ks = jax.random.split(key, 16)

    def nrm(k, s):
        return 0.02 * jax.random.normal(k, s, jnp.float32)

    wt = lambda k, s: nrm(k, s).astype(ACT_DTYPE)   # matmul weights / embeddings: bf16
    zf = lambda s: jnp.zeros(s, jnp.float32)        # biases / LN betas: f32
    of = lambda s: jnp.ones(s, jnp.float32)         # LN gammas: f32

    # Fold 1/sqrt(Dh) into Wq (and it would go into the q slice of bqkv if nonzero).
    scale = 1.0 / (Dh ** 0.5)
    wq = nrm(ks[3], (H, H)) * scale
    wk = nrm(ks[4], (H, H))
    wv = nrm(ks[5], (H, H))
    return dict(
        word_emb=wt(ks[0], (V, H)), pos_emb=wt(ks[1], (S_max, H)), seg_emb=wt(ks[2], (3, H)),
        emb_ln_g=of((H,)), emb_ln_b=zf((H,)),
        wqkv=jnp.concatenate([wq, wk, wv], axis=1).astype(ACT_DTYPE), bqkv=zf((3 * H,)),
        wo=wt(ks[6], (H, H)), bo=zf((H,)),
        ln1_g=of((H,)), ln1_b=zf((H,)),
        w1=wt(ks[7], (H, FFN)), b1=zf((FFN,)), w2=wt(ks[8], (FFN, H)), b2=zf((H,)),
        ln2_g=of((H,)), ln2_b=zf((H,)),
        mlm_w1=wt(ks[9], (H, H)), mlm_b1=zf((H,)),
        mlm_ln_g=of((H,)), mlm_ln_b=zf((H,)),
        mlm_b2=zf((V,)),
    )


def model_forward(params, src, tgt, seg, *, nH):
    """Equivalent of Model.forward(src, tgt, seg) with is_moe=False.
    Returns loss_info = (loss, correct, denominator)."""
    B, S = src.shape
    H = params["word_emb"].shape[1]
    Dh = H // nH
    M = B * S

    # ---- embedding: gathers stay in XLA; sum + LayerNorm fused in one Pallas kernel
    wg = jnp.take(params["word_emb"], src, axis=0)          # [B,S,H] bf16
    sg = jnp.take(params["seg_emb"], seg, axis=0)           # [B,S,H] bf16
    pos = params["pos_emb"][:S]                             # [S,H]   bf16
    x = embed_layernorm(wg, sg, pos, params["emb_ln_g"], params["emb_ln_b"])
    x = x.reshape(M, H)
    # dropout is identity in eval mode.

    # ---- attention mask: additive [B,1,S] key mask (broadcast in-kernel)
    # TODO(synk): key-only mask; PAD-query rows are neutralized by the loss mask below.
    keep = (seg > 0).astype(jnp.float32)                    # [B,S]
    bias = ((1.0 - keep) * -10000.0)[:, None, :]             # [B,1,S]

    # ---- encoder: one transformer layer (post-norm), fused QKV projection,
    #      no XLA transposes around attention.
    qkv = linear(x, params["wqkv"], params["bqkv"])          # [M, 3H] bf16
    ctx = attention(qkv.reshape(B, S, 3 * H), bias, nH=nH, Dh=Dh)   # [B,S,H]
    ctx = linear(ctx.reshape(M, H), params["wo"], params["bo"])
    x = layernorm(ctx, params["ln1_g"], params["ln1_b"], residual=x)
    hh = linear(x, params["w1"], params["b1"], act="gelu")
    hh = linear(hh, params["w2"], params["b2"])
    x = layernorm(hh, params["ln2_g"], params["ln2_b"], residual=x)

    # ---- MLM target (tied output weights = word embedding), fused with loss
    hh = linear(x, params["mlm_w1"], params["mlm_b1"], act="gelu")
    hh = layernorm(hh, params["mlm_ln_g"], params["mlm_ln_b"])

    w_t = params["word_emb"].T                               # one-time [V,H] -> [H,V]
    tgt_flat = tgt.reshape(M)
    nll, pred = mlm_loss(hh, w_t, params["mlm_b2"], tgt_flat)
    # TODO(synk): UER selects rows with tgt>0 via boolean indexing (dynamic shape);
    # here the loss uses a static mask (identical value, no ragged shapes).
    mask = (tgt_flat > 0).astype(jnp.float32)
    denominator = jnp.sum(mask)
    loss = jnp.sum(nll * mask) / (denominator + 1e-6)
    correct = jnp.sum(pred * mask)
    return loss, correct, denominator


if __name__ == "__main__":
    # H chosen as a 128-multiple so per-head / per-projection column blocks are lane-aligned.
    B, S, H, nH, FFN, V = 2, 8, 128, 2, 256, 256

    key = jax.random.PRNGKey(0)
    kp, ks_, kt = jax.random.split(key, 3)
    params = init_params(kp, V=V, S_max=S, H=H, nH=nH, FFN=FFN)

    src = jax.random.randint(ks_, (B, S), 1, V).astype(jnp.int32)
    tgt = jax.random.randint(kt, (B, S), 0, V).astype(jnp.int32)  # 0 = PAD / not-masked
    seg = jnp.ones((B, S), jnp.int32).at[:, -2:].set(0)           # last 2 tokens are padding

    fwd = jax.jit(functools.partial(model_forward, nH=nH))
    loss, correct, denom = fwd(params, src, tgt, seg)
    jax.block_until_ready((loss, correct, denom))
    print("KERNEL_OK")
</pallas_src>

<mosaic_0001>
module attributes {stable_mosaic.version = 11 : i64} {
  func.func @_embed_ln_kernel(%arg0: i32, %arg1: i32, %arg2: memref<1x8x128xbf16, #tpu.memory_space<vmem>>, %arg3: memref<1x8x128xbf16, #tpu.memory_space<vmem>>, %arg4: memref<8x128xbf16, #tpu.memory_space<vmem>>, %arg5: memref<1x128xf32, #tpu.memory_space<vmem>>, %arg6: memref<1x128xf32, #tpu.memory_space<vmem>>, %arg7: memref<1x8x128xbf16, #tpu.memory_space<vmem>>) attributes {dimension_semantics = [#tpu.dimension_semantics<parallel>, #tpu.dimension_semantics<parallel>], iteration_bounds = array<i64: 2, 1>, scalar_prefetch = 0 : i64, scratch_operands = 0 : i64, tpu.core_type = #tpu.core_type<tc>, window_params = [{transform_indices = @transform_0, window_bounds = array<i64: 1, 8, 128>}, {transform_indices = @transform_1, window_bounds = array<i64: 1, 8, 128>}, {transform_indices = @transform_2, window_bounds = array<i64: 8, 128>}, {pipeline_mode = #tpu.pipeline_mode<synchronous>, transform_indices = @transform_3, window_bounds = array<i64: 1, 128>}, {pipeline_mode = #tpu.pipeline_mode<synchronous>, transform_indices = @transform_4, window_bounds = array<i64: 1, 128>}, {transform_indices = @transform_5, window_bounds = array<i64: 1, 8, 128>}]} {
    %c0 = arith.constant 0 : index
    %c0_0 = arith.constant 0 : index
    %c0_1 = arith.constant 0 : index
    %0 = vector.load %arg2[%c0, %c0_0, %c0_1] : memref<1x8x128xbf16, #tpu.memory_space<vmem>>, vector<1x8x128xbf16>
    %1 = vector.shape_cast %0 : vector<1x8x128xbf16> to vector<8x128xbf16>
    %2 = arith.extf %1 : vector<8x128xbf16> to vector<8x128xf32>
    %c0_2 = arith.constant 0 : index
    %c0_3 = arith.constant 0 : index
    %c0_4 = arith.constant 0 : index
    %3 = vector.load %arg3[%c0_2, %c0_3, %c0_4] : memref<1x8x128xbf16, #tpu.memory_space<vmem>>, vector<1x8x128xbf16>
    %4 = vector.shape_cast %3 : vector<1x8x128xbf16> to vector<8x128xbf16>
    %5 = arith.extf %4 : vector<8x128xbf16> to vector<8x128xf32>
    %6 = arith.addf %2, %5 : vector<8x128xf32>
    %c0_5 = arith.constant 0 : index
    %c0_6 = arith.constant 0 : index
    %7 = vector.load %arg4[%c0_5, %c0_6] : memref<8x128xbf16, #tpu.memory_space<vmem>>, vector<8x128xbf16>
    %8 = arith.extf %7 : vector<8x128xbf16> to vector<8x128xf32>
    %9 = arith.addf %6, %8 : vector<8x128xf32>
    %c0_7 = arith.constant 0 : index
    %c0_8 = arith.constant 0 : index
    %10 = vector.load %arg5[%c0_7, %c0_8] : memref<1x128xf32, #tpu.memory_space<vmem>>, vector<1x128xf32>
    %c0_9 = arith.constant 0 : index
    %c0_10 = arith.constant 0 : index
    %11 = vector.load %arg6[%c0_9, %c0_10] : memref<1x128xf32, #tpu.memory_space<vmem>>, vector<1x128xf32>
    %cst = arith.constant dense<0.000000e+00> : vector<8xf32>
    %12 = vector.multi_reduction <add>, %9, %cst [1] : vector<8x128xf32> to vector<8xf32>
    %13 = vector.shape_cast %12 : vector<8xf32> to vector<8x1xf32>
    %cst_11 = arith.constant 1.280000e+02 : f32
    %14 = vector.broadcast %cst_11 : f32 to vector<8x1xf32>
    %15 = arith.divf %13, %14 : vector<8x1xf32>
    %16 = vector.broadcast %15 : vector<8x1xf32> to vector<8x128xf32>
    %17 = arith.subf %9, %16 : vector<8x128xf32>
    %18 = vector.broadcast %15 : vector<8x1xf32> to vector<8x128xf32>
    %19 = arith.subf %9, %18 : vector<8x128xf32>
    %20 = arith.mulf %17, %19 : vector<8x128xf32>
    %cst_12 = arith.constant dense<0.000000e+00> : vector<8xf32>
    %21 = vector.multi_reduction <add>, %20, %cst_12 [1] : vector<8x128xf32> to vector<8xf32>
    %22 = vector.shape_cast %21 : vector<8xf32> to vector<8x1xf32>
    %cst_13 = arith.constant 1.280000e+02 : f32
    %23 = vector.broadcast %cst_13 : f32 to vector<8x1xf32>
    %24 = arith.divf %22, %23 : vector<8x1xf32>
    %25 = vector.broadcast %15 : vector<8x1xf32> to vector<8x128xf32>
    %26 = arith.subf %9, %25 : vector<8x128xf32>
    %cst_14 = arith.constant 9.99999997E-7 : f32
    %27 = vector.broadcast %cst_14 : f32 to vector<8x1xf32>
    %28 = arith.addf %24, %27 : vector<8x1xf32>
    %29 = math.rsqrt %28 : vector<8x1xf32>
    %30 = vector.broadcast %29 : vector<8x1xf32> to vector<8x128xf32>
    %31 = arith.mulf %26, %30 : vector<8x128xf32>
    %32 = vector.broadcast %10 : vector<1x128xf32> to vector<8x128xf32>
    %33 = arith.mulf %31, %32 : vector<8x128xf32>
    %34 = vector.broadcast %11 : vector<1x128xf32> to vector<8x128xf32>
    %35 = arith.addf %33, %34 : vector<8x128xf32>
    %36 = arith.truncf %35 : vector<8x128xf32> to vector<8x128xbf16>
    %c0_15 = arith.constant 0 : index
    %c0_16 = arith.constant 0 : index
    %c0_17 = arith.constant 0 : index
    %37 = vector.load %arg7[%c0_15, %c0_16, %c0_17] : memref<1x8x128xbf16, #tpu.memory_space<vmem>>, vector<1x8x128xbf16>
    %38 = vector.shape_cast %37 : vector<1x8x128xbf16> to vector<8x128xbf16>
    %39 = vector.shape_cast %36 : vector<8x128xbf16> to vector<1x8x128xbf16>
    tpu.vector_store %arg7[%c0_15, %c0_16, %c0_17], %39 {strides = array<i32>} : memref<1x8x128xbf16, #tpu.memory_space<vmem>>, vector<1x8x128xbf16>,
    return
  }
  func.func @transform_0(%arg0: i32, %arg1: i32) -> (i32, i32, i32) {
    %c0_i32 = arith.constant 0 : i32
    %c0_i32_0 = arith.constant 0 : i32
    return %arg0, %arg1, %c0_i32 : i32, i32, i32
  }
  func.func @transform_1(%arg0: i32, %arg1: i32) -> (i32, i32, i32) {
    %c0_i32 = arith.constant 0 : i32
    %c0_i32_0 = arith.constant 0 : i32
    return %arg0, %arg1, %c0_i32 : i32, i32, i32
  }
  func.func @transform_2(%arg0: i32, %arg1: i32) -> (i32, i32) {
    %c0_i32 = arith.constant 0 : i32
    %c0_i32_0 = arith.constant 0 : i32
    return %arg1, %c0_i32 : i32, i32
  }
  func.func @transform_3(%arg0: i32, %arg1: i32) -> (i32, i32) {
    %c0_i32 = arith.constant 0 : i32
    %c0_i32_0 = arith.constant 0 : i32
    %c0_i32_1 = arith.constant 0 : i32
    return %c0_i32, %c0_i32_0 : i32, i32
  }
  func.func @transform_4(%arg0: i32, %arg1: i32) -> (i32, i32) {
    %c0_i32 = arith.constant 0 : i32
    %c0_i32_0 = arith.constant 0 : i32
    %c0_i32_1 = arith.constant 0 : i32
    return %c0_i32, %c0_i32_0 : i32, i32
  }
  func.func @transform_5(%arg0: i32, %arg1: i32) -> (i32, i32, i32) {
    %c0_i32 = arith.constant 0 : i32
    %c0_i32_0 = arith.constant 0 : i32
    return %arg0, %arg1, %c0_i32 : i32, i32, i32
  }
}

module attributes {stable_mosaic.version = 11 : i64} {
  func.func @_linear_kernel(%arg0: i32, %arg1: i32, %arg2: i32, %arg3: memref<16x128xbf16, #tpu.memory_space<vmem>>, %arg4: memref<128x128xbf16, #tpu.memory_space<vmem>>, %arg5: memref<1x128xf32, #tpu.memory_space<vmem>>, %arg6: memref<16x128xbf16, #tpu.memory_space<vmem>>, %arg7: memref<16x128xf32, #tpu.memory_space<vmem>>) attributes {dimension_semantics = [#tpu.dimension_semantics<parallel>, #tpu.dimension_semantics<parallel>, #tpu.dimension_semantics<arbitrary>], iteration_bounds = array<i64: 1, 3, 1>, scalar_prefetch = 0 : i64, scratch_operands = 1 : i64, tpu.core_type = #tpu.core_type<tc>, window_params = [{transform_indices = @transform_0, window_bounds = array<i64: 16, 128>}, {transform_indices = @transform_1, window_bounds = array<i64: 128, 128>}, {transform_indices = @transform_2, window_bounds = array<i64: 1, 128>}, {transform_indices = @transform_3, window_bounds = array<i64: 16, 128>}]} {
    %c0_i32 = arith.constant 0 : i32
    %0 = arith.cmpi eq, %arg2, %c0_i32 : i32
    %1 = arith.extui %0 : i1 to i32
    %c0_i32_0 = arith.constant 0 : i32
    %2 = arith.cmpi ne, %1, %c0_i32_0 : i32
    scf.if %2 {
      %cst_10 = arith.constant 0.000000e+00 : f32
      %12 = vector.broadcast %cst_10 : f32 to vector<16x128xf32>
      %c0_11 = arith.constant 0 : index
      %c0_12 = arith.constant 0 : index
      %13 = vector.load %arg7[%c0_11, %c0_12] : memref<16x128xf32, #tpu.memory_space<vmem>>, vector<16x128xf32>
      tpu.vector_store %arg7[%c0_11, %c0_12], %12 {strides = array<i32>} : memref<16x128xf32, #tpu.memory_space<vmem>>, vector<16x128xf32>,
    } else {
    }
    %c0 = arith.constant 0 : index
    %c0_1 = arith.constant 0 : index
    %3 = vector.load %arg7[%c0, %c0_1] : memref<16x128xf32, #tpu.memory_space<vmem>>, vector<16x128xf32>
    %c0_2 = arith.constant 0 : index
    %c0_3 = arith.constant 0 : index
    %4 = vector.load %arg3[%c0_2, %c0_3] : memref<16x128xbf16, #tpu.memory_space<vmem>>, vector<16x128xbf16>
    %c0_4 = arith.constant 0 : index
    %c0_5 = arith.constant 0 : index
    %5 = vector.load %arg4[%c0_4, %c0_5] : memref<128x128xbf16, #tpu.memory_space<vmem>>, vector<128x128xbf16>
    %cst = arith.constant dense<0.000000e+00> : vector<16x128xf32>
    %6 = tpu.matmul %4, %5, %cst {dimension_numbers = #tpu.dot_dimension_numbers<[1], [0], [0], [1], [0, 0, 1, 1], [], []>} : vector<16x128xbf16>, vector<128x128xbf16>, vector<16x128xf32> -> vector<16x128xf32>
    %7 = arith.addf %3, %6 : vector<16x128xf32>
    %c0_6 = arith.constant 0 : index
    %c0_7 = arith.constant 0 : index
    %8 = vector.load %arg7[%c0_6, %c0_7] : memref<16x128xf32, #tpu.memory_space<vmem>>, vector<16x128xf32>
    tpu.vector_store %arg7[%c0_6, %c0_7], %7 {strides = array<i32>} : memref<16x128xf32, #tpu.memory_space<vmem>>, vector<16x128xf32>,
    %c0_i32_8 = arith.constant 0 : i32
    %9 = arith.cmpi eq, %arg2, %c0_i32_8 : i32
    %10 = arith.extui %9 : i1 to i32
    %c0_i32_9 = arith.constant 0 : i32
    %11 = arith.cmpi ne, %10, %c0_i32_9 : i32
    scf.if %11 {
      %c0_10 = arith.constant 0 : index
      %c0_11 = arith.constant 0 : index
      %12 = vector.load %arg7[%c0_10, %c0_11] : memref<16x128xf32, #tpu.memory_space<vmem>>, vector<16x128xf32>
      %c0_12 = arith.constant 0 : index
      %c0_13 = arith.constant 0 : index
      %13 = vector.load %arg5[%c0_12, %c0_13] : memref<1x128xf32, #tpu.memory_space<vmem>>, vector<1x128xf32>
      %14 = vector.broadcast %13 : vector<1x128xf32> to vector<16x128xf32>
      %15 = arith.addf %12, %14 : vector<16x128xf32>
      %16 = arith.truncf %15 : vector<16x128xf32> to vector<16x128xbf16>
      %c0_14 = arith.constant 0 : index
      %c0_15 = arith.constant 0 : index
      %17 = vector.load %arg6[%c0_14, %c0_15] : memref<16x128xbf16, #tpu.memory_space<vmem>>, vector<16x128xbf16>
      tpu.vector_store %arg6[%c0_14, %c0_15], %16 {strides = array<i32>} : memref<16x128xbf16, #tpu.memory_space<vmem>>, vector<16x128xbf16>,
    } else {
    }
    return
  }
  func.func @transform_0(%arg0: i32, %arg1: i32, %arg2: i32) -> (i32, i32) {
    %c0_i32 = arith.constant 0 : i32
    return %arg0, %arg2 : i32, i32
  }
  func.func @transform_1(%arg0: i32, %arg1: i32, %arg2: i32) -> (i32, i32) {
    %c0_i32 = arith.constant 0 : i32
    return %arg2, %arg1 : i32, i32
  }
  func.func @transform_2(%arg0: i32, %arg1: i32, %arg2: i32) -> (i32, i32) {
    %c0_i32 = arith.constant 0 : i32
    %c0_i32_0 = arith.constant 0 : i32
    return %c0_i32, %arg1 : i32, i32
  }
  func.func @transform_3(%arg0: i32, %arg1: i32, %arg2: i32) -> (i32, i32) {
    %c0_i32 = arith.constant 0 : i32
    return %arg0, %arg1 : i32, i32
  }
}

module attributes {stable_mosaic.version = 11 : i64} {
  func.func @_linear_kernel(%arg0: i32, %arg1: i32, %arg2: i32, %arg3: memref<16x128xbf16, #tpu.memory_space<vmem>>, %arg4: memref<128x128xbf16, #tpu.memory_space<vmem>>, %arg5: memref<1x128xf32, #tpu.memory_space<vmem>>, %arg6: memref<16x128xbf16, #tpu.memory_space<vmem>>, %arg7: memref<16x128xf32, #tpu.memory_space<vmem>>) attributes {dimension_semantics = [#tpu.dimension_semantics<parallel>, #tpu.dimension_semantics<parallel>, #tpu.dimension_semantics<arbitrary>], iteration_bounds = array<i64: 1, 1, 1>, scalar_prefetch = 0 : i64, scratch_operands = 1 : i64, tpu.core_type = #tpu.core_type<tc>, window_params = [{transform_indices = @transform_0, window_bounds = array<i64: 16, 128>}, {transform_indices = @transform_1, window_bounds = array<i64: 128, 128>}, {transform_indices = @transform_2, window_bounds = array<i64: 1, 128>}, {transform_indices = @transform_3, window_bounds = array<i64: 16, 128>}]} {
    %c0_i32 = arith.constant 0 : i32
    %0 = arith.cmpi eq, %arg2, %c0_i32 : i32
    %1 = arith.extui %0 : i1 to i32
    %c0_i32_0 = arith.constant 0 : i32
    %2 = arith.cmpi ne, %1, %c0_i32_0 : i32
    scf.if %2 {
      %cst_10 = arith.constant 0.000000e+00 : f32
      %12 = vector.broadcast %cst_10 : f32 to vector<16x128xf32>
      %c0_11 = arith.constant 0 : index
      %c0_12 = arith.constant 0 : index
      %13 = vector.load %arg7[%c0_11, %c0_12] : memref<16x128xf32, #tpu.memory_space<vmem>>, vector<16x128xf32>
      tpu.vector_store %arg7[%c0_11, %c0_12], %12 {strides = array<i32>} : memref<16x128xf32, #tpu.memory_space<vmem>>, vector<16x128xf32>,
    } else {
    }
    %c0 = arith.constant 0 : index
    %c0_1 = arith.constant 0 : index
    %3 = vector.load %arg7[%c0, %c0_1] : memref<16x128xf32, #tpu.memory_space<vmem>>, vector<16x128xf32>
    %c0_2 = arith.constant 0 : index
    %c0_3 = arith.constant 0 : index
    %4 = vector.load %arg3[%c0_2, %c0_3] : memref<16x128xbf16, #tpu.memory_space<vmem>>, vector<16x128xbf16>
    %c0_4 = arith.constant 0 : index
    %c0_5 = arith.constant 0 : index
    %5 = vector.load %arg4[%c0_4, %c0_5] : memref<128x128xbf16, #tpu.memory_space<vmem>>, vector<128x128xbf16>
    %cst = arith.constant dense<0.000000e+00> : vector<16x128xf32>
    %6 = tpu.matmul %4, %5, %cst {dimension_numbers = #tpu.dot_dimension_numbers<[1], [0], [0], [1], [0, 0, 1, 1], [], []>} : vector<16x128xbf16>, vector<128x128xbf16>, vector<16x128xf32> -> vector<16x128xf32>
    %7 = arith.addf %3, %6 : vector<16x128xf32>
    %c0_6 = arith.constant 0 : index
    %c0_7 = arith.constant 0 : index
    %8 = vector.load %arg7[%c0_6, %c0_7] : memref<16x128xf32, #tpu.memory_space<vmem>>, vector<16x128xf32>
    tpu.vector_store %arg7[%c0_6, %c0_7], %7 {strides = array<i32>} : memref<16x128xf32, #tpu.memory_space<vmem>>, vector<16x128xf32>,
    %c0_i32_8 = arith.constant 0 : i32
    %9 = arith.cmpi eq, %arg2, %c0_i32_8 : i32
    %10 = arith.extui %9 : i1 to i32
    %c0_i32_9 = arith.constant 0 : i32
    %11 = arith.cmpi ne, %10, %c0_i32_9 : i32
    scf.if %11 {
      %c0_10 = arith.constant 0 : index
      %c0_11 = arith.constant 0 : index
      %12 = vector.load %arg7[%c0_10, %c0_11] : memref<16x128xf32, #tpu.memory_space<vmem>>, vector<16x128xf32>
      %c0_12 = arith.constant 0 : index
      %c0_13 = arith.constant 0 : index
      %13 = vector.load %arg5[%c0_12, %c0_13] : memref<1x128xf32, #tpu.memory_space<vmem>>, vector<1x128xf32>
      %14 = vector.broadcast %13 : vector<1x128xf32> to vector<16x128xf32>
      %15 = arith.addf %12, %14 : vector<16x128xf32>
      %16 = arith.truncf %15 : vector<16x128xf32> to vector<16x128xbf16>
      %c0_14 = arith.constant 0 : index
      %c0_15 = arith.constant 0 : index
      %17 = vector.load %arg6[%c0_14, %c0_15] : memref<16x128xbf16, #tpu.memory_space<vmem>>, vector<16x128xbf16>
      tpu.vector_store %arg6[%c0_14, %c0_15], %16 {strides = array<i32>} : memref<16x128xbf16, #tpu.memory_space<vmem>>, vector<16x128xbf16>,
    } else {
    }
    return
  }
  func.func @transform_0(%arg0: i32, %arg1: i32, %arg2: i32) -> (i32, i32) {
    %c0_i32 = arith.constant 0 : i32
    return %arg0, %arg2 : i32, i32
  }
  func.func @transform_1(%arg0: i32, %arg1: i32, %arg2: i32) -> (i32, i32) {
    %c0_i32 = arith.constant 0 : i32
    return %arg2, %arg1 : i32, i32
  }
  func.func @transform_2(%arg0: i32, %arg1: i32, %arg2: i32) -> (i32, i32) {
    %c0_i32 = arith.constant 0 : i32
    %c0_i32_0 = arith.constant 0 : i32
    return %c0_i32, %arg1 : i32, i32
  }
  func.func @transform_3(%arg0: i32, %arg1: i32, %arg2: i32) -> (i32, i32) {
    %c0_i32 = arith.constant 0 : i32
    return %arg0, %arg1 : i32, i32
  }
}

module attributes {stable_mosaic.version = 11 : i64} {
  func.func @_attn_kernel(%arg0: i32, %arg1: i32, %arg2: i32, %arg3: memref<1x8x128xbf16, #tpu.memory_space<vmem>>, %arg4: memref<1x8x128xbf16, #tpu.memory_space<vmem>>, %arg5: memref<1x8x128xbf16, #tpu.memory_space<vmem>>, %arg6: memref<1x1x8xf32, #tpu.memory_space<vmem>>, %arg7: memref<1x8x128xbf16, #tpu.memory_space<vmem>>, %arg8: memref<2x8x1xf32, #tpu.memory_space<vmem>>, %arg9: memref<2x8x1xf32, #tpu.memory_space<vmem>>, %arg10: memref<8x128xf32, #tpu.memory_space<vmem>>) attributes {dimension_semantics = [#tpu.dimension_semantics<parallel>, #tpu.dimension_semantics<parallel>, #tpu.dimension_semantics<arbitrary>], iteration_bounds = array<i64: 2, 1, 1>, scalar_prefetch = 0 : i64, scratch_operands = 3 : i64, tpu.core_type = #tpu.core_type<tc>, window_params = [{transform_indices = @transform_0, window_bounds = array<i64: 1, 8, 128>}, {transform_indices = @transform_1, window_bounds = array<i64: 1, 8, 128>}, {transform_indices = @transform_2, window_bounds = array<i64: 1, 8, 128>}, {transform_indices = @transform_3, window_bounds = array<i64: 1, 1, 8>}, {transform_indices = @transform_4, window_bounds = array<i64: 1, 8, 128>}]} {
    %c0_i32 = arith.constant 0 : i32
    %0 = arith.cmpi eq, %arg2, %c0_i32 : i32
    %1 = arith.extui %0 : i1 to i32
    %c0_i32_0 = arith.constant 0 : i32
    %2 = arith.cmpi ne, %1, %c0_i32_0 : i32
    scf.if %2 {
      %cst_51 = arith.constant -1.000000e+30 : f32
      %84 = vector.broadcast %cst_51 : f32 to vector<2x8x1xf32>
      %c0_52 = arith.constant 0 : index
      %c0_53 = arith.constant 0 : index
      %c0_54 = arith.constant 0 : index
      %85 = vector.load %arg8[%c0_52, %c0_53, %c0_54] : memref<2x8x1xf32, #tpu.memory_space<vmem>>, vector<2x8x1xf32>
      tpu.vector_store %arg8[%c0_52, %c0_53, %c0_54], %84 {strides = array<i32>} : memref<2x8x1xf32, #tpu.memory_space<vmem>>, vector<2x8x1xf32>,
      %cst_55 = arith.constant 0.000000e+00 : f32
      %86 = vector.broadcast %cst_55 : f32 to vector<2x8x1xf32>
      %c0_56 = arith.constant 0 : index
      %c0_57 = arith.constant 0 : index
      %c0_58 = arith.constant 0 : index
      %87 = vector.load %arg9[%c0_56, %c0_57, %c0_58] : memref<2x8x1xf32, #tpu.memory_space<vmem>>, vector<2x8x1xf32>
      tpu.vector_store %arg9[%c0_56, %c0_57, %c0_58], %86 {strides = array<i32>} : memref<2x8x1xf32, #tpu.memory_space<vmem>>, vector<2x8x1xf32>,
      %cst_59 = arith.constant 0.000000e+00 : f32
      %88 = vector.broadcast %cst_59 : f32 to vector<8x128xf32>
      %c0_60 = arith.constant 0 : index
      %c0_61 = arith.constant 0 : index
      %89 = vector.load %arg10[%c0_60, %c0_61] : memref<8x128xf32, #tpu.memory_space<vmem>>, vector<8x128xf32>
      tpu.vector_store %arg10[%c0_60, %c0_61], %88 {strides = array<i32>} : memref<8x128xf32, #tpu.memory_space<vmem>>, vector<8x128xf32>,
    } else {
    }
    %c0 = arith.constant 0 : index
    %c0_1 = arith.constant 0 : index
    %c0_2 = arith.constant 0 : index
    %3 = vector.load %arg3[%c0, %c0_1, %c0_2] : memref<1x8x128xbf16, #tpu.memory_space<vmem>>, vector<1x8x128xbf16>
    %4 = vector.shape_cast %3 : vector<1x8x128xbf16> to vector<8x128xbf16>
    %c0_3 = arith.constant 0 : index
    %c0_4 = arith.constant 0 : index
    %c0_5 = arith.constant 0 : index
    %5 = vector.load %arg4[%c0_3, %c0_4, %c0_5] : memref<1x8x128xbf16, #tpu.memory_space<vmem>>, vector<1x8x128xbf16>
    %6 = vector.shape_cast %5 : vector<1x8x128xbf16> to vector<8x128xbf16>
    %c0_6 = arith.constant 0 : index
    %c0_7 = arith.constant 0 : index
    %c0_8 = arith.constant 0 : index
    %7 = vector.load %arg5[%c0_6, %c0_7, %c0_8] : memref<1x8x128xbf16, #tpu.memory_space<vmem>>, vector<1x8x128xbf16>
    %8 = vector.shape_cast %7 : vector<1x8x128xbf16> to vector<8x128xbf16>
    %c0_9 = arith.constant 0 : index
    %c0_10 = arith.constant 0 : index
    %c0_11 = arith.constant 0 : index
    %9 = vector.load %arg6[%c0_9, %c0_10, %c0_11] : memref<1x1x8xf32, #tpu.memory_space<vmem>>, vector<1x1x8xf32>
    %10 = vector.shape_cast %9 : vector<1x1x8xf32> to vector<1x8xf32>
    %11 = vector.extract_strided_slice %4 {offsets = [0, 0], sizes = [8, 64], strides = [1, 1]} : vector<8x128xbf16> to vector<8x64xbf16>
    %12 = vector.extract_strided_slice %6 {offsets = [0, 0], sizes = [8, 64], strides = [1, 1]} : vector<8x128xbf16> to vector<8x64xbf16>
    %cst = arith.constant dense<0.000000e+00> : vector<8x8xf32>
    %13 = tpu.matmul %11, %12, %cst {dimension_numbers = #tpu.dot_dimension_numbers<[1], [1], [0], [0], [0, 0, 1, 0], [], []>} : vector<8x64xbf16>, vector<8x64xbf16>, vector<8x8xf32> -> vector<8x8xf32>
    %14 = vector.broadcast %10 : vector<1x8xf32> to vector<8x8xf32>
    %15 = arith.addf %13, %14 : vector<8x8xf32>
    %c0_12 = arith.constant 0 : index
    %c0_13 = arith.constant 0 : index
    %c0_14 = arith.constant 0 : index
    %16 = vector.load %arg8[%c0_12, %c0_13, %c0_14] : memref<2x8x1xf32, #tpu.memory_space<vmem>>, vector<1x8x1xf32>
    %17 = vector.shape_cast %16 : vector<1x8x1xf32> to vector<8x1xf32>
    %cst_15 = arith.constant dense<0xFF800000> : vector<8xf32>
    %18 = vector.multi_reduction <maximumf>, %15, %cst_15 [1] : vector<8x8xf32> to vector<8xf32>
    %19 = vector.shape_cast %18 : vector<8xf32> to vector<8x1xf32>
    %20 = arith.maximumf %17, %19 : vector<8x1xf32>
    %21 = arith.subf %17, %20 : vector<8x1xf32>
    %22 = math.exp %21 : vector<8x1xf32>
    %23 = vector.broadcast %20 : vector<8x1xf32> to vector<8x8xf32>
    %24 = arith.subf %15, %23 : vector<8x8xf32>
    %25 = math.exp %24 : vector<8x8xf32>
    %c0_16 = arith.constant 0 : index
    %c0_17 = arith.constant 0 : index
    %c0_18 = arith.constant 0 : index
    %26 = vector.load %arg9[%c0_16, %c0_17, %c0_18] : memref<2x8x1xf32, #tpu.memory_space<vmem>>, vector<1x8x1xf32>
    %27 = vector.shape_cast %26 : vector<1x8x1xf32> to vector<8x1xf32>
    %28 = arith.mulf %22, %27 : vector<8x1xf32>
    %cst_19 = arith.constant dense<0.000000e+00> : vector<8xf32>
    %29 = vector.multi_reduction <add>, %25, %cst_19 [1] : vector<8x8xf32> to vector<8xf32>
    %30 = vector.shape_cast %29 : vector<8xf32> to vector<8x1xf32>
    %31 = arith.addf %28, %30 : vector<8x1xf32>
    %c0_20 = arith.constant 0 : index
    %c0_21 = arith.constant 0 : index
    %c0_22 = arith.constant 0 : index
    %32 = vector.load %arg9[%c0_20, %c0_21, %c0_22] : memref<2x8x1xf32, #tpu.memory_space<vmem>>, vector<1x8x1xf32>
    %33 = vector.shape_cast %32 : vector<1x8x1xf32> to vector<8x1xf32>
    %34 = vector.shape_cast %31 : vector<8x1xf32> to vector<1x8x1xf32>
    tpu.vector_store %arg9[%c0_20, %c0_21, %c0_22], %34 {strides = array<i32>} : memref<2x8x1xf32, #tpu.memory_space<vmem>>, vector<1x8x1xf32>,
    %c0_23 = arith.constant 0 : index
    %c0_24 = arith.constant 0 : index
    %35 = vector.load %arg10[%c0_23, %c0_24] : memref<8x128xf32, #tpu.memory_space<vmem>>, vector<8x64xf32>
    %36 = vector.broadcast %22 : vector<8x1xf32> to vector<8x64xf32>
    %37 = arith.mulf %36, %35 : vector<8x64xf32>
    %38 = arith.truncf %25 : vector<8x8xf32> to vector<8x8xbf16>
    %39 = vector.extract_strided_slice %8 {offsets = [0, 0], sizes = [8, 64], strides = [1, 1]} : vector<8x128xbf16> to vector<8x64xbf16>
    %cst_25 = arith.constant dense<0.000000e+00> : vector<8x64xf32>
    %40 = tpu.matmul %38, %39, %cst_25 {dimension_numbers = #tpu.dot_dimension_numbers<[1], [0], [0], [1], [0, 0, 1, 1], [], []>} : vector<8x8xbf16>, vector<8x64xbf16>, vector<8x64xf32> -> vector<8x64xf32>
    %41 = arith.addf %37, %40 : vector<8x64xf32>
    %c0_26 = arith.constant 0 : index
    %c0_27 = arith.constant 0 : index
    %42 = vector.load %arg10[%c0_26, %c0_27] : memref<8x128xf32, #tpu.memory_space<vmem>>, vector<8x64xf32>
    tpu.vector_store %arg10[%c0_26, %c0_27], %41 {strides = array<i32>} : memref<8x128xf32, #tpu.memory_space<vmem>>, vector<8x64xf32>,
    %c0_28 = arith.constant 0 : index
    %c0_29 = arith.constant 0 : index
    %c0_30 = arith.constant 0 : index
    %43 = vector.load %arg8[%c0_28, %c0_29, %c0_30] : memref<2x8x1xf32, #tpu.memory_space<vmem>>, vector<1x8x1xf32>
    %44 = vector.shape_cast %43 : vector<1x8x1xf32> to vector<8x1xf32>
    %45 = vector.shape_cast %20 : vector<8x1xf32> to vector<1x8x1xf32>
    tpu.vector_store %arg8[%c0_28, %c0_29, %c0_30], %45 {strides = array<i32>} : memref<2x8x1xf32, #tpu.memory_space<vmem>>, vector<1x8x1xf32>,
    %46 = vector.extract_strided_slice %4 {offsets = [0, 64], sizes = [8, 64], strides = [1, 1]} : vector<8x128xbf16> to vector<8x64xbf16>
    %47 = vector.extract_strided_slice %6 {offsets = [0, 64], sizes = [8, 64], strides = [1, 1]} : vector<8x128xbf16> to vector<8x64xbf16>
    %cst_31 = arith.constant dense<0.000000e+00> : vector<8x8xf32>
    %48 = tpu.matmul %46, %47, %cst_31 {dimension_numbers = #tpu.dot_dimension_numbers<[1], [1], [0], [0], [0, 0, 1, 0], [], []>} : vector<8x64xbf16>, vector<8x64xbf16>, vector<8x8xf32> -> vector<8x8xf32>
    %49 = vector.broadcast %10 : vector<1x8xf32> to vector<8x8xf32>
    %50 = arith.addf %48, %49 : vector<8x8xf32>
    %c1 = arith.constant 1 : index
    %c0_32 = arith.constant 0 : index
    %c0_33 = arith.constant 0 : index
    %51 = vector.load %arg8[%c1, %c0_32, %c0_33] : memref<2x8x1xf32, #tpu.memory_space<vmem>>, vector<1x8x1xf32>
    %52 = vector.shape_cast %51 : vector<1x8x1xf32> to vector<8x1xf32>
    %cst_34 = arith.constant dense<0xFF800000> : vector<8xf32>
    %53 = vector.multi_reduction <maximumf>, %50, %cst_34 [1] : vector<8x8xf32> to vector<8xf32>
    %54 = vector.shape_cast %53 : vector<8xf32> to vector<8x1xf32>
    %55 = arith.maximumf %52, %54 : vector<8x1xf32>
    %56 = arith.subf %52, %55 : vector<8x1xf32>
    %57 = math.exp %56 : vector<8x1xf32>
    %58 = vector.broadcast %55 : vector<8x1xf32> to vector<8x8xf32>
    %59 = arith.subf %50, %58 : vector<8x8xf32>
    %60 = math.exp %59 : vector<8x8xf32>
    %c1_35 = arith.constant 1 : index
    %c0_36 = arith.constant 0 : index
    %c0_37 = arith.constant 0 : index
    %61 = vector.load %arg9[%c1_35, %c0_36, %c0_37] : memref<2x8x1xf32, #tpu.memory_space<vmem>>, vector<1x8x1xf32>
    %62 = vector.shape_cast %61 : vector<1x8x1xf32> to vector<8x1xf32>
    %63 = arith.mulf %57, %62 : vector<8x1xf32>
    %cst_38 = arith.constant dense<0.000000e+00> : vector<8xf32>
    %64 = vector.multi_reduction <add>, %60, %cst_38 [1] : vector<8x8xf32> to vector<8xf32>
    %65 = vector.shape_cast %64 : vector<8xf32> to vector<8x1xf32>
    %66 = arith.addf %63, %65 : vector<8x1xf32>
    %c1_39 = arith.constant 1 : index
    %c0_40 = arith.constant 0 : index
    %c0_41 = arith.constant 0 : index
    %67 = vector.load %arg9[%c1_39, %c0_40, %c0_41] : memref<2x8x1xf32, #tpu.memory_space<vmem>>, vector<1x8x1xf32>
    %68 = vector.shape_cast %67 : vector<1x8x1xf32> to vector<8x1xf32>
    %69 = vector.shape_cast %66 : vector<8x1xf32> to vector<1x8x1xf32>
    tpu.vector_store %arg9[%c1_39, %c0_40, %c0_41], %69 {strides = array<i32>} : memref<2x8x1xf32, #tpu.memory_space<vmem>>, vector<1x8x1xf32>,
    %c0_42 = arith.constant 0 : index
    %c64 = arith.constant 64 : index
    %70 = vector.load %arg10[%c0_42, %c64] : memref<8x128xf32, #tpu.memory_space<vmem>>, vector<8x64xf32>
    %71 = vector.broadcast %57 : vector<8x1xf32> to vector<8x64xf32>
    %72 = arith.mulf %71, %70 : vector<8x64xf32>
    %73 = arith.truncf %60 : vector<8x8xf32> to vector<8x8xbf16>
    %74 = vector.extract_strided_slice %8 {offsets = [0, 64], sizes = [8, 64], strides = [1, 1]} : vector<8x128xbf16> to vector<8x64xbf16>
    %cst_43 = arith.constant dense<0.000000e+00> : vector<8x64xf32>
    %75 = tpu.matmul %73, %74, %cst_43 {dimension_numbers = #tpu.dot_dimension_numbers<[1], [0], [0], [1], [0, 0, 1, 1], [], []>} : vector<8x8xbf16>, vector<8x64xbf16>, vector<8x64xf32> -> vector<8x64xf32>
    %76 = arith.addf %72, %75 : vector<8x64xf32>
    %c0_44 = arith.constant 0 : index
    %c64_45 = arith.constant 64 : index
    %77 = vector.load %arg10[%c0_44, %c64_45] : memref<8x128xf32, #tpu.memory_space<vmem>>, vector<8x64xf32>
    tpu.vector_store %arg10[%c0_44, %c64_45], %76 {strides = array<i32>} : memref<8x128xf32, #tpu.memory_space<vmem>>, vector<8x64xf32>,
    %c1_46 = arith.constant 1 : index
    %c0_47 = arith.constant 0 : index
    %c0_48 = arith.constant 0 : index
    %78 = vector.load %arg8[%c1_46, %c0_47, %c0_48] : memref<2x8x1xf32, #tpu.memory_space<vmem>>, vector<1x8x1xf32>
    %79 = vector.shape_cast %78 : vector<1x8x1xf32> to vector<8x1xf32>
    %80 = vector.shape_cast %55 : vector<8x1xf32> to vector<1x8x1xf32>
    tpu.vector_store %arg8[%c1_46, %c0_47, %c0_48], %80 {strides = array<i32>} : memref<2x8x1xf32, #tpu.memory_space<vmem>>, vector<1x8x1xf32>,
    %c0_i32_49 = arith.constant 0 : i32
    %81 = arith.cmpi eq, %arg2, %c0_i32_49 : i32
    %82 = arith.extui %81 : i1 to i32
    %c0_i32_50 = arith.constant 0 : i32
    %83 = arith.cmpi ne, %82, %c0_i32_50 : i32
    scf.if %83 {
      %c0_51 = arith.constant 0 : index
      %c0_52 = arith.constant 0 : index
      %c0_53 = arith.constant 0 : index
      %84 = vector.load %arg9[%c0_51, %c0_52, %c0_53] : memref<2x8x1xf32, #tpu.memory_space<vmem>>, vector<1x8x1xf32>
      %85 = vector.shape_cast %84 : vector<1x8x1xf32> to vector<8x1xf32>
      %86 = tpu.reciprocal %85 {approx = true} : vector<8x1xf32> -> vector<8x1xf32>
      %87 = vector.shape_cast %86 : vector<8x1xf32> to vector<8x1xf32>
      %88 = vector.broadcast %87 : vector<8x1xf32> to vector<8x64xf32>
      %c1_54 = arith.constant 1 : index
      %c0_55 = arith.constant 0 : index
      %c0_56 = arith.constant 0 : index
      %89 = vector.load %arg9[%c1_54, %c0_55, %c0_56] : memref<2x8x1xf32, #tpu.memory_space<vmem>>, vector<1x8x1xf32>
      %90 = vector.shape_cast %89 : vector<1x8x1xf32> to vector<8x1xf32>
      %91 = tpu.reciprocal %90 {approx = true} : vector<8x1xf32> -> vector<8x1xf32>
      %92 = vector.shape_cast %91 : vector<8x1xf32> to vector<8x1xf32>
      %93 = vector.broadcast %92 : vector<8x1xf32> to vector<8x64xf32>
      %94 = tpu.concatenate %88, %93 in 1 : vector<8x64xf32>, vector<8x64xf32> -> vector<8x128xf32>
      %c0_57 = arith.constant 0 : index
      %c0_58 = arith.constant 0 : index
      %95 = vector.load %arg10[%c0_57, %c0_58] : memref<8x128xf32, #tpu.memory_space<vmem>>, vector<8x128xf32>
      %96 = arith.mulf %95, %94 : vector<8x128xf32>
      %97 = arith.truncf %96 : vector<8x128xf32> to vector<8x128xbf16>
      %c0_59 = arith.constant 0 : index
      %c0_60 = arith.constant 0 : index
      %c0_61 = arith.constant 0 : index
      %98 = vector.load %arg7[%c0_59, %c0_60, %c0_61] : memref<1x8x128xbf16, #tpu.memory_space<vmem>>, vector<1x8x128xbf16>
      %99 = vector.shape_cast %98 : vector<1x8x128xbf16> to vector<8x128xbf16>
      %100 = vector.shape_cast %97 : vector<8x128xbf16> to vector<1x8x128xbf16>
      tpu.vector_store %arg7[%c0_59, %c0_60, %c0_61], %100 {strides = array<i32>} : memref<1x8x128xbf16, #tpu.memory_space<vmem>>, vector<1x8x128xbf16>,
    } else {
    }
    return
  }
  func.func @transform_0(%arg0: i32, %arg1: i32, %arg2: i32) -> (i32, i32, i32) {
    %c0_i32 = arith.constant 0 : i32
    %c0_i32_0 = arith.constant 0 : i32
    return %arg0, %arg1, %c0_i32 : i32, i32, i32
  }
  func.func @transform_1(%arg0: i32, %arg1: i32, %arg2: i32) -> (i32, i32, i32) {
    %c1_i32 = arith.constant 1 : i32
    %c0_i32 = arith.constant 0 : i32
    return %arg0, %arg2, %c1_i32 : i32, i32, i32
  }
  func.func @transform_2(%arg0: i32, %arg1: i32, %arg2: i32) -> (i32, i32, i32) {
    %c2_i32 = arith.constant 2 : i32
    %c0_i32 = arith.constant 0 : i32
    return %arg0, %arg2, %c2_i32 : i32, i32, i32
  }
  func.func @transform_3(%arg0: i32, %arg1: i32, %arg2: i32) -> (i32, i32, i32) {
    %c0_i32 = arith.constant 0 : i32
    %c0_i32_0 = arith.constant 0 : i32
    return %arg0, %c0_i32, %arg2 : i32, i32, i32
  }
  func.func @transform_4(%arg0: i32, %arg1: i32, %arg2: i32) -> (i32, i32, i32) {
    %c0_i32 = arith.constant 0 : i32
    %c0_i32_0 = arith.constant 0 : i32
    return %arg0, %arg1, %c0_i32 : i32, i32, i32
  }
}

module attributes {stable_mosaic.version = 11 : i64} {
  func.func @_add_ln_kernel(%arg0: i32, %arg1: memref<16x128xbf16, #tpu.memory_space<vmem>>, %arg2: memref<16x128xbf16, #tpu.memory_space<vmem>>, %arg3: memref<1x128xf32, #tpu.memory_space<vmem>>, %arg4: memref<1x128xf32, #tpu.memory_space<vmem>>, %arg5: memref<16x128xbf16, #tpu.memory_space<vmem>>) attributes {dimension_semantics = [#tpu.dimension_semantics<parallel>], iteration_bounds = array<i64: 1>, scalar_prefetch = 0 : i64, scratch_operands = 0 : i64, tpu.core_type = #tpu.core_type<tc>, window_params = [{transform_indices = @transform_0, window_bounds = array<i64: 16, 128>}, {transform_indices = @transform_1, window_bounds = array<i64: 16, 128>}, {pipeline_mode = #tpu.pipeline_mode<synchronous>, transform_indices = @transform_2, window_bounds = array<i64: 1, 128>}, {pipeline_mode = #tpu.pipeline_mode<synchronous>, transform_indices = @transform_3, window_bounds = array<i64: 1, 128>}, {transform_indices = @transform_4, window_bounds = array<i64: 16, 128>}]} {
    %c0 = arith.constant 0 : index
    %c0_0 = arith.constant 0 : index
    %0 = vector.load %arg1[%c0, %c0_0] : memref<16x128xbf16, #tpu.memory_space<vmem>>, vector<16x128xbf16>
    %1 = arith.extf %0 : vector<16x128xbf16> to vector<16x128xf32>
    %c0_1 = arith.constant 0 : index
    %c0_2 = arith.constant 0 : index
    %2 = vector.load %arg2[%c0_1, %c0_2] : memref<16x128xbf16, #tpu.memory_space<vmem>>, vector<16x128xbf16>
    %3 = arith.extf %2 : vector<16x128xbf16> to vector<16x128xf32>
    %4 = arith.addf %1, %3 : vector<16x128xf32>
    %c0_3 = arith.constant 0 : index
    %c0_4 = arith.constant 0 : index
    %5 = vector.load %arg3[%c0_3, %c0_4] : memref<1x128xf32, #tpu.memory_space<vmem>>, vector<1x128xf32>
    %c0_5 = arith.constant 0 : index
    %c0_6 = arith.constant 0 : index
    %6 = vector.load %arg4[%c0_5, %c0_6] : memref<1x128xf32, #tpu.memory_space<vmem>>, vector<1x128xf32>
    %cst = arith.constant dense<0.000000e+00> : vector<16xf32>
    %7 = vector.multi_reduction <add>, %4, %cst [1] : vector<16x128xf32> to vector<16xf32>
    %8 = vector.shape_cast %7 : vector<16xf32> to vector<16x1xf32>
    %cst_7 = arith.constant 1.280000e+02 : f32
    %9 = vector.broadcast %cst_7 : f32 to vector<16x1xf32>
    %10 = arith.divf %8, %9 : vector<16x1xf32>
    %11 = vector.broadcast %10 : vector<16x1xf32> to vector<16x128xf32>
    %12 = arith.subf %4, %11 : vector<16x128xf32>
    %13 = vector.broadcast %10 : vector<16x1xf32> to vector<16x128xf32>
    %14 = arith.subf %4, %13 : vector<16x128xf32>
    %15 = arith.mulf %12, %14 : vector<16x128xf32>
    %cst_8 = arith.constant dense<0.000000e+00> : vector<16xf32>
    %16 = vector.multi_reduction <add>, %15, %cst_8 [1] : vector<16x128xf32> to vector<16xf32>
    %17 = vector.shape_cast %16 : vector<16xf32> to vector<16x1xf32>
    %cst_9 = arith.constant 1.280000e+02 : f32
    %18 = vector.broadcast %cst_9 : f32 to vector<16x1xf32>
    %19 = arith.divf %17, %18 : vector<16x1xf32>
    %20 = vector.broadcast %10 : vector<16x1xf32> to vector<16x128xf32>
    %21 = arith.subf %4, %20 : vector<16x128xf32>
    %cst_10 = arith.constant 9.99999997E-7 : f32
    %22 = vector.broadcast %cst_10 : f32 to vector<16x1xf32>
    %23 = arith.addf %19, %22 : vector<16x1xf32>
    %24 = math.rsqrt %23 : vector<16x1xf32>
    %25 = vector.broadcast %24 : vector<16x1xf32> to vector<16x128xf32>
    %26 = arith.mulf %21, %25 : vector<16x128xf32>
    %27 = vector.broadcast %5 : vector<1x128xf32> to vector<16x128xf32>
    %28 = arith.mulf %26, %27 : vector<16x128xf32>
    %29 = vector.broadcast %6 : vector<1x128xf32> to vector<16x128xf32>
    %30 = arith.addf %28, %29 : vector<16x128xf32>
    %31 = arith.truncf %30 : vector<16x128xf32> to vector<16x128xbf16>
    %c0_11 = arith.constant 0 : index
    %c0_12 = arith.constant 0 : index
    %32 = vector.load %arg5[%c0_11, %c0_12] : memref<16x128xbf16, #tpu.memory_space<vmem>>, vector<16x128xbf16>
    tpu.vector_store %arg5[%c0_11, %c0_12], %31 {strides = array<i32>} : memref<16x128xbf16, #tpu.memory_space<vmem>>, vector<16x128xbf16>,
    return
  }
  func.func @transform_0(%arg0: i32) -> (i32, i32) {
    %c0_i32 = arith.constant 0 : i32
    %c0_i32_0 = arith.constant 0 : i32
    return %arg0, %c0_i32 : i32, i32
  }
  func.func @transform_1(%arg0: i32) -> (i32, i32) {
    %c0_i32 = arith.constant 0 : i32
    %c0_i32_0 = arith.constant 0 : i32
    return %arg0, %c0_i32 : i32, i32
  }
  func.func @transform_2(%arg0: i32) -> (i32, i32) {
    %c0_i32 = arith.constant 0 : i32
    %c0_i32_0 = arith.constant 0 : i32
    %c0_i32_1 = arith.constant 0 : i32
    return %c0_i32, %c0_i32_0 : i32, i32
  }
  func.func @transform_3(%arg0: i32) -> (i32, i32) {
    %c0_i32 = arith.constant 0 : i32
    %c0_i32_0 = arith.constant 0 : i32
    %c0_i32_1 = arith.constant 0 : i32
    return %c0_i32, %c0_i32_0 : i32, i32
  }
  func.func @transform_4(%arg0: i32) -> (i32, i32) {
    %c0_i32 = arith.constant 0 : i32
    %c0_i32_0 = arith.constant 0 : i32
    return %arg0, %c0_i32 : i32, i32
  }
}

module attributes {stable_mosaic.version = 11 : i64} {
  func.func @_linear_kernel(%arg0: i32, %arg1: i32, %arg2: i32, %arg3: memref<16x128xbf16, #tpu.memory_space<vmem>>, %arg4: memref<128x256xbf16, #tpu.memory_space<vmem>>, %arg5: memref<1x256xf32, #tpu.memory_space<vmem>>, %arg6: memref<16x256xbf16, #tpu.memory_space<vmem>>, %arg7: memref<16x256xf32, #tpu.memory_space<vmem>>) attributes {dimension_semantics = [#tpu.dimension_semantics<parallel>, #tpu.dimension_semantics<parallel>, #tpu.dimension_semantics<arbitrary>], iteration_bounds = array<i64: 1, 1, 1>, scalar_prefetch = 0 : i64, scratch_operands = 1 : i64, tpu.core_type = #tpu.core_type<tc>, window_params = [{transform_indices = @transform_0, window_bounds = array<i64: 16, 128>}, {transform_indices = @transform_1, window_bounds = array<i64: 128, 256>}, {transform_indices = @transform_2, window_bounds = array<i64: 1, 256>}, {transform_indices = @transform_3, window_bounds = array<i64: 16, 256>}]} {
    %c0_i32 = arith.constant 0 : i32
    %0 = arith.cmpi eq, %arg2, %c0_i32 : i32
    %1 = arith.extui %0 : i1 to i32
    %c0_i32_0 = arith.constant 0 : i32
    %2 = arith.cmpi ne, %1, %c0_i32_0 : i32
    scf.if %2 {
      %cst_10 = arith.constant 0.000000e+00 : f32
      %12 = vector.broadcast %cst_10 : f32 to vector<16x256xf32>
      %c0_11 = arith.constant 0 : index
      %c0_12 = arith.constant 0 : index
      %13 = vector.load %arg7[%c0_11, %c0_12] : memref<16x256xf32, #tpu.memory_space<vmem>>, vector<16x256xf32>
      tpu.vector_store %arg7[%c0_11, %c0_12], %12 {strides = array<i32>} : memref<16x256xf32, #tpu.memory_space<vmem>>, vector<16x256xf32>,
    } else {
    }
    %c0 = arith.constant 0 : index
    %c0_1 = arith.constant 0 : index
    %3 = vector.load %arg7[%c0, %c0_1] : memref<16x256xf32, #tpu.memory_space<vmem>>, vector<16x256xf32>
    %c0_2 = arith.constant 0 : index
    %c0_3 = arith.constant 0 : index
    %4 = vector.load %arg3[%c0_2, %c0_3] : memref<16x128xbf16, #tpu.memory_space<vmem>>, vector<16x128xbf16>
    %c0_4 = arith.constant 0 : index
    %c0_5 = arith.constant 0 : index
    %5 = vector.load %arg4[%c0_4, %c0_5] : memref<128x256xbf16, #tpu.memory_space<vmem>>, vector<128x256xbf16>
    %cst = arith.constant dense<0.000000e+00> : vector<16x256xf32>
    %6 = tpu.matmul %4, %5, %cst {dimension_numbers = #tpu.dot_dimension_numbers<[1], [0], [0], [1], [0, 0, 1, 1], [], []>} : vector<16x128xbf16>, vector<128x256xbf16>, vector<16x256xf32> -> vector<16x256xf32>
    %7 = arith.addf %3, %6 : vector<16x256xf32>
    %c0_6 = arith.constant 0 : index
    %c0_7 = arith.constant 0 : index
    %8 = vector.load %arg7[%c0_6, %c0_7] : memref<16x256xf32, #tpu.memory_space<vmem>>, vector<16x256xf32>
    tpu.vector_store %arg7[%c0_6, %c0_7], %7 {strides = array<i32>} : memref<16x256xf32, #tpu.memory_space<vmem>>, vector<16x256xf32>,
    %c0_i32_8 = arith.constant 0 : i32
    %9 = arith.cmpi eq, %arg2, %c0_i32_8 : i32
    %10 = arith.extui %9 : i1 to i32
    %c0_i32_9 = arith.constant 0 : i32
    %11 = arith.cmpi ne, %10, %c0_i32_9 : i32
    scf.if %11 {
      %c0_10 = arith.constant 0 : index
      %c0_11 = arith.constant 0 : index
      %12 = vector.load %arg7[%c0_10, %c0_11] : memref<16x256xf32, #tpu.memory_space<vmem>>, vector<16x256xf32>
      %c0_12 = arith.constant 0 : index
      %c0_13 = arith.constant 0 : index
      %13 = vector.load %arg5[%c0_12, %c0_13] : memref<1x256xf32, #tpu.memory_space<vmem>>, vector<1x256xf32>
      %14 = vector.broadcast %13 : vector<1x256xf32> to vector<16x256xf32>
      %15 = arith.addf %12, %14 : vector<16x256xf32>
      %cst_14 = arith.constant 5.000000e-01 : f32
      %16 = vector.broadcast %cst_14 : f32 to vector<16x256xf32>
      %17 = arith.mulf %16, %15 : vector<16x256xf32>
      %cst_15 = arith.constant 4.471500e-02 : f32
      %18 = vector.broadcast %cst_15 : f32 to vector<16x256xf32>
      %19 = arith.mulf %18, %15 : vector<16x256xf32>
      %20 = arith.mulf %19, %15 : vector<16x256xf32>
      %21 = arith.mulf %20, %15 : vector<16x256xf32>
      %22 = arith.addf %15, %21 : vector<16x256xf32>
      %cst_16 = arith.constant 0.797884583 : f32
      %23 = vector.broadcast %cst_16 : f32 to vector<16x256xf32>
      %24 = arith.mulf %23, %22 : vector<16x256xf32>
      %25 = math.tanh %24 : vector<16x256xf32>
      %cst_17 = arith.constant 1.000000e+00 : f32
      %26 = vector.broadcast %cst_17 : f32 to vector<16x256xf32>
      %27 = arith.addf %26, %25 : vector<16x256xf32>
      %28 = arith.mulf %17, %27 : vector<16x256xf32>
      %29 = arith.truncf %28 : vector<16x256xf32> to vector<16x256xbf16>
      %c0_18 = arith.constant 0 : index
      %c0_19 = arith.constant 0 : index
      %30 = vector.load %arg6[%c0_18, %c0_19] : memref<16x256xbf16, #tpu.memory_space<vmem>>, vector<16x256xbf16>
      tpu.vector_store %arg6[%c0_18, %c0_19], %29 {strides = array<i32>} : memref<16x256xbf16, #tpu.memory_space<vmem>>, vector<16x256xbf16>,
    } else {
    }
    return
  }
  func.func @transform_0(%arg0: i32, %arg1: i32, %arg2: i32) -> (i32, i32) {
    %c0_i32 = arith.constant 0 : i32
    return %arg0, %arg2 : i32, i32
  }
  func.func @transform_1(%arg0: i32, %arg1: i32, %arg2: i32) -> (i32, i32) {
    %c0_i32 = arith.constant 0 : i32
    return %arg2, %arg1 : i32, i32
  }
  func.func @transform_2(%arg0: i32, %arg1: i32, %arg2: i32) -> (i32, i32) {
    %c0_i32 = arith.constant 0 : i32
    %c0_i32_0 = arith.constant 0 : i32
    return %c0_i32, %arg1 : i32, i32
  }
  func.func @transform_3(%arg0: i32, %arg1: i32, %arg2: i32) -> (i32, i32) {
    %c0_i32 = arith.constant 0 : i32
    return %arg0, %arg1 : i32, i32
  }
}

module attributes {stable_mosaic.version = 11 : i64} {
  func.func @_linear_kernel(%arg0: i32, %arg1: i32, %arg2: i32, %arg3: memref<16x256xbf16, #tpu.memory_space<vmem>>, %arg4: memref<256x128xbf16, #tpu.memory_space<vmem>>, %arg5: memref<1x128xf32, #tpu.memory_space<vmem>>, %arg6: memref<16x128xbf16, #tpu.memory_space<vmem>>, %arg7: memref<16x128xf32, #tpu.memory_space<vmem>>) attributes {dimension_semantics = [#tpu.dimension_semantics<parallel>, #tpu.dimension_semantics<parallel>, #tpu.dimension_semantics<arbitrary>], iteration_bounds = array<i64: 1, 1, 1>, scalar_prefetch = 0 : i64, scratch_operands = 1 : i64, tpu.core_type = #tpu.core_type<tc>, window_params = [{transform_indices = @transform_0, window_bounds = array<i64: 16, 256>}, {transform_indices = @transform_1, window_bounds = array<i64: 256, 128>}, {transform_indices = @transform_2, window_bounds = array<i64: 1, 128>}, {transform_indices = @transform_3, window_bounds = array<i64: 16, 128>}]} {
    %c0_i32 = arith.constant 0 : i32
    %0 = arith.cmpi eq, %arg2, %c0_i32 : i32
    %1 = arith.extui %0 : i1 to i32
    %c0_i32_0 = arith.constant 0 : i32
    %2 = arith.cmpi ne, %1, %c0_i32_0 : i32
    scf.if %2 {
      %cst_10 = arith.constant 0.000000e+00 : f32
      %12 = vector.broadcast %cst_10 : f32 to vector<16x128xf32>
      %c0_11 = arith.constant 0 : index
      %c0_12 = arith.constant 0 : index
      %13 = vector.load %arg7[%c0_11, %c0_12] : memref<16x128xf32, #tpu.memory_space<vmem>>, vector<16x128xf32>
      tpu.vector_store %arg7[%c0_11, %c0_12], %12 {strides = array<i32>} : memref<16x128xf32, #tpu.memory_space<vmem>>, vector<16x128xf32>,
    } else {
    }
    %c0 = arith.constant 0 : index
    %c0_1 = arith.constant 0 : index
    %3 = vector.load %arg7[%c0, %c0_1] : memref<16x128xf32, #tpu.memory_space<vmem>>, vector<16x128xf32>
    %c0_2 = arith.constant 0 : index
    %c0_3 = arith.constant 0 : index
    %4 = vector.load %arg3[%c0_2, %c0_3] : memref<16x256xbf16, #tpu.memory_space<vmem>>, vector<16x256xbf16>
    %c0_4 = arith.constant 0 : index
    %c0_5 = arith.constant 0 : index
    %5 = vector.load %arg4[%c0_4, %c0_5] : memref<256x128xbf16, #tpu.memory_space<vmem>>, vector<256x128xbf16>
    %cst = arith.constant dense<0.000000e+00> : vector<16x128xf32>
    %6 = tpu.matmul %4, %5, %cst {dimension_numbers = #tpu.dot_dimension_numbers<[1], [0], [0], [1], [0, 0, 1, 1], [], []>} : vector<16x256xbf16>, vector<256x128xbf16>, vector<16x128xf32> -> vector<16x128xf32>
    %7 = arith.addf %3, %6 : vector<16x128xf32>
    %c0_6 = arith.constant 0 : index
    %c0_7 = arith.constant 0 : index
    %8 = vector.load %arg7[%c0_6, %c0_7] : memref<16x128xf32, #tpu.memory_space<vmem>>, vector<16x128xf32>
    tpu.vector_store %arg7[%c0_6, %c0_7], %7 {strides = array<i32>} : memref<16x128xf32, #tpu.memory_space<vmem>>, vector<16x128xf32>,
    %c0_i32_8 = arith.constant 0 : i32
    %9 = arith.cmpi eq, %arg2, %c0_i32_8 : i32
    %10 = arith.extui %9 : i1 to i32
    %c0_i32_9 = arith.constant 0 : i32
    %11 = arith.cmpi ne, %10, %c0_i32_9 : i32
    scf.if %11 {
      %c0_10 = arith.constant 0 : index
      %c0_11 = arith.constant 0 : index
      %12 = vector.load %arg7[%c0_10, %c0_11] : memref<16x128xf32, #tpu.memory_space<vmem>>, vector<16x128xf32>
      %c0_12 = arith.constant 0 : index
      %c0_13 = arith.constant 0 : index
      %13 = vector.load %arg5[%c0_12, %c0_13] : memref<1x128xf32, #tpu.memory_space<vmem>>, vector<1x128xf32>
      %14 = vector.broadcast %13 : vector<1x128xf32> to vector<16x128xf32>
      %15 = arith.addf %12, %14 : vector<16x128xf32>
      %16 = arith.truncf %15 : vector<16x128xf32> to vector<16x128xbf16>
      %c0_14 = arith.constant 0 : index
      %c0_15 = arith.constant 0 : index
      %17 = vector.load %arg6[%c0_14, %c0_15] : memref<16x128xbf16, #tpu.memory_space<vmem>>, vector<16x128xbf16>
      tpu.vector_store %arg6[%c0_14, %c0_15], %16 {strides = array<i32>} : memref<16x128xbf16, #tpu.memory_space<vmem>>, vector<16x128xbf16>,
    } else {
    }
    return
  }
  func.func @transform_0(%arg0: i32, %arg1: i32, %arg2: i32) -> (i32, i32) {
    %c0_i32 = arith.constant 0 : i32
    return %arg0, %arg2 : i32, i32
  }
  func.func @transform_1(%arg0: i32, %arg1: i32, %arg2: i32) -> (i32, i32) {
    %c0_i32 = arith.constant 0 : i32
    return %arg2, %arg1 : i32, i32
  }
  func.func @transform_2(%arg0: i32, %arg1: i32, %arg2: i32) -> (i32, i32) {
    %c0_i32 = arith.constant 0 : i32
    %c0_i32_0 = arith.constant 0 : i32
    return %c0_i32, %arg1 : i32, i32
  }
  func.func @transform_3(%arg0: i32, %arg1: i32, %arg2: i32) -> (i32, i32) {
    %c0_i32 = arith.constant 0 : i32
    return %arg0, %arg1 : i32, i32
  }
}

module attributes {stable_mosaic.version = 11 : i64} {
  func.func @_linear_kernel(%arg0: i32, %arg1: i32, %arg2: i32, %arg3: memref<16x128xbf16, #tpu.memory_space<vmem>>, %arg4: memref<128x128xbf16, #tpu.memory_space<vmem>>, %arg5: memref<1x128xf32, #tpu.memory_space<vmem>>, %arg6: memref<16x128xbf16, #tpu.memory_space<vmem>>, %arg7: memref<16x128xf32, #tpu.memory_space<vmem>>) attributes {dimension_semantics = [#tpu.dimension_semantics<parallel>, #tpu.dimension_semantics<parallel>, #tpu.dimension_semantics<arbitrary>], iteration_bounds = array<i64: 1, 1, 1>, scalar_prefetch = 0 : i64, scratch_operands = 1 : i64, tpu.core_type = #tpu.core_type<tc>, window_params = [{transform_indices = @transform_0, window_bounds = array<i64: 16, 128>}, {transform_indices = @transform_1, window_bounds = array<i64: 128, 128>}, {transform_indices = @transform_2, window_bounds = array<i64: 1, 128>}, {transform_indices = @transform_3, window_bounds = array<i64: 16, 128>}]} {
    %c0_i32 = arith.constant 0 : i32
    %0 = arith.cmpi eq, %arg2, %c0_i32 : i32
    %1 = arith.extui %0 : i1 to i32
    %c0_i32_0 = arith.constant 0 : i32
    %2 = arith.cmpi ne, %1, %c0_i32_0 : i32
    scf.if %2 {
      %cst_10 = arith.constant 0.000000e+00 : f32
      %12 = vector.broadcast %cst_10 : f32 to vector<16x128xf32>
      %c0_11 = arith.constant 0 : index
      %c0_12 = arith.constant 0 : index
      %13 = vector.load %arg7[%c0_11, %c0_12] : memref<16x128xf32, #tpu.memory_space<vmem>>, vector<16x128xf32>
      tpu.vector_store %arg7[%c0_11, %c0_12], %12 {strides = array<i32>} : memref<16x128xf32, #tpu.memory_space<vmem>>, vector<16x128xf32>,
    } else {
    }
    %c0 = arith.constant 0 : index
    %c0_1 = arith.constant 0 : index
    %3 = vector.load %arg7[%c0, %c0_1] : memref<16x128xf32, #tpu.memory_space<vmem>>, vector<16x128xf32>
    %c0_2 = arith.constant 0 : index
    %c0_3 = arith.constant 0 : index
    %4 = vector.load %arg3[%c0_2, %c0_3] : memref<16x128xbf16, #tpu.memory_space<vmem>>, vector<16x128xbf16>
    %c0_4 = arith.constant 0 : index
    %c0_5 = arith.constant 0 : index
    %5 = vector.load %arg4[%c0_4, %c0_5] : memref<128x128xbf16, #tpu.memory_space<vmem>>, vector<128x128xbf16>
    %cst = arith.constant dense<0.000000e+00> : vector<16x128xf32>
    %6 = tpu.matmul %4, %5, %cst {dimension_numbers = #tpu.dot_dimension_numbers<[1], [0], [0], [1], [0, 0, 1, 1], [], []>} : vector<16x128xbf16>, vector<128x128xbf16>, vector<16x128xf32> -> vector<16x128xf32>
    %7 = arith.addf %3, %6 : vector<16x128xf32>
    %c0_6 = arith.constant 0 : index
    %c0_7 = arith.constant 0 : index
    %8 = vector.load %arg7[%c0_6, %c0_7] : memref<16x128xf32, #tpu.memory_space<vmem>>, vector<16x128xf32>
    tpu.vector_store %arg7[%c0_6, %c0_7], %7 {strides = array<i32>} : memref<16x128xf32, #tpu.memory_space<vmem>>, vector<16x128xf32>,
    %c0_i32_8 = arith.constant 0 : i32
    %9 = arith.cmpi eq, %arg2, %c0_i32_8 : i32
    %10 = arith.extui %9 : i1 to i32
    %c0_i32_9 = arith.constant 0 : i32
    %11 = arith.cmpi ne, %10, %c0_i32_9 : i32
    scf.if %11 {
      %c0_10 = arith.constant 0 : index
      %c0_11 = arith.constant 0 : index
      %12 = vector.load %arg7[%c0_10, %c0_11] : memref<16x128xf32, #tpu.memory_space<vmem>>, vector<16x128xf32>
      %c0_12 = arith.constant 0 : index
      %c0_13 = arith.constant 0 : index
      %13 = vector.load %arg5[%c0_12, %c0_13] : memref<1x128xf32, #tpu.memory_space<vmem>>, vector<1x128xf32>
      %14 = vector.broadcast %13 : vector<1x128xf32> to vector<16x128xf32>
      %15 = arith.addf %12, %14 : vector<16x128xf32>
      %cst_14 = arith.constant 5.000000e-01 : f32
      %16 = vector.broadcast %cst_14 : f32 to vector<16x128xf32>
      %17 = arith.mulf %16, %15 : vector<16x128xf32>
      %cst_15 = arith.constant 4.471500e-02 : f32
      %18 = vector.broadcast %cst_15 : f32 to vector<16x128xf32>
      %19 = arith.mulf %18, %15 : vector<16x128xf32>
      %20 = arith.mulf %19, %15 : vector<16x128xf32>
      %21 = arith.mulf %20, %15 : vector<16x128xf32>
      %22 = arith.addf %15, %21 : vector<16x128xf32>
      %cst_16 = arith.constant 0.797884583 : f32
      %23 = vector.broadcast %cst_16 : f32 to vector<16x128xf32>
      %24 = arith.mulf %23, %22 : vector<16x128xf32>
      %25 = math.tanh %24 : vector<16x128xf32>
      %cst_17 = arith.constant 1.000000e+00 : f32
      %26 = vector.broadcast %cst_17 : f32 to vector<16x128xf32>
      %27 = arith.addf %26, %25 : vector<16x128xf32>
      %28 = arith.mulf %17, %27 : vector<16x128xf32>
      %29 = arith.truncf %28 : vector<16x128xf32> to vector<16x128xbf16>
      %c0_18 = arith.constant 0 : index
      %c0_19 = arith.constant 0 : index
      %30 = vector.load %arg6[%c0_18, %c0_19] : memref<16x128xbf16, #tpu.memory_space<vmem>>, vector<16x128xbf16>
      tpu.vector_store %arg6[%c0_18, %c0_19], %29 {strides = array<i32>} : memref<16x128xbf16, #tpu.memory_space<vmem>>, vector<16x128xbf16>,
    } else {
    }
    return
  }
  func.func @transform_0(%arg0: i32, %arg1: i32, %arg2: i32) -> (i32, i32) {
    %c0_i32 = arith.constant 0 : i32
    return %arg0, %arg2 : i32, i32
  }
  func.func @transform_1(%arg0: i32, %arg1: i32, %arg2: i32) -> (i32, i32) {
    %c0_i32 = arith.constant 0 : i32
    return %arg2, %arg1 : i32, i32
  }
  func.func @transform_2(%arg0: i32, %arg1: i32, %arg2: i32) -> (i32, i32) {
    %c0_i32 = arith.constant 0 : i32
    %c0_i32_0 = arith.constant 0 : i32
    return %c0_i32, %arg1 : i32, i32
  }
  func.func @transform_3(%arg0: i32, %arg1: i32, %arg2: i32) -> (i32, i32) {
    %c0_i32 = arith.constant 0 : i32
    return %arg0, %arg1 : i32, i32
  }
}

module attributes {stable_mosaic.version = 11 : i64} {
  func.func @_ln_kernel(%arg0: i32, %arg1: memref<16x128xbf16, #tpu.memory_space<vmem>>, %arg2: memref<1x128xf32, #tpu.memory_space<vmem>>, %arg3: memref<1x128xf32, #tpu.memory_space<vmem>>, %arg4: memref<16x128xbf16, #tpu.memory_space<vmem>>) attributes {dimension_semantics = [#tpu.dimension_semantics<parallel>], iteration_bounds = array<i64: 1>, scalar_prefetch = 0 : i64, scratch_operands = 0 : i64, tpu.core_type = #tpu.core_type<tc>, window_params = [{transform_indices = @transform_0, window_bounds = array<i64: 16, 128>}, {pipeline_mode = #tpu.pipeline_mode<synchronous>, transform_indices = @transform_1, window_bounds = array<i64: 1, 128>}, {pipeline_mode = #tpu.pipeline_mode<synchronous>, transform_indices = @transform_2, window_bounds = array<i64: 1, 128>}, {transform_indices = @transform_3, window_bounds = array<i64: 16, 128>}]} {
    %c0 = arith.constant 0 : index
    %c0_0 = arith.constant 0 : index
    %0 = vector.load %arg1[%c0, %c0_0] : memref<16x128xbf16, #tpu.memory_space<vmem>>, vector<16x128xbf16>
    %1 = arith.extf %0 : vector<16x128xbf16> to vector<16x128xf32>
    %c0_1 = arith.constant 0 : index
    %c0_2 = arith.constant 0 : index
    %2 = vector.load %arg2[%c0_1, %c0_2] : memref<1x128xf32, #tpu.memory_space<vmem>>, vector<1x128xf32>
    %c0_3 = arith.constant 0 : index
    %c0_4 = arith.constant 0 : index
    %3 = vector.load %arg3[%c0_3, %c0_4] : memref<1x128xf32, #tpu.memory_space<vmem>>, vector<1x128xf32>
    %cst = arith.constant dense<0.000000e+00> : vector<16xf32>
    %4 = vector.multi_reduction <add>, %1, %cst [1] : vector<16x128xf32> to vector<16xf32>
    %5 = vector.shape_cast %4 : vector<16xf32> to vector<16x1xf32>
    %cst_5 = arith.constant 1.280000e+02 : f32
    %6 = vector.broadcast %cst_5 : f32 to vector<16x1xf32>
    %7 = arith.divf %5, %6 : vector<16x1xf32>
    %8 = vector.broadcast %7 : vector<16x1xf32> to vector<16x128xf32>
    %9 = arith.subf %1, %8 : vector<16x128xf32>
    %10 = vector.broadcast %7 : vector<16x1xf32> to vector<16x128xf32>
    %11 = arith.subf %1, %10 : vector<16x128xf32>
    %12 = arith.mulf %9, %11 : vector<16x128xf32>
    %cst_6 = arith.constant dense<0.000000e+00> : vector<16xf32>
    %13 = vector.multi_reduction <add>, %12, %cst_6 [1] : vector<16x128xf32> to vector<16xf32>
    %14 = vector.shape_cast %13 : vector<16xf32> to vector<16x1xf32>
    %cst_7 = arith.constant 1.280000e+02 : f32
    %15 = vector.broadcast %cst_7 : f32 to vector<16x1xf32>
    %16 = arith.divf %14, %15 : vector<16x1xf32>
    %17 = vector.broadcast %7 : vector<16x1xf32> to vector<16x128xf32>
    %18 = arith.subf %1, %17 : vector<16x128xf32>
    %cst_8 = arith.constant 9.99999997E-7 : f32
    %19 = vector.broadcast %cst_8 : f32 to vector<16x1xf32>
    %20 = arith.addf %16, %19 : vector<16x1xf32>
    %21 = math.rsqrt %20 : vector<16x1xf32>
    %22 = vector.broadcast %21 : vector<16x1xf32> to vector<16x128xf32>
    %23 = arith.mulf %18, %22 : vector<16x128xf32>
    %24 = vector.broadcast %2 : vector<1x128xf32> to vector<16x128xf32>
    %25 = arith.mulf %23, %24 : vector<16x128xf32>
    %26 = vector.broadcast %3 : vector<1x128xf32> to vector<16x128xf32>
    %27 = arith.addf %25, %26 : vector<16x128xf32>
    %28 = arith.truncf %27 : vector<16x128xf32> to vector<16x128xbf16>
    %c0_9 = arith.constant 0 : index
    %c0_10 = arith.constant 0 : index
    %29 = vector.load %arg4[%c0_9, %c0_10] : memref<16x128xbf16, #tpu.memory_space<vmem>>, vector<16x128xbf16>
    tpu.vector_store %arg4[%c0_9, %c0_10], %28 {strides = array<i32>} : memref<16x128xbf16, #tpu.memory_space<vmem>>, vector<16x128xbf16>,
    return
  }
  func.func @transform_0(%arg0: i32) -> (i32, i32) {
    %c0_i32 = arith.constant 0 : i32
    %c0_i32_0 = arith.constant 0 : i32
    return %arg0, %c0_i32 : i32, i32
  }
  func.func @transform_1(%arg0: i32) -> (i32, i32) {
    %c0_i32 = arith.constant 0 : i32
    %c0_i32_0 = arith.constant 0 : i32
    %c0_i32_1 = arith.constant 0 : i32
    return %c0_i32, %c0_i32_0 : i32, i32
  }
  func.func @transform_2(%arg0: i32) -> (i32, i32) {
    %c0_i32 = arith.constant 0 : i32
    %c0_i32_0 = arith.constant 0 : i32
    %c0_i32_1 = arith.constant 0 : i32
    return %c0_i32, %c0_i32_0 : i32, i32
  }
  func.func @transform_3(%arg0: i32) -> (i32, i32) {
    %c0_i32 = arith.constant 0 : i32
    %c0_i32_0 = arith.constant 0 : i32
    return %arg0, %c0_i32 : i32, i32
  }
}

module attributes {stable_mosaic.version = 11 : i64} {
  func.func @_mlm_loss_kernel(%arg0: i32, %arg1: i32, %arg2: memref<16x128xbf16, #tpu.memory_space<vmem>>, %arg3: memref<128x256xbf16, #tpu.memory_space<vmem>>, %arg4: memref<1x256xf32, #tpu.memory_space<vmem>>, %arg5: memref<16x1xi32, #tpu.memory_space<vmem>>, %arg6: memref<16x1xf32, #tpu.memory_space<vmem>>, %arg7: memref<16x1xf32, #tpu.memory_space<vmem>>, %arg8: memref<16x1xf32, #tpu.memory_space<vmem>>, %arg9: memref<16x1xf32, #tpu.memory_space<vmem>>, %arg10: memref<16x1xf32, #tpu.memory_space<vmem>>, %arg11: memref<16x1xf32, #tpu.memory_space<vmem>>) attributes {dimension_semantics = [#tpu.dimension_semantics<parallel>, #tpu.dimension_semantics<arbitrary>], iteration_bounds = array<i64: 1, 1>, scalar_prefetch = 0 : i64, scratch_operands = 4 : i64, tpu.core_type = #tpu.core_type<tc>, window_params = [{transform_indices = @transform_0, window_bounds = array<i64: 16, 128>}, {transform_indices = @transform_1, window_bounds = array<i64: 128, 256>}, {transform_indices = @transform_2, window_bounds = array<i64: 1, 256>}, {transform_indices = @transform_3, window_bounds = array<i64: 16, 1>}, {transform_indices = @transform_4, window_bounds = array<i64: 16, 1>}, {transform_indices = @transform_5, window_bounds = array<i64: 16, 1>}]} {
    %c0_i32 = arith.constant 0 : i32
    %0 = arith.cmpi eq, %arg1, %c0_i32 : i32
    %1 = arith.extui %0 : i1 to i32
    %c0_i32_0 = arith.constant 0 : i32
    %2 = arith.cmpi ne, %1, %c0_i32_0 : i32
    scf.if %2 {
      %cst_32 = arith.constant -1.000000e+30 : f32
      %53 = vector.broadcast %cst_32 : f32 to vector<16x1xf32>
      %c0_33 = arith.constant 0 : index
      %c0_34 = arith.constant 0 : index
      %54 = vector.load %arg8[%c0_33, %c0_34] : memref<16x1xf32, #tpu.memory_space<vmem>>, vector<16x1xf32>
      tpu.vector_store %arg8[%c0_33, %c0_34], %53 {strides = array<i32>} : memref<16x1xf32, #tpu.memory_space<vmem>>, vector<16x1xf32>,
      %cst_35 = arith.constant 0.000000e+00 : f32
      %55 = vector.broadcast %cst_35 : f32 to vector<16x1xf32>
      %c0_36 = arith.constant 0 : index
      %c0_37 = arith.constant 0 : index
      %56 = vector.load %arg9[%c0_36, %c0_37] : memref<16x1xf32, #tpu.memory_space<vmem>>, vector<16x1xf32>
      tpu.vector_store %arg9[%c0_36, %c0_37], %55 {strides = array<i32>} : memref<16x1xf32, #tpu.memory_space<vmem>>, vector<16x1xf32>,
      %cst_38 = arith.constant 0.000000e+00 : f32
      %57 = vector.broadcast %cst_38 : f32 to vector<16x1xf32>
      %c0_39 = arith.constant 0 : index
      %c0_40 = arith.constant 0 : index
      %58 = vector.load %arg10[%c0_39, %c0_40] : memref<16x1xf32, #tpu.memory_space<vmem>>, vector<16x1xf32>
      tpu.vector_store %arg10[%c0_39, %c0_40], %57 {strides = array<i32>} : memref<16x1xf32, #tpu.memory_space<vmem>>, vector<16x1xf32>,
      %cst_41 = arith.constant 0.000000e+00 : f32
      %59 = vector.broadcast %cst_41 : f32 to vector<16x1xf32>
      %c0_42 = arith.constant 0 : index
      %c0_43 = arith.constant 0 : index
      %60 = vector.load %arg11[%c0_42, %c0_43] : memref<16x1xf32, #tpu.memory_space<vmem>>, vector<16x1xf32>
      tpu.vector_store %arg11[%c0_42, %c0_43], %59 {strides = array<i32>} : memref<16x1xf32, #tpu.memory_space<vmem>>, vector<16x1xf32>,
    } else {
    }
    %c0 = arith.constant 0 : index
    %c0_1 = arith.constant 0 : index
    %3 = vector.load %arg2[%c0, %c0_1] : memref<16x128xbf16, #tpu.memory_space<vmem>>, vector<16x128xbf16>
    %c0_2 = arith.constant 0 : index
    %c0_3 = arith.constant 0 : index
    %4 = vector.load %arg3[%c0_2, %c0_3] : memref<128x256xbf16, #tpu.memory_space<vmem>>, vector<128x256xbf16>
    %cst = arith.constant dense<0.000000e+00> : vector<16x256xf32>
    %5 = tpu.matmul %3, %4, %cst {dimension_numbers = #tpu.dot_dimension_numbers<[1], [0], [0], [1], [0, 0, 1, 1], [], []>} : vector<16x128xbf16>, vector<128x256xbf16>, vector<16x256xf32> -> vector<16x256xf32>
    %c0_4 = arith.constant 0 : index
    %c0_5 = arith.constant 0 : index
    %6 = vector.load %arg4[%c0_4, %c0_5] : memref<1x256xf32, #tpu.memory_space<vmem>>, vector<1x256xf32>
    %7 = vector.broadcast %6 : vector<1x256xf32> to vector<16x256xf32>
    %8 = arith.addf %5, %7 : vector<16x256xf32>
    %c256_i32 = arith.constant 256 : i32
    %9 = arith.muli %arg1, %c256_i32 : i32
    %10 = tpu.iota {dimensions = array<i32: 1>} : vector<16x256xi32>
    %11 = vector.broadcast %9 : i32 to vector<16x256xi32>
    %12 = arith.addi %11, %10 : vector<16x256xi32>
    %c0_6 = arith.constant 0 : index
    %c0_7 = arith.constant 0 : index
    %13 = vector.load %arg5[%c0_6, %c0_7] : memref<16x1xi32, #tpu.memory_space<vmem>>, vector<16x1xi32>
    %14 = vector.broadcast %13 : vector<16x1xi32> to vector<16x256xi32>
    %15 = arith.cmpi eq, %12, %14 : vector<16x256xi32>
    %c0_8 = arith.constant 0 : index
    %c0_9 = arith.constant 0 : index
    %16 = vector.load %arg10[%c0_8, %c0_9] : memref<16x1xf32, #tpu.memory_space<vmem>>, vector<16x1xf32>
    %cst_10 = arith.constant 0.000000e+00 : f32
    %17 = vector.broadcast %cst_10 : f32 to vector<16x256xf32>
    %18 = arith.select %15, %8, %17 : vector<16x256xi1>, vector<16x256xf32>
    %cst_11 = arith.constant dense<0.000000e+00> : vector<16xf32>
    %19 = vector.multi_reduction <add>, %18, %cst_11 [1] : vector<16x256xf32> to vector<16xf32>
    %20 = vector.shape_cast %19 : vector<16xf32> to vector<16x1xf32>
    %21 = arith.addf %16, %20 : vector<16x1xf32>
    %c0_12 = arith.constant 0 : index
    %c0_13 = arith.constant 0 : index
    %22 = vector.load %arg10[%c0_12, %c0_13] : memref<16x1xf32, #tpu.memory_space<vmem>>, vector<16x1xf32>
    tpu.vector_store %arg10[%c0_12, %c0_13], %21 {strides = array<i32>} : memref<16x1xf32, #tpu.memory_space<vmem>>, vector<16x1xf32>,
    %cst_14 = arith.constant dense<0xFF800000> : vector<16xf32>
    %23 = vector.multi_reduction <maximumf>, %8, %cst_14 [1] : vector<16x256xf32> to vector<16xf32>
    %24 = vector.shape_cast %23 : vector<16xf32> to vector<16x1xf32>
    %25 = arith.sitofp %12 : vector<16x256xi32> to vector<16x256xf32>
    %26 = vector.broadcast %24 : vector<16x1xf32> to vector<16x256xf32>
    %27 = arith.cmpf oeq, %8, %26 : vector<16x256xf32>
    %cst_15 = arith.constant 1.000000e+30 : f32
    %28 = vector.broadcast %cst_15 : f32 to vector<16x256xf32>
    %29 = arith.select %27, %25, %28 : vector<16x256xi1>, vector<16x256xf32>
    %cst_16 = arith.constant dense<0x7F800000> : vector<16xf32>
    %30 = vector.multi_reduction <minimumf>, %29, %cst_16 [1] : vector<16x256xf32> to vector<16xf32>
    %31 = vector.shape_cast %30 : vector<16xf32> to vector<16x1xf32>
    %c0_17 = arith.constant 0 : index
    %c0_18 = arith.constant 0 : index
    %32 = vector.load %arg8[%c0_17, %c0_18] : memref<16x1xf32, #tpu.memory_space<vmem>>, vector<16x1xf32>
    %33 = arith.maximumf %32, %24 : vector<16x1xf32>
    %c0_19 = arith.constant 0 : index
    %c0_20 = arith.constant 0 : index
    %34 = vector.load %arg9[%c0_19, %c0_20] : memref<16x1xf32, #tpu.memory_space<vmem>>, vector<16x1xf32>
    %35 = arith.subf %32, %33 : vector<16x1xf32>
    %36 = math.exp %35 : vector<16x1xf32>
    %37 = arith.mulf %34, %36 : vector<16x1xf32>
    %38 = vector.broadcast %33 : vector<16x1xf32> to vector<16x256xf32>
    %39 = arith.subf %8, %38 : vector<16x256xf32>
    %40 = math.exp %39 : vector<16x256xf32>
    %cst_21 = arith.constant dense<0.000000e+00> : vector<16xf32>
    %41 = vector.multi_reduction <add>, %40, %cst_21 [1] : vector<16x256xf32> to vector<16xf32>
    %42 = vector.shape_cast %41 : vector<16xf32> to vector<16x1xf32>
    %43 = arith.addf %37, %42 : vector<16x1xf32>
    %c0_22 = arith.constant 0 : index
    %c0_23 = arith.constant 0 : index
    %44 = vector.load %arg9[%c0_22, %c0_23] : memref<16x1xf32, #tpu.memory_space<vmem>>, vector<16x1xf32>
    tpu.vector_store %arg9[%c0_22, %c0_23], %43 {strides = array<i32>} : memref<16x1xf32, #tpu.memory_space<vmem>>, vector<16x1xf32>,
    %45 = arith.cmpf ogt, %24, %32 : vector<16x1xf32>
    %c0_24 = arith.constant 0 : index
    %c0_25 = arith.constant 0 : index
    %46 = vector.load %arg11[%c0_24, %c0_25] : memref<16x1xf32, #tpu.memory_space<vmem>>, vector<16x1xf32>
    %47 = arith.select %45, %31, %46 : vector<16x1xi1>, vector<16x1xf32>
    %c0_26 = arith.constant 0 : index
    %c0_27 = arith.constant 0 : index
    %48 = vector.load %arg11[%c0_26, %c0_27] : memref<16x1xf32, #tpu.memory_space<vmem>>, vector<16x1xf32>
    tpu.vector_store %arg11[%c0_26, %c0_27], %47 {strides = array<i32>} : memref<16x1xf32, #tpu.memory_space<vmem>>, vector<16x1xf32>,
    %c0_28 = arith.constant 0 : index
    %c0_29 = arith.constant 0 : index
    %49 = vector.load %arg8[%c0_28, %c0_29] : memref<16x1xf32, #tpu.memory_space<vmem>>, vector<16x1xf32>
    tpu.vector_store %arg8[%c0_28, %c0_29], %33 {strides = array<i32>} : memref<16x1xf32, #tpu.memory_space<vmem>>, vector<16x1xf32>,
    %c0_i32_30 = arith.constant 0 : i32
    %50 = arith.cmpi eq, %arg1, %c0_i32_30 : i32
    %51 = arith.extui %50 : i1 to i32
    %c0_i32_31 = arith.constant 0 : i32
    %52 = arith.cmpi ne, %51, %c0_i32_31 : i32
    scf.if %52 {
      %c0_32 = arith.constant 0 : index
      %c0_33 = arith.constant 0 : index
      %53 = vector.load %arg8[%c0_32, %c0_33] : memref<16x1xf32, #tpu.memory_space<vmem>>, vector<16x1xf32>
      %c0_34 = arith.constant 0 : index
      %c0_35 = arith.constant 0 : index
      %54 = vector.load %arg9[%c0_34, %c0_35] : memref<16x1xf32, #tpu.memory_space<vmem>>, vector<16x1xf32>
      %55 = math.log %54 : vector<16x1xf32>
      %56 = arith.addf %53, %55 : vector<16x1xf32>
      %c0_36 = arith.constant 0 : index
      %c0_37 = arith.constant 0 : index
      %57 = vector.load %arg10[%c0_36, %c0_37] : memref<16x1xf32, #tpu.memory_space<vmem>>, vector<16x1xf32>
      %58 = arith.subf %56, %57 : vector<16x1xf32>
      %c0_38 = arith.constant 0 : index
      %c0_39 = arith.constant 0 : index
      %59 = vector.load %arg6[%c0_38, %c0_39] : memref<16x1xf32, #tpu.memory_space<vmem>>, vector<16x1xf32>
      tpu.vector_store %arg6[%c0_38, %c0_39], %58 {strides = array<i32>} : memref<16x1xf32, #tpu.memory_space<vmem>>, vector<16x1xf32>,
      %c0_40 = arith.constant 0 : index
      %c0_41 = arith.constant 0 : index
      %60 = vector.load %arg11[%c0_40, %c0_41] : memref<16x1xf32, #tpu.memory_space<vmem>>, vector<16x1xf32>
      %c0_42 = arith.constant 0 : index
      %c0_43 = arith.constant 0 : index
      %61 = vector.load %arg5[%c0_42, %c0_43] : memref<16x1xi32, #tpu.memory_space<vmem>>, vector<16x1xi32>
      %62 = arith.sitofp %61 : vector<16x1xi32> to vector<16x1xf32>
      %63 = arith.cmpf oeq, %60, %62 : vector<16x1xf32>
      %64 = arith.extui %63 : vector<16x1xi1> to vector<16x1xi32>
      %65 = arith.sitofp %64 : vector<16x1xi32> to vector<16x1xf32>
      %c0_44 = arith.constant 0 : index
      %c0_45 = arith.constant 0 : index
      %66 = vector.load %arg7[%c0_44, %c0_45] : memref<16x1xf32, #tpu.memory_space<vmem>>, vector<16x1xf32>
      tpu.vector_store %arg7[%c0_44, %c0_45], %65 {strides = array<i32>} : memref<16x1xf32, #tpu.memory_space<vmem>>, vector<16x1xf32>,
    } else {
    }
    return
  }
  func.func @transform_0(%arg0: i32, %arg1: i32) -> (i32, i32) {
    %c0_i32 = arith.constant 0 : i32
    %c0_i32_0 = arith.constant 0 : i32
    return %arg0, %c0_i32 : i32, i32
  }
  func.func @transform_1(%arg0: i32, %arg1: i32) -> (i32, i32) {
    %c0_i32 = arith.constant 0 : i32
    %c0_i32_0 = arith.constant 0 : i32
    return %c0_i32, %arg1 : i32, i32
  }
  func.func @transform_2(%arg0: i32, %arg1: i32) -> (i32, i32) {
    %c0_i32 = arith.constant 0 : i32
    %c0_i32_0 = arith.constant 0 : i32
    return %c0_i32, %arg1 : i32, i32
  }
  func.func @transform_3(%arg0: i32, %arg1: i32) -> (i32, i32) {
    %c0_i32 = arith.constant 0 : i32
    %c0_i32_0 = arith.constant 0 : i32
    return %arg0, %c0_i32 : i32, i32
  }
  func.func @transform_4(%arg0: i32, %arg1: i32) -> (i32, i32) {
    %c0_i32 = arith.constant 0 : i32
    %c0_i32_0 = arith.constant 0 : i32
    return %arg0, %c0_i32 : i32, i32
  }
  func.func @transform_5(%arg0: i32, %arg1: i32) -> (i32, i32) {
    %c0_i32 = arith.constant 0 : i32
    %c0_i32_0 = arith.constant 0 : i32
    return %arg0, %c0_i32 : i32, i32
  }
}

</mosaic_0001>

<llo_original>
// kernel: model_forward.11
$region0: #{model_forward.11}
  #allocation0 [shape = 'u32[]', space=smem, size = 0x4, offset = 0x4, fixed_abs, tag = 'smem constant byte address 0x4 - core index']
  #allocation1 [shape = 'u32[72,128]{1,0:T(1,128)}', space=vmem, size = 0x9000, scoped, tag = 'internal scratch']
  %s0 = inlined_call_operand.vmem [shape: bf16[2,8,128], index: 0, kind: input, shape index: {}]
  %s1 = inlined_call_operand.vmem [shape: bf16[2,8,128], index: 1, kind: input, shape index: {}]
  %s2 = inlined_call_operand.vmem [shape: bf16[8,128], index: 2, kind: input, shape index: {}]
  %s3 = inlined_call_operand.vmem [shape: f32[1,128], index: 3, kind: input, shape index: {}]
  %s4 = inlined_call_operand.vmem [shape: f32[1,128], index: 4, kind: input, shape index: {}]
  %s5 = inlined_call_operand.vmem [shape: bf16[2,8,128], index: 5, kind: output, shape index: {}]
  %s6 = sld [smem:[#allocation0]]
  $region53: #{model_forward.11} parent=0
    _
  %s8 = ssub.s32 1, %s6
  %s9 = scalar_select 0, %s8, %s6
  loop: start=0, step=1, limit=4
  $region2: #{model_forward.11} parent=0 // loop_pre_header
    _
  $region3: #{model_forward.11} parent=0 // loop_header
    %s11 = sphi 0, %s15
    %p12 = scmp.ge.s32.totalorder %s11, 4
    %s18 = sphi 0, %s30
    %s19 = sphi 0, %s26
    %s20 = sphi 0, %s18
    %s21 = sphi 0, %s19
    %s22 = sphi 0, %s20
    %s23 = sphi 0, %s21
    %s35 = sphi 0, %s37
    %s38 = sphi 0, %s35
    %s39 = sphi 0, %s38
    %s55 = sphi 0, %s39
    %s63 = sphi 0, %s65
    %s66 = sphi 0, %s63
    %s67 = sphi 0, %s66
    %s83 = sphi 0, %s67
    %s89 = sphi 0, %s91
    %s92 = sphi 0, %s89
    %s93 = sphi 0, %s92
    %s109 = sphi 0, %s93
    %s113 = sphi 0, %s113
    %s115 = sphi 0, %s113
    %s116 = sphi 0, %s115
    %s130 = sphi 0, %s116
    %s134 = sphi 0, %s134
    %s136 = sphi 0, %s134
    %s137 = sphi 0, %s136
    %s151 = sphi 0, %s137
    %s159 = sphi 0, %s161
    %s162 = sphi 0, %s159
    %s163 = sphi 0, %s162
    %s179 = sphi 0, %s163
  $region4: #{model_forward.11} parent=0 // loop_header_branch
    %14 = sbr.rel (%p12) target = $region8
  $region5: #{model_forward.11} parent=0 // loop_body
    %s16 = ssub.s32 %s11, 1
    %s17 = ssub.s32 %s11, 2
    %s24 = sadd.s32 1, %s19
    %p25 = scmp.ge.s32.totalorder %s24, 1
    %s26 = scalar_select %p25, 0, %s24
    %s27 = sadd.s32 1, %s18
    %s28 = scalar_select %p25, %s27, %s18
    %p29 = scmp.ge.s32.totalorder %s28, 2
    %s30 = scalar_select %p29, 0, %s28
    %s31 = ssub.s32 %s18, %s30
    %s32 = ssub.s32 %s19, %s26
    %s33 = sor.u32 %s31, %s32
    %p34 = scmp.eq.s32.totalorder %s33, 0
    %s36 = sadd.s32 %s35, 1
    %s37 = scalar_select %p34, %s35, %s36
    %p40 = pneg %p34
    %p41 = scmp.eq.s32.totalorder %s11, 1
    %p42 = por %p40, %p41
    %p43 = scmp.ne.s32.totalorder %s35, %s38
    %p44 = scmp.eq.s32.totalorder %s11, 0
    %p45 = por %p43, %p44
    %p46 = scmp.ne.s32.totalorder %s35, %s38
    %p47 = scmp.eq.s32.totalorder %s16, 1
    %p48 = por %p46, %p47
    %p49 = scmp.ne.s32.totalorder %s38, %s39
    %p50 = scmp.eq.s32.totalorder %s16, 0
    %p51 = por %p49, %p50
    %p52 = scmp.ne.s32.totalorder %s38, %s39
    %p53 = scmp.eq.s32.totalorder %s17, 1
    %p54 = por %p52, %p53
    %p56 = scmp.ne.s32.totalorder %s39, %s55
    %p57 = scmp.eq.s32.totalorder %s17, 0
    %p58 = por %p56, %p57
    %s59 = ssub.s32 %s18, %s30
    %s60 = ssub.s32 %s19, %s26
    %s61 = sor.u32 %s59, %s60
    %p62 = scmp.eq.s32.totalorder %s61, 0
    %s64 = sadd.s32 %s63, 1
    %s65 = scalar_select %p62, %s63, %s64
    %p68 = pneg %p62
    %p69 = scmp.eq.s32.totalorder %s11, 1
    %p70 = por %p68, %p69
    %p71 = scmp.ne.s32.totalorder %s63, %s66
    %p72 = scmp.eq.s32.totalorder %s11, 0
    %p73 = por %p71, %p72
    %p74 = scmp.ne.s32.totalorder %s63, %s66
    %p75 = scmp.eq.s32.totalorder %s16, 1
    %p76 = por %p74, %p75
    %p77 = scmp.ne.s32.totalorder %s66, %s67
    %p78 = scmp.eq.s32.totalorder %s16, 0
    %p79 = por %p77, %p78
    %p80 = scmp.ne.s32.totalorder %s66, %s67
    %p81 = scmp.eq.s32.totalorder %s17, 1
    %p82 = por %p80, %p81
    %p84 = scmp.ne.s32.totalorder %s67, %s83
    %p85 = scmp.eq.s32.totalorder %s17, 0
    %p86 = por %p84, %p85
    %s87 = ssub.s32 %s19, %s26
    %p88 = scmp.eq.s32.totalorder %s87, 0
    %s90 = sadd.s32 %s89, 1
    %s91 = scalar_select %p88, %s89, %s90
    %p94 = pneg %p88
    %p95 = scmp.eq.s32.totalorder %s11, 1
    %p96 = por %p94, %p95
    %p97 = scmp.ne.s32.totalorder %s89, %s92
    %p98 = scmp.eq.s32.totalorder %s11, 0
    %p99 = por %p97, %p98
    %p100 = scmp.ne.s32.totalorder %s89, %s92
    %p101 = scmp.eq.s32.totalorder %s16, 1
    %p102 = por %p100, %p101
    %p103 = scmp.ne.s32.totalorder %s92, %s93
    %p104 = scmp.eq.s32.totalorder %s16, 0
    %p105 = por %p103, %p104
    %p106 = scmp.ne.s32.totalorder %s92, %s93
    %p107 = scmp.eq.s32.totalorder %s17, 1
    %p108 = por %p106, %p107
    %p110 = scmp.ne.s32.totalorder %s93, %s109
    %p111 = scmp.eq.s32.totalorder %s17, 0
    %p112 = por %p110, %p111
    %s114 = sadd.s32 %s113, 1
    %p117 = scmp.eq.s32.totalorder %s11, 1
    %p118 = scmp.ne.s32.totalorder %s113, %s115
    %p119 = scmp.eq.s32.totalorder %s11, 0
    %p120 = por %p118, %p119
    %p121 = scmp.ne.s32.totalorder %s113, %s115
    %p122 = scmp.eq.s32.totalorder %s16, 1
    %p123 = por %p121, %p122
    %p124 = scmp.ne.s32.totalorder %s115, %s116
    %p125 = scmp.eq.s32.totalorder %s16, 0
    %p126 = por %p124, %p125
    %p127 = scmp.ne.s32.totalorder %s115, %s116
    %p128 = scmp.eq.s32.totalorder %s17, 1
    %p129 = por %p127, %p128
    %p131 = scmp.ne.s32.totalorder %s116, %s130
    %p132 = scmp.eq.s32.totalorder %s17, 0
    %p133 = por %p131, %p132
    %s135 = sadd.s32 %s134, 1
    %p138 = scmp.eq.s32.totalorder %s11, 1
    %p139 = scmp.ne.s32.totalorder %s134, %s136
    %p140 = scmp.eq.s32.totalorder %s11, 0
    %p141 = por %p139, %p140
    %p142 = scmp.ne.s32.totalorder %s134, %s136
    %p143 = scmp.eq.s32.totalorder %s16, 1
    %p144 = por %p142, %p143
    %p145 = scmp.ne.s32.totalorder %s136, %s137
    %p146 = scmp.eq.s32.totalorder %s16, 0
    %p147 = por %p145, %p146
    %p148 = scmp.ne.s32.totalorder %s136, %s137
    %p149 = scmp.eq.s32.totalorder %s17, 1
    %p150 = por %p148, %p149
    %p152 = scmp.ne.s32.totalorder %s137, %s151
    %p153 = scmp.eq.s32.totalorder %s17, 0
    %p154 = por %p152, %p153
    %s155 = ssub.s32 %s18, %s30
    %s156 = ssub.s32 %s19, %s26
    %s157 = sor.u32 %s155, %s156
    %p158 = scmp.eq.s32.totalorder %s157, 0
    %s160 = sadd.s32 %s159, 1
    %s161 = scalar_select %p158, %s159, %s160
    %p164 = pneg %p158
    %p165 = scmp.eq.s32.totalorder %s11, 1
    %p166 = por %p164, %p165
    %p167 = scmp.ne.s32.totalorder %s159, %s162
    %p168 = scmp.eq.s32.totalorder %s11, 0
    %p169 = por %p167, %p168
    %p170 = scmp.ne.s32.totalorder %s159, %s162
    %p171 = scmp.eq.s32.totalorder %s16, 1
    %p172 = por %p170, %p171
    %p173 = scmp.ne.s32.totalorder %s162, %s163
    %p174 = scmp.eq.s32.totalorder %s16, 0
    %p175 = por %p173, %p174
    %p176 = scmp.ne.s32.totalorder %s162, %s163
    %p177 = scmp.eq.s32.totalorder %s17, 1
    %p178 = por %p176, %p177
    %p180 = scmp.ne.s32.totalorder %s163, %s179
    %p181 = scmp.eq.s32.totalorder %s17, 0
    %p182 = por %p180, %p181
    %p183 = scmp.le.s32.totalorder 1, %s11
    %p184 = scmp.lt.s32.totalorder %s11, 3
    %p185 = pnand %p183, %p184
    %p186 = pneg %p185
    // Predicated region
    $region9: #{model_forward.11} parent=5 // pred_check
      _
    $region10: #{model_forward.11} parent=5 // pred_check_branch
      %188 = sbr.rel (%p185) target = $region12
    $region11: #{model_forward.11} parent=5 // pred_region
      %s189 = ssub.s32 %s11, 1
      // Predicated region
      $region13: #{model_forward.11} parent=11 // pred_check
        %p190 = pneg %p105
      $region14: #{model_forward.11} parent=11 // pred_check_branch
        %192 = sbr.rel (%p190) target = $region16
      $region15: #{model_forward.11} parent=11 // pred_region
        %p193 = scmp.lt.s32.totalorder %s21, 0
        %s194 = scalar_select %p193, %s21, 0
        %s195 = smul.addr %s194, 4
        %s196 = scalar_lea.vmem %s2, %s195
      $region16: #{model_forward.11} parent=11 // pred_fallthru
        _
      // Predicated region
      $region17: #{model_forward.11} parent=11 // pred_check
        %p197 = pneg %p126
      $region18: #{model_forward.11} parent=11 // pred_check_branch
        %199 = sbr.rel (%p197) target = $region20
      $region19: #{model_forward.11} parent=11 // pred_region
        _
      $region20: #{model_forward.11} parent=11 // pred_fallthru
        _
      // Predicated region
      $region21: #{model_forward.11} parent=11 // pred_check
        %p200 = pneg %p147
      $region22: #{model_forward.11} parent=11 // pred_check_branch
        %202 = sbr.rel (%p200) target = $region24
      $region23: #{model_forward.11} parent=11 // pred_region
        _
      $region24: #{model_forward.11} parent=11 // pred_fallthru
        _
    $region12: #{model_forward.11} parent=5 // pred_fallthru
      _
    %p203 = scmp.lt.s32.totalorder %s11, 2
    // Predicated region
    $region25: #{model_forward.11} parent=5 // pred_check
      %p204 = pneg %p203
    $region26: #{model_forward.11} parent=5 // pred_check_branch
      %206 = sbr.rel (%p204) target = $region28
    $region27: #{model_forward.11} parent=5 // pred_region
      // Predicated region
      $region29: #{model_forward.11} parent=27 // pred_check
        %p207 = pneg %p45
      $region30: #{model_forward.11} parent=27 // pred_check_branch
        %209 = sbr.rel (%p207) target = $region32
      $region31: #{model_forward.11} parent=27 // pred_region
        %p210 = scmp.lt.s32.totalorder %s18, 1
        %s211 = scalar_select %p210, %s18, 1
        %p212 = scmp.lt.s32.totalorder %s19, 0
        %s213 = scalar_select %p212, %s19, 0
        %s214 = sadd.s32 %s213, %s211
        %s215 = smul.addr %s214, 4
        %s216 = scalar_lea.vmem %s0, %s215
      $region32: #{model_forward.11} parent=27 // pred_fallthru
        _
      // Predicated region
      $region33: #{model_forward.11} parent=27 // pred_check
        %p217 = pneg %p73
      $region34: #{model_forward.11} parent=27 // pred_check_branch
        %219 = sbr.rel (%p217) target = $region36
      $region35: #{model_forward.11} parent=27 // pred_region
        %p220 = scmp.lt.s32.totalorder %s18, 1
        %s221 = scalar_select %p220, %s18, 1
        %p222 = scmp.lt.s32.totalorder %s19, 0
        %s223 = scalar_select %p222, %s19, 0
        %s224 = sadd.s32 %s223, %s221
        %s225 = smul.addr %s224, 4
        %s226 = scalar_lea.vmem %s1, %s225
      $region36: #{model_forward.11} parent=27 // pred_fallthru
        _
    $region28: #{model_forward.11} parent=5 // pred_fallthru
      _
    %p227 = scmp.le.s32.totalorder 1, %s11
    %p228 = scmp.lt.s32.totalorder %s11, 3
    %p229 = pnand %p227, %p228
    %p230 = pneg %p229
    // Predicated region
    $region37: #{model_forward.11} parent=5 // pred_check
      _
    $region38: #{model_forward.11} parent=5 // pred_check_branch
      %232 = sbr.rel (%p229) target = $region40
    $region39: #{model_forward.11} parent=5 // pred_region
      %s233 = ssub.s32 %s11, 1
      %p234 = scmp.lt.s32.totalorder %s20, 1
      %s235 = scalar_select %p234, %s20, 1
      %p236 = scmp.lt.s32.totalorder %s21, 0
      %s237 = scalar_select %p236, %s21, 0
      %s238 = sadd.s32 %s237, %s235
      %s239 = smul.addr %s238, 4
      %s240 = scalar_lea.vmem %s0, %s239
      %p241 = pneg %p51
      %p242 = pneg %p48
      %p243 = scmp.lt.s32.totalorder %s20, 1
      %s244 = scalar_select %p243, %s20, 1
      %p245 = scmp.lt.s32.totalorder %s21, 0
      %s246 = scalar_select %p245, %s21, 0
      %s247 = sadd.s32 %s246, %s244
      %s248 = smul.addr %s247, 4
      %s249 = scalar_lea.vmem %s1, %s248
      %p250 = pneg %p79
      %p251 = pneg %p76
      %p252 = scmp.lt.s32.totalorder %s21, 0
      %s253 = scalar_select %p252, %s21, 0
      %s254 = smul.addr %s253, 4
      %s255 = scalar_lea.vmem %s2, %s254
      %p256 = pneg %p105
      %p257 = pneg %p102
      %p258 = pneg %p126
      %p259 = pneg %p123
      %p260 = pneg %p147
      %p261 = pneg %p144
      %p262 = pneg %p175
      %p263 = pneg %p172
      %p264 = scmp.lt.s32.totalorder %s20, 1
      %s265 = scalar_select %p264, %s20, 1
      %p266 = scmp.lt.s32.totalorder %s21, 0
      %s267 = scalar_select %p266, %s21, 0
      %s268 = sadd.s32 %s267, %s265
      %s269 = smul.addr %s268, 4
      %s270 = scalar_lea.vmem %s5, %s269
      %p271 = scmp.lt.s32.totalorder %s20, 1
      %s272 = scalar_select %p271, %s20, 1
      %p273 = scmp.lt.s32.totalorder %s21, 0
      %s274 = scalar_select %p273, %s21, 0
      %s275 = sadd.s32 %s274, %s272
      %s276 = smul.addr %s275, 4
      %s277 = scalar_lea.vmem %s0, %s276
      %p278 = scmp.lt.s32.totalorder %s20, 1
      %s279 = scalar_select %p278, %s20, 1
      %p280 = scmp.lt.s32.totalorder %s21, 0
      %s281 = scalar_select %p280, %s21, 0
      %s282 = sadd.s32 %s281, %s279
      %s283 = smul.addr %s282, 4
      %s284 = scalar_lea.vmem %s1, %s283
      %p285 = scmp.lt.s32.totalorder %s21, 0
      %s286 = scalar_select %p285, %s21, 0
      %s287 = smul.addr %s286, 4
      %s288 = scalar_lea.vmem %s2, %s287
      %p289 = scmp.lt.s32.totalorder %s20, 1
      %s290 = scalar_select %p289, %s20, 1
      %p291 = scmp.lt.s32.totalorder %s21, 0
      %s292 = scalar_select %p291, %s21, 0
      %s293 = sadd.s32 %s292, %s290
      %s294 = smul.addr %s293, 4
      %s295 = scalar_lea.vmem %s5, %s294
      %v296 = vld [vmem:[%s277] sm:$0xf]
      %v297 = vunpack.c.l.bf16 %v296
      %v298 = vld [vmem:[%s284] sm:$0xf]
      %v299 = vunpack.c.l.bf16 %v298
      %v300 = vadd.f32 %v297, %v299
      %v301 = vld [vmem:[%s288] sm:$0xf]
      %v302 = vunpack.c.l.bf16 %v301
      %v303 = vadd.f32 %v300, %v302
      %v304 = vld [vmem:[%s3] sm:$0x1]
      %v305 = vld [vmem:[%s4] sm:$0x1]
      %306 = vadd.xlane.f32.xlu0 %v303
      %v307 = vpop.xlane.xlu0 %306
      %v308 = vrcp.pop 128.0
      %v309 = vmul.f32 128.0, %v308
      %v310 = vsub.f32 1.0, %v309
      %v311 = vmul.f32 %v308, %v310
      %v312 = vadd.f32 %v308, %v311
      %vm313 = vweird.f32 %v308
      %v314 = vsel %vm313, %v308, %v312
      %v315 = vmul.f32 %v307, %v314
      %v316 = vsub.f32 %v303, %v315
      %v317 = vmul.f32 %v316, %v316
      %318 = vadd.xlane.f32.xlu0 %v317
      %v319 = vpop.xlane.xlu0 %318
      %v320 = vmul.f32 %v319, %v314
      %v321 = vadd.f32 %v320, 1e-06
      %v322 = vrsqrt.pop %v321
      %v323 = vmul.f32 %v322, %v321
      %v324 = vmul.f32 %v323, %v322
      %v325 = vmul.f32 0.5, %v324
      %v326 = vsub.f32 1.5, %v325
      %v327 = vmul.f32 %v322, %v326
      %vm328 = vweird.f32 %v321
      %vm329 = vweird.f32 %v322
      %vm330 = vmor %vm328, %vm329
      %v331 = vsel %vm330, %v322, %v327
      %v332 = vmul.f32 %v316, %v331
      %v334 = vperm.slane %v304, 0
      %v336 = vmul.f32 %v332, %v334
      %v338 = vperm.slane %v305, 0
      %v340 = vadd.f32 %v336, %v338
      %v341 = vpack.c.bf16 %v340, %v340
      %342 = vst [vmem:[%s295] sm:$0xf] %v341
      %p343 = scmp.lt.s32.totalorder %s20, 1
      %s344 = scalar_select %p343, %s20, 1
      %p345 = scmp.lt.s32.totalorder %s21, 0
      %s346 = scalar_select %p345, %s21, 0
      %s347 = sadd.s32 %s346, %s344
      %s348 = smul.addr %s347, 4
      %s349 = scalar_lea.vmem %s5, %s348
      // Predicated region
      $region41: #{model_forward.11} parent=39 // pred_check
        %p350 = pneg %p172
      $region42: #{model_forward.11} parent=39 // pred_check_branch
        %352 = sbr.rel (%p350) target = $region44
      $region43: #{model_forward.11} parent=39 // pred_region
        _
      $region44: #{model_forward.11} parent=39 // pred_fallthru
        _
    $region40: #{model_forward.11} parent=5 // pred_fallthru
      _
    %p353 = scmp.le.s32.totalorder 2, %s11
    // Predicated region
    $region45: #{model_forward.11} parent=5 // pred_check
      %p354 = pneg %p353
    $region46: #{model_forward.11} parent=5 // pred_check_branch
      %356 = sbr.rel (%p354) target = $region48
    $region47: #{model_forward.11} parent=5 // pred_region
      %s357 = ssub.s32 %s11, 2
      // Predicated region
      $region49: #{model_forward.11} parent=47 // pred_check
        %p358 = pneg %p178
      $region50: #{model_forward.11} parent=47 // pred_check_branch
        %360 = sbr.rel (%p358) target = $region52
      $region51: #{model_forward.11} parent=47 // pred_region
        %p361 = scmp.lt.s32.totalorder %s22, 1
        %s362 = scalar_select %p361, %s22, 1
        %p363 = scmp.lt.s32.totalorder %s23, 0
        %s364 = scalar_select %p363, %s23, 0
        %s365 = sadd.s32 %s364, %s362
        %s366 = smul.addr %s365, 4
        %s367 = scalar_lea.vmem %s5, %s366
      $region52: #{model_forward.11} parent=47 // pred_fallthru
        _
    $region48: #{model_forward.11} parent=5 // pred_fallthru
      _
  $region6: #{model_forward.11} parent=0 // loop_footer
    %s15 = sadd.s32 1, %s11
  $region7: #{model_forward.11} parent=0 // loop_footer_branch
    %10 = sbr.rel target = $region3
  $region8: #{model_forward.11} parent=0 // loop_exit
    _

// kernel: model_forward.12
$region0: #{model_forward.12}
  #allocation0 [shape = 'u32[]', space=smem, size = 0x4, offset = 0x4, fixed_abs, tag = 'smem constant byte address 0x4 - core index']
  #allocation1 [shape = 'u32[72,128]{1,0:T(1,128)}', space=vmem, size = 0x9000, scoped, tag = 'internal scratch']
  #allocation2 [shape = 'f32[16,128]{1,0:T(8,128)}', space=vmem, size = 0x2000, scoped, tag = 'scratch operand']
  %s0 = inlined_call_operand.vmem [shape: bf16[16,128], index: 0, kind: input, shape index: {}]
  %s1 = inlined_call_operand.hbm [shape: bf16[128,384], index: 1, kind: input, shape index: {}]
  %s2 = inlined_call_operand.vmem [shape: f32[1,384], index: 2, kind: input, shape index: {}]
  %s3 = inlined_call_operand.vmem [shape: bf16[16,384], index: 3, kind: output, shape index: {}]
  %s4 = sld [smem:[#allocation0]]
  $region94: #{model_forward.12} parent=0
    _
  %s6 = ssub.s32 1, %s4
  %s7 = scalar_select 0, %s6, %s4
  $region1: #{model_forward.12} parent=0
    #allocation3 [shape = 'u8[65536]{0}', space=vmem, size = 0x10000, scoped, tag = 'input window, operand 1']
    #allocation4 [shape = 's32[2]{0}', space=sflag, size = 0x8, scoped, tag = 'scoped memory for model_forward.12']
    #allocation5 [shape = 'u8[8192]{0}', space=vmem, size = 0x2000, scoped, tag = 'output window, operand 0']
    %8 = vsyncpa [#allocation4], 0
    %s9 = scalar_lea.sflag [#allocation4], 1
    %10 = vsyncpa %s9, 0
    loop: start=0, step=1, limit=5
    $region2: #{model_forward.12} parent=1 // loop_pre_header
      _
    $region3: #{model_forward.12} parent=1 // loop_header
      %s12 = sphi 0, %s16
      %p13 = scmp.ge.s32.totalorder %s12, 5
      %s19 = sphi 0, %s38
      %s20 = sphi 0, %s34
      %s21 = sphi 0, %s30
      %s22 = sphi 0, %s19
      %s23 = sphi 0, %s20
      %s24 = sphi 0, %s21
      %s25 = sphi 0, %s22
      %s26 = sphi 0, %s23
      %s27 = sphi 0, %s24
      %s43 = sphi 0, %s45
      %s46 = sphi 0, %s43
      %s47 = sphi 0, %s46
      %s63 = sphi 0, %s47
      %s71 = sphi 0, %s73
      %s74 = sphi 0, %s71
      %s75 = sphi 0, %s74
      %s91 = sphi 0, %s75
      %s97 = sphi 0, %s99
      %s100 = sphi 0, %s97
      %s101 = sphi 0, %s100
      %s117 = sphi 0, %s101
      %s125 = sphi 0, %s127
      %s128 = sphi 0, %s125
      %s129 = sphi 0, %s128
      %s145 = sphi 0, %s129
    $region4: #{model_forward.12} parent=1 // loop_header_branch
      %15 = sbr.rel (%p13) target = $region8
    $region5: #{model_forward.12} parent=1 // loop_body
      %s17 = ssub.s32 %s12, 1
      %s18 = ssub.s32 %s12, 2
      %s28 = sadd.s32 1, %s21
      %p29 = scmp.ge.s32.totalorder %s28, 1
      %s30 = scalar_select %p29, 0, %s28
      %s31 = sadd.s32 1, %s20
      %s32 = scalar_select %p29, %s31, %s20
      %p33 = scmp.ge.s32.totalorder %s32, 3
      %s34 = scalar_select %p33, 0, %s32
      %s35 = sadd.s32 1, %s19
      %s36 = scalar_select %p33, %s35, %s19
      %p37 = scmp.ge.s32.totalorder %s36, 1
      %s38 = scalar_select %p37, 0, %s36
      %s39 = ssub.s32 %s19, %s38
      %s40 = ssub.s32 %s21, %s30
      %s41 = sor.u32 %s39, %s40
      %p42 = scmp.eq.s32.totalorder %s41, 0
      %s44 = sadd.s32 %s43, 1
      %s45 = scalar_select %p42, %s43, %s44
      %p48 = pneg %p42
      %p49 = scmp.eq.s32.totalorder %s12, 2
      %p50 = por %p48, %p49
      %p51 = scmp.ne.s32.totalorder %s43, %s46
      %p52 = scmp.eq.s32.totalorder %s12, 0
      %p53 = por %p51, %p52
      %p54 = scmp.ne.s32.totalorder %s43, %s46
      %p55 = scmp.eq.s32.totalorder %s17, 2
      %p56 = por %p54, %p55
      %p57 = scmp.ne.s32.totalorder %s46, %s47
      %p58 = scmp.eq.s32.totalorder %s17, 0
      %p59 = por %p57, %p58
      %p60 = scmp.ne.s32.totalorder %s46, %s47
      %p61 = scmp.eq.s32.totalorder %s18, 2
      %p62 = por %p60, %p61
      %p64 = scmp.ne.s32.totalorder %s47, %s63
      %p65 = scmp.eq.s32.totalorder %s18, 0
      %p66 = por %p64, %p65
      %s67 = ssub.s32 %s21, %s30
      %s68 = ssub.s32 %s20, %s34
      %s69 = sor.u32 %s67, %s68
      %p70 = scmp.eq.s32.totalorder %s69, 0
      %s72 = sadd.s32 %s71, 1
      %s73 = scalar_select %p70, %s71, %s72
      %p76 = pneg %p70
      %p77 = scmp.eq.s32.totalorder %s12, 2
      %p78 = por %p76, %p77
      %p79 = scmp.ne.s32.totalorder %s71, %s74
      %p80 = scmp.eq.s32.totalorder %s12, 0
      %p81 = por %p79, %p80
      %p82 = scmp.ne.s32.totalorder %s71, %s74
      %p83 = scmp.eq.s32.totalorder %s17, 2
      %p84 = por %p82, %p83
      %p85 = scmp.ne.s32.totalorder %s74, %s75
      %p86 = scmp.eq.s32.totalorder %s17, 0
      %p87 = por %p85, %p86
      %p88 = scmp.ne.s32.totalorder %s74, %s75
      %p89 = scmp.eq.s32.totalorder %s18, 2
      %p90 = por %p88, %p89
      %p92 = scmp.ne.s32.totalorder %s75, %s91
      %p93 = scmp.eq.s32.totalorder %s18, 0
      %p94 = por %p92, %p93
      %s95 = ssub.s32 %s20, %s34
      %p96 = scmp.eq.s32.totalorder %s95, 0
      %s98 = sadd.s32 %s97, 1
      %s99 = scalar_select %p96, %s97, %s98
      %p102 = pneg %p96
      %p103 = scmp.eq.s32.totalorder %s12, 2
      %p104 = por %p102, %p103
      %p105 = scmp.ne.s32.totalorder %s97, %s100
      %p106 = scmp.eq.s32.totalorder %s12, 0
      %p107 = por %p105, %p106
      %p108 = scmp.ne.s32.totalorder %s97, %s100
      %p109 = scmp.eq.s32.totalorder %s17, 2
      %p110 = por %p108, %p109
      %p111 = scmp.ne.s32.totalorder %s100, %s101
      %p112 = scmp.eq.s32.totalorder %s17, 0
      %p113 = por %p111, %p112
      %p114 = scmp.ne.s32.totalorder %s100, %s101
      %p115 = scmp.eq.s32.totalorder %s18, 2
      %p116 = por %p114, %p115
      %p118 = scmp.ne.s32.totalorder %s101, %s117
      %p119 = scmp.eq.s32.totalorder %s18, 0
      %p120 = por %p118, %p119
      %s121 = ssub.s32 %s19, %s38
      %s122 = ssub.s32 %s20, %s34
      %s123 = sor.u32 %s121, %s122
      %p124 = scmp.eq.s32.totalorder %s123, 0
      %s126 = sadd.s32 %s125, 1
      %s127 = scalar_select %p124, %s125, %s126
      %p130 = pneg %p124
      %p131 = scmp.eq.s32.totalorder %s12, 2
      %p132 = por %p130, %p131
      %p133 = scmp.ne.s32.totalorder %s125, %s128
      %p134 = scmp.eq.s32.totalorder %s12, 0
      %p135 = por %p133, %p134
      %p136 = scmp.ne.s32.totalorder %s125, %s128
      %p137 = scmp.eq.s32.totalorder %s17, 2
      %p138 = por %p136, %p137
      %p139 = scmp.ne.s32.totalorder %s128, %s129
      %p140 = scmp.eq.s32.totalorder %s17, 0
      %p141 = por %p139, %p140
      %p142 = scmp.ne.s32.totalorder %s128, %s129
      %p143 = scmp.eq.s32.totalorder %s18, 2
      %p144 = por %p142, %p143
      %p146 = scmp.ne.s32.totalorder %s129, %s145
      %p147 = scmp.eq.s32.totalorder %s18, 0
      %p148 = por %p146, %p147
      %p149 = scmp.le.s32.totalorder 1, %s12
      %p150 = scmp.lt.s32.totalorder %s12, 4
      %p151 = pnand %p149, %p150
      %p152 = pneg %p151
      // Predicated region
      $region9: #{model_forward.12} parent=5 // pred_check
        _
      $region10: #{model_forward.12} parent=5 // pred_check_branch
        %154 = sbr.rel (%p151) target = $region12
      $region11: #{model_forward.12} parent=5 // pred_region
        %s155 = ssub.s32 %s12, 1
        // Predicated region
        $region13: #{model_forward.12} parent=11 // pred_check
          %p156 = pneg %p59
        $region14: #{model_forward.12} parent=11 // pred_check_branch
          %158 = sbr.rel (%p156) target = $region16
        $region15: #{model_forward.12} parent=11 // pred_region
          %s159 = smul.u32 2, %s22
          %p160 = scmp.lt.s32.totalorder %s159, 1
          %s161 = scalar_select %p160, %s159, 1
          %p162 = scmp.lt.s32.totalorder %s24, 0
          %s163 = scalar_select %p162, %s24, 0
          %s164 = sadd.s32 %s163, %s161
          %s165 = smul.addr %s164, 4
          %s166 = scalar_lea.vmem %s0, %s165
          %s167 = smul.u32 2, %s22
        $region16: #{model_forward.12} parent=11 // pred_fallthru
          _
      $region12: #{model_forward.12} parent=5 // pred_fallthru
        _
      %p168 = scmp.lt.s32.totalorder %s12, 3
      // Predicated region
      $region17: #{model_forward.12} parent=5 // pred_check
        %p169 = pneg %p168
      $region18: #{model_forward.12} parent=5 // pred_check_branch
        %171 = sbr.rel (%p169) target = $region20
      $region19: #{model_forward.12} parent=5 // pred_region
        // Predicated region
        $region21: #{model_forward.12} parent=19 // pred_check
          %p172 = pneg %p81
        $region22: #{model_forward.12} parent=19 // pred_check_branch
          %174 = sbr.rel (%p172) target = $region24
        $region23: #{model_forward.12} parent=19 // pred_region
          %s175 = sand.u32 %s71, 1
          %s176 = scalar_lea.sflag [#allocation4], %s175
          %s177 = sand.u32 %s71, 1
          %s178 = smul.addr %s177, 64
          %s179 = scalar_lea.vmem [#allocation3], %s178
          %s180 = smul.u32 16, %s21
          %182 = vsyncadd %s176, 0
          %s183 = smul.addr %s180, 3
          %s184 = sadd.s32 %s20, %s183
          %s185 = smul.addr %s184, 4
          %s186 = scalar_lea.hbm %s1, %s185
          %s187 = sshll.u32 %s186, 4
          %s188 = int_to_ptr.hbm [resolvable:$true] %s187
          %s189 = sshll.u32 %s179, 4
          %s190 = int_to_ptr.vmem [resolvable:$true] %s189
          %195 = dma.hbm_to_vmem [thread:$0]  %s188, 1024, %s190, %s176, 192, 64, 4
        $region24: #{model_forward.12} parent=19 // pred_fallthru
          _
        // Predicated region
        $region25: #{model_forward.12} parent=19 // pred_check
          %p196 = pneg %p107
        $region26: #{model_forward.12} parent=19 // pred_check_branch
          %198 = sbr.rel (%p196) target = $region28
        $region27: #{model_forward.12} parent=19 // pred_region
          %p199 = scmp.lt.s32.totalorder %s20, 2
          %s200 = scalar_select %p199, %s20, 2
          %s201 = scalar_lea.vmem %s2, %s200
        $region28: #{model_forward.12} parent=19 // pred_fallthru
          _
      $region20: #{model_forward.12} parent=5 // pred_fallthru
        _
      %p202 = scmp.le.s32.totalorder 1, %s12
      %p203 = scmp.lt.s32.totalorder %s12, 4
      %p204 = pnand %p202, %p203
      %p205 = pneg %p204
      // Predicated region
      $region29: #{model_forward.12} parent=5 // pred_check
        _
      $region30: #{model_forward.12} parent=5 // pred_check_branch
        %207 = sbr.rel (%p204) target = $region32
      $region31: #{model_forward.12} parent=5 // pred_region
        %s208 = ssub.s32 %s12, 1
        %s209 = sand.u32 %s74, 1
        %s210 = scalar_lea.sflag [#allocation4], %s209
        %s211 = sand.u32 %s74, 1
        %s212 = smul.addr %s211, 64
        %s213 = scalar_lea.vmem [#allocation3], %s212
        // Predicated region
        $region33: #{model_forward.12} parent=31 // pred_check
          %p214 = pneg %p87
        $region34: #{model_forward.12} parent=31 // pred_check_branch
          %216 = sbr.rel (%p214) target = $region36
        $region35: #{model_forward.12} parent=31 // pred_region
          %218 = dma.done %s210, 1024
        $region36: #{model_forward.12} parent=31 // pred_fallthru
          _
        %s219 = smul.u32 2, %s22
        %p220 = scmp.lt.s32.totalorder %s219, 1
        %s221 = scalar_select %p220, %s219, 1
        %p222 = scmp.lt.s32.totalorder %s24, 0
        %s223 = scalar_select %p222, %s24, 0
        %s224 = sadd.s32 %s223, %s221
        %s225 = smul.addr %s224, 4
        %s226 = scalar_lea.vmem %s0, %s225
        %p227 = pneg %p59
        %p228 = pneg %p56
        %s229 = sand.u32 %s74, 1
        %s230 = scalar_lea.sflag [#allocation4], %s229
        %s231 = sand.u32 %s74, 1
        %s232 = smul.addr %s231, 64
        %s233 = scalar_lea.vmem [#allocation3], %s232
        %p234 = pneg %p87
        %p235 = pneg %p84
        %p236 = scmp.lt.s32.totalorder %s23, 2
        %s237 = scalar_select %p236, %s23, 2
        %s238 = scalar_lea.vmem %s2, %s237
        %p239 = pneg %p113
        %p240 = pneg %p110
        %p241 = pneg %p141
        %p242 = pneg %p138
        %s243 = sand.u32 %s128, 1
        %s244 = sand.u32 %s128, 1
        %s245 = smul.addr %s244, 8
        %s246 = scalar_lea.vmem [#allocation5], %s245
        %s247 = smul.u32 2, %s22
        %p248 = scmp.lt.s32.totalorder %s247, 1
        %s249 = scalar_select %p248, %s247, 1
        %p250 = scmp.lt.s32.totalorder %s24, 0
        %s251 = scalar_select %p250, %s24, 0
        %s252 = sadd.s32 %s251, %s249
        %s253 = smul.addr %s252, 4
        %s254 = scalar_lea.vmem %s0, %s253
        %s255 = smul.u32 2, %s22
        %s256 = smul.u32 16, %s24
        %p257 = scmp.lt.s32.totalorder %s23, 2
        %s258 = scalar_select %p257, %s23, 2
        %s259 = scalar_lea.vmem %s2, %s258
        %s260 = smul.u32 2, %s22
        %p261 = scmp.eq.s32.totalorder %s24, 0
        // Predicated region
        $region37: #{model_forward.12} parent=31 // pred_check
          %p262 = pneg %p261
        $region38: #{model_forward.12} parent=31 // pred_check_branch
          %264 = sbr.rel (%p262) target = $region40
        $region39: #{model_forward.12} parent=31 // pred_region
          %265 = vst [vmem:[#allocation2] sm:$0xff] 0.0
          %266 = vst [vmem:[#allocation2 + $0x8] sm:$0xff] 0.0
        $region40: #{model_forward.12} parent=31 // pred_fallthru
          _
        %v267 = vld [vmem:[#allocation2] sm:$0xff]
        %v268 = vld [vmem:[#allocation2 + $0x8] sm:$0xff]
        %v269 = vld [vmem:[%s254] sm:$0xf]
        %v270 = vld [vmem:[%s254 + $0x4] sm:$0xf]
        %v271 = vld [vmem:[%s213] sm:$0xf]
        %v272 = vld [vmem:[%s213 + $0x4] sm:$0xf]
        %v273 = vld [vmem:[%s213 + $0x8] sm:$0xf]
        %v274 = vld [vmem:[%s213 + $0xc] sm:$0xf]
        %v275 = vld [vmem:[%s213 + $0x10] sm:$0xf]
        %v276 = vld [vmem:[%s213 + $0x14] sm:$0xf]
        %v277 = vld [vmem:[%s213 + $0x18] sm:$0xf]
        %v278 = vld [vmem:[%s213 + $0x1c] sm:$0xf]
        %v279 = vld [vmem:[%s213 + $0x20] sm:$0xf]
        %v280 = vld [vmem:[%s213 + $0x24] sm:$0xf]
        %v281 = vld [vmem:[%s213 + $0x28] sm:$0xf]
        %v282 = vld [vmem:[%s213 + $0x2c] sm:$0xf]
        %v283 = vld [vmem:[%s213 + $0x30] sm:$0xf]
        %v284 = vld [vmem:[%s213 + $0x34] sm:$0xf]
        %v285 = vld [vmem:[%s213 + $0x38] sm:$0xf]
        %v286 = vld [vmem:[%s213 + $0x3c] sm:$0xf]
        %v289 = vunpack.c.l.b16 %v269
        %v290 = vunpack.c.l.b16 %v270
        %v291 = vpack.c.b16 %v290, %v289
        %v309 = vunpack.c.l.b16 %v271
        %v310 = vunpack.c.l.b16 %v272
        %v311 = vunpack.c.l.b16 %v273
        %v312 = vunpack.c.l.b16 %v274
        %v313 = vunpack.c.l.b16 %v275
        %v314 = vunpack.c.l.b16 %v276
        %v315 = vunpack.c.l.b16 %v277
        %v316 = vunpack.c.l.b16 %v278
        %v317 = vunpack.c.l.b16 %v279
        %v318 = vunpack.c.l.b16 %v280
        %v319 = vunpack.c.l.b16 %v281
        %v320 = vunpack.c.l.b16 %v282
        %v321 = vunpack.c.l.b16 %v283
        %v322 = vunpack.c.l.b16 %v284
        %v323 = vunpack.c.l.b16 %v285
        %v324 = vunpack.c.l.b16 %v286
        %v325 = vpack.c.b16 %v310, %v309
        %v326 = vpack.c.b16 %v312, %v311
        %v327 = vpack.c.b16 %v314, %v313
        %v328 = vpack.c.b16 %v316, %v315
        %v329 = vpack.c.b16 %v318, %v317
        %v330 = vpack.c.b16 %v320, %v319
        %v331 = vpack.c.b16 %v322, %v321
        %v332 = vpack.c.b16 %v324, %v323
        %341 = vmatpush.bf16.msra.mxu0 %v332
        %342 = vmatpush.bf16.msra.mxu0 %v331
        %343 = vmatpush.bf16.msra.mxu0 %v330
        %344 = vmatpush.bf16.msra.mxu0 %v329
        %345 = vmatpush.bf16.msra.mxu0 %v328
        %346 = vmatpush.bf16.msra.mxu0 %v327
        %347 = vmatpush.bf16.msra.mxu0 %v326
        %348 = vmatpush.bf16.msra.mxu0 %v325
        %349 = vmatmul.bf16.gmra.mxu0 %v291
        %v350 = vpop.f32.mrf.mxu0
        %v351 = vadd.f32 0.0, %v350
        %v352 = vpop.f32.mrf.mxu0
        %v353 = vadd.f32 0.0, %v352
        %354 = vdwg.mxu0
        %v355 = vadd.f32 %v267, %v351
        %v356 = vadd.f32 %v268, %v353
        %357 = vst [vmem:[#allocation2] sm:$0xff] %v355
        %358 = vst [vmem:[#allocation2 + $0x8] sm:$0xff] %v356
        // Predicated region
        $region41: #{model_forward.12} parent=31 // pred_check
          %p359 = pneg %p261
        $region42: #{model_forward.12} parent=31 // pred_check_branch
          %361 = sbr.rel (%p359) target = $region44
        $region43: #{model_forward.12} parent=31 // pred_region
          %v362 = vld [vmem:[#allocation2] sm:$0xff]
          %v363 = vld [vmem:[#allocation2 + $0x8] sm:$0xff]
          %v364 = vld [vmem:[%s259] sm:$0x1]
          %v366 = vperm.slane %v364, 0
          %v368 = vadd.f32 %v362, %v366
          %v369 = vadd.f32 %v363, %v366
          %v370 = vpack.c.bf16 %v368, %v368
          %v371 = vpack.c.bf16 %v369, %v369
          %372 = vst [vmem:[%s246] sm:$0xf] %v370
          %373 = vst [vmem:[%s246 + $0x4] sm:$0xf] %v371
        $region44: #{model_forward.12} parent=31 // pred_fallthru
          _
        %s374 = sand.u32 %s128, 1
        %s375 = sand.u32 %s128, 1
        %s376 = smul.addr %s375, 8
        %s377 = scalar_lea.vmem [#allocation5], %s376
        // Predicated region
        $region45: #{model_forward.12} parent=31 // pred_check
          %p378 = pneg %p138
        $region46: #{model_forward.12} parent=31 // pred_check_branch
          %380 = sbr.rel (%p378) target = $region48
        $region47: #{model_forward.12} parent=31 // pred_region
          %s381 = smul.u32 2, %s22
          %s382 = smul.addr %s381, 3
          %s383 = sadd.s32 %s23, %s382
          %s384 = smul.addr %s383, 4
          %s385 = scalar_lea.vmem %s3, %s384
          // Predicated region
          $region49: #{model_forward.12} parent=47 // pred_check
            _
          $region50: #{model_forward.12} parent=47 // pred_check_branch
            %387 = sbr.rel (0) target = $region52
          $region51: #{model_forward.12} parent=47 // pred_region
            // Predicated region
            $region53: #{model_forward.12} parent=51 // pred_check
              _
            $region54: #{model_forward.12} parent=51 // pred_check_branch
              %389 = sbr.rel target = $region56
            $region55: #{model_forward.12} parent=51 // pred_region
              // Predicated region
              $region68: #{model_forward.12} parent=55 // pred_check
                _
              $region69: #{model_forward.12} parent=55 // pred_check_branch
                %407 = sbr.rel (0) target = $region71
              $region70: #{model_forward.12} parent=55 // pred_region
                loop: start=0, step=1, limit=1
                $region72: #{model_forward.12} parent=70 // loop_pre_header
                  _
                $region73: #{model_forward.12} parent=70 // loop_header
                  %s409 = sphi 0, %s413
                  %p410 = scmp.ge.s32.totalorder %s409, 1
                  %s414 = sphi %s377, %s377
                  %s415 = sphi %s385, %s385
                $region74: #{model_forward.12} parent=70 // loop_header_branch
                  %412 = sbr.rel (%p410) target = $region78
                $region75: #{model_forward.12} parent=70 // loop_body
                  _
                $region76: #{model_forward.12} parent=70 // loop_footer
                  %s413 = sadd.s32 1, %s409
                $region77: #{model_forward.12} parent=70 // loop_footer_branch
                  %408 = sbr.rel target = $region73
                $region78: #{model_forward.12} parent=70 // loop_exit
                  _
                %s417 = ssub.s32 16, 1
                loop: start=0, step=1, limit=1
                $region79: #{model_forward.12} parent=70 // loop_pre_header
                  _
                $region80: #{model_forward.12} parent=70 // loop_header
                  %s419 = sphi 0, %s423
                  %p420 = scmp.ge.s32.totalorder %s419, 1
                  %s424 = sphi %s377, %s377
                  %s425 = sphi %s385, %s385
                $region81: #{model_forward.12} parent=70 // loop_header_branch
                  %422 = sbr.rel (%p420) target = $region85
                $region82: #{model_forward.12} parent=70 // loop_body
                  %v426 = vld [vmem:[%s424] sm:%s417]
                  %427 = vst [vmem:[%s425] sm:%s417] %v426
                  %v428 = vld [vmem:[%s424 + $0x4] sm:%s417]
                  %429 = vst [vmem:[%s425 + $0xc] sm:%s417] %v428
                $region83: #{model_forward.12} parent=70 // loop_footer
                  %s423 = sadd.s32 1, %s419
                $region84: #{model_forward.12} parent=70 // loop_footer_branch
                  %418 = sbr.rel target = $region80
                $region85: #{model_forward.12} parent=70 // loop_exit
                  _
              $region71: #{model_forward.12} parent=55 // pred_fallthru
                _
            $region56: #{model_forward.12} parent=51 // pred_fallthru
              _
            // Predicated region
            $region57: #{model_forward.12} parent=51 // pred_check
              _
            $region58: #{model_forward.12} parent=51 // pred_check_branch
              %391 = sbr.rel (0) target = $region60
            $region59: #{model_forward.12} parent=51 // pred_region
              %s393 = ssub.s32 16, 1
              loop: start=0, step=1, limit=1
              $region61: #{model_forward.12} parent=59 // loop_pre_header
                _
              $region62: #{model_forward.12} parent=59 // loop_header
                %s395 = sphi 0, %s399
                %p396 = scmp.ge.s32.totalorder %s395, 1
                %s400 = sphi %s377, %s377
                %s401 = sphi %s385, %s385
              $region63: #{model_forward.12} parent=59 // loop_header_branch
                %398 = sbr.rel (%p396) target = $region67
              $region64: #{model_forward.12} parent=59 // loop_body
                %v402 = vld [vmem:[%s400] sm:%s393]
                %403 = vst [vmem:[%s401] sm:%s393] %v402
                %v404 = vld [vmem:[%s400 + $0x4] sm:%s393]
                %405 = vst [vmem:[%s401 + $0xc] sm:%s393] %v404
              $region65: #{model_forward.12} parent=59 // loop_footer
                %s399 = sadd.s32 1, %s395
              $region66: #{model_forward.12} parent=59 // loop_footer_branch
                %394 = sbr.rel target = $region62
              $region67: #{model_forward.12} parent=59 // loop_exit
                _
            $region60: #{model_forward.12} parent=51 // pred_fallthru
              _
          $region52: #{model_forward.12} parent=47 // pred_fallthru
            _
          %430 = vnop
        $region48: #{model_forward.12} parent=31 // pred_fallthru
          _
      $region32: #{model_forward.12} parent=5 // pred_fallthru
        _
      %p431 = scmp.le.s32.totalorder 2, %s12
      // Predicated region
      $region86: #{model_forward.12} parent=5 // pred_check
        %p432 = pneg %p431
      $region87: #{model_forward.12} parent=5 // pred_check_branch
        %434 = sbr.rel (%p432) target = $region89
      $region88: #{model_forward.12} parent=5 // pred_region
        %s435 = ssub.s32 %s12, 2
        // Predicated region
        $region90: #{model_forward.12} parent=88 // pred_check
          %p436 = pneg %p144
        $region91: #{model_forward.12} parent=88 // pred_check_branch
          %438 = sbr.rel (%p436) target = $region93
        $region92: #{model_forward.12} parent=88 // pred_region
          %s439 = sand.u32 %s129, 1
          %s440 = sand.u32 %s129, 1
          %s441 = smul.addr %s440, 8
          %s442 = scalar_lea.vmem [#allocation5], %s441
        $region93: #{model_forward.12} parent=88 // pred_fallthru
          _
      $region89: #{model_forward.12} parent=5 // pred_fallthru
        _
    $region6: #{model_forward.12} parent=1 // loop_footer
      %s16 = sadd.s32 1, %s12
    $region7: #{model_forward.12} parent=1 // loop_footer_branch
      %11 = sbr.rel target = $region3
    $region8: #{model_forward.12} parent=1 // loop_exit
      _
    %443 = vsyncpa [#allocation4], 1
    %s444 = scalar_lea.sflag [#allocation4], 1
    %445 = vsyncpa %s444, 1

// kernel: model_forward.14
$region0: #{model_forward.14}
  #allocation0 [shape = 'u32[]', space=smem, size = 0x4, offset = 0x4, fixed_abs, tag = 'smem constant byte address 0x4 - core index']
  #allocation1 [shape = 'u32[72,128]{1,0:T(1,128)}', space=vmem, size = 0x9000, scoped, tag = 'internal scratch']
  #allocation2 [shape = 'f32[16,128]{1,0:T(8,128)}', space=vmem, size = 0x2000, scoped, tag = 'scratch operand']
  %s0 = inlined_call_operand.vmem [shape: bf16[16,128], index: 0, kind: input, shape index: {}]
  %s1 = inlined_call_operand.vmem [shape: bf16[128,128], index: 1, kind: input, shape index: {}]
  %s2 = inlined_call_operand.vmem [shape: f32[1,128], index: 2, kind: input, shape index: {}]
  %s3 = inlined_call_operand.vmem [shape: bf16[16,128], index: 3, kind: output, shape index: {}]
  %s4 = sld [smem:[#allocation0]]
  $region30: #{model_forward.14} parent=0
    _
  %s6 = ssub.s32 1, %s4
  %s7 = scalar_select 0, %s6, %s4
  // Predicated region
  $region2: #{model_forward.14} parent=0 // pred_check
    _
  $region3: #{model_forward.14} parent=0 // pred_check_branch
    %9 = sbr.rel (0) target = $region5
  $region4: #{model_forward.14} parent=0 // pred_region
    _
  $region5: #{model_forward.14} parent=0 // pred_fallthru
    _
  // Predicated region
  $region6: #{model_forward.14} parent=0 // pred_check
    _
  $region7: #{model_forward.14} parent=0 // pred_check_branch
    %11 = sbr.rel (0) target = $region9
  $region8: #{model_forward.14} parent=0 // pred_region
    _
  $region9: #{model_forward.14} parent=0 // pred_fallthru
    _
  // Predicated region
  $region10: #{model_forward.14} parent=0 // pred_check
    _
  $region11: #{model_forward.14} parent=0 // pred_check_branch
    %13 = sbr.rel (0) target = $region13
  $region12: #{model_forward.14} parent=0 // pred_region
    _
  $region13: #{model_forward.14} parent=0 // pred_fallthru
    _
  %p14 = scmp.eq.s32.totalorder 0, 0
  // Predicated region
  $region14: #{model_forward.14} parent=0 // pred_check
    %p15 = pneg %p14
  $region15: #{model_forward.14} parent=0 // pred_check_branch
    %17 = sbr.rel (%p15) target = $region17
  $region16: #{model_forward.14} parent=0 // pred_region
    %18 = vst [vmem:[#allocation2] sm:$0xff] 0.0
    %19 = vst [vmem:[#allocation2 + $0x8] sm:$0xff] 0.0
  $region17: #{model_forward.14} parent=0 // pred_fallthru
    _
  %v20 = vld [vmem:[#allocation2] sm:$0xff]
  %v21 = vld [vmem:[#allocation2 + $0x8] sm:$0xff]
  %v22 = vld [vmem:[%s0] sm:$0xf]
  %v23 = vld [vmem:[%s0 + $0x4] sm:$0xf]
  %v24 = vld [vmem:[%s1] sm:$0xf]
  %v25 = vld [vmem:[%s1 + $0x4] sm:$0xf]
  %v26 = vld [vmem:[%s1 + $0x8] sm:$0xf]
  %v27 = vld [vmem:[%s1 + $0xc] sm:$0xf]
  %v28 = vld [vmem:[%s1 + $0x10] sm:$0xf]
  %v29 = vld [vmem:[%s1 + $0x14] sm:$0xf]
  %v30 = vld [vmem:[%s1 + $0x18] sm:$0xf]
  %v31 = vld [vmem:[%s1 + $0x1c] sm:$0xf]
  %v32 = vld [vmem:[%s1 + $0x20] sm:$0xf]
  %v33 = vld [vmem:[%s1 + $0x24] sm:$0xf]
  %v34 = vld [vmem:[%s1 + $0x28] sm:$0xf]
  %v35 = vld [vmem:[%s1 + $0x2c] sm:$0xf]
  %v36 = vld [vmem:[%s1 + $0x30] sm:$0xf]
  %v37 = vld [vmem:[%s1 + $0x34] sm:$0xf]
  %v38 = vld [vmem:[%s1 + $0x38] sm:$0xf]
  %v39 = vld [vmem:[%s1 + $0x3c] sm:$0xf]
  %v42 = vunpack.c.l.b16 %v22
  %v43 = vunpack.c.l.b16 %v23
  %v44 = vpack.c.b16 %v43, %v42
  %v62 = vunpack.c.l.b16 %v24
  %v63 = vunpack.c.l.b16 %v25
  %v64 = vunpack.c.l.b16 %v26
  %v65 = vunpack.c.l.b16 %v27
  %v66 = vunpack.c.l.b16 %v28
  %v67 = vunpack.c.l.b16 %v29
  %v68 = vunpack.c.l.b16 %v30
  %v69 = vunpack.c.l.b16 %v31
  %v70 = vunpack.c.l.b16 %v32
  %v71 = vunpack.c.l.b16 %v33
  %v72 = vunpack.c.l.b16 %v34
  %v73 = vunpack.c.l.b16 %v35
  %v74 = vunpack.c.l.b16 %v36
  %v75 = vunpack.c.l.b16 %v37
  %v76 = vunpack.c.l.b16 %v38
  %v77 = vunpack.c.l.b16 %v39
  %v78 = vpack.c.b16 %v63, %v62
  %v79 = vpack.c.b16 %v65, %v64
  %v80 = vpack.c.b16 %v67, %v66
  %v81 = vpack.c.b16 %v69, %v68
  %v82 = vpack.c.b16 %v71, %v70
  %v83 = vpack.c.b16 %v73, %v72
  %v84 = vpack.c.b16 %v75, %v74
  %v85 = vpack.c.b16 %v77, %v76
  %94 = vmatpush.bf16.msra.mxu0 %v85
  %95 = vmatpush.bf16.msra.mxu0 %v84
  %96 = vmatpush.bf16.msra.mxu0 %v83
  %97 = vmatpush.bf16.msra.mxu0 %v82
  %98 = vmatpush.bf16.msra.mxu0 %v81
  %99 = vmatpush.bf16.msra.mxu0 %v80
  %100 = vmatpush.bf16.msra.mxu0 %v79
  %101 = vmatpush.bf16.msra.mxu0 %v78
  %102 = vmatmul.bf16.gmra.mxu0 %v44
  %v103 = vpop.f32.mrf.mxu0
  %v104 = vadd.f32 0.0, %v103
  %v105 = vpop.f32.mrf.mxu0
  %v106 = vadd.f32 0.0, %v105
  %107 = vdwg.mxu0
  %v108 = vadd.f32 %v20, %v104
  %v109 = vadd.f32 %v21, %v106
  %110 = vst [vmem:[#allocation2] sm:$0xff] %v108
  %111 = vst [vmem:[#allocation2 + $0x8] sm:$0xff] %v109
  // Predicated region
  $region18: #{model_forward.14} parent=0 // pred_check
    %p112 = pneg %p14
  $region19: #{model_forward.14} parent=0 // pred_check_branch
    %114 = sbr.rel (%p112) target = $region21
  $region20: #{model_forward.14} parent=0 // pred_region
    %v115 = vld [vmem:[#allocation2] sm:$0xff]
    %v116 = vld [vmem:[#allocation2 + $0x8] sm:$0xff]
    %v117 = vld [vmem:[%s2] sm:$0x1]
    %v119 = vperm.slane %v117, 0
    %v121 = vadd.f32 %v115, %v119
    %v122 = vadd.f32 %v116, %v119
    %v123 = vpack.c.bf16 %v121, %v121
    %v124 = vpack.c.bf16 %v122, %v122
    %125 = vst [vmem:[%s3] sm:$0xf] %v123
    %126 = vst [vmem:[%s3 + $0x4] sm:$0xf] %v124
  $region21: #{model_forward.14} parent=0 // pred_fallthru
    _
  // Predicated region
  $region22: #{model_forward.14} parent=0 // pred_check
    _
  $region23: #{model_forward.14} parent=0 // pred_check_branch
    %128 = sbr.rel (0) target = $region25
  $region24: #{model_forward.14} parent=0 // pred_region
    _
  $region25: #{model_forward.14} parent=0 // pred_fallthru
    _
  // Predicated region
  $region26: #{model_forward.14} parent=0 // pred_check
    _
  $region27: #{model_forward.14} parent=0 // pred_check_branch
    %130 = sbr.rel (0) target = $region29
  $region28: #{model_forward.14} parent=0 // pred_region
    _
  $region29: #{model_forward.14} parent=0 // pred_fallthru
    _

// kernel: model_forward.13
$region0: #{model_forward.13}
  #allocation0 [shape = 'u32[]', space=smem, size = 0x4, offset = 0x4, fixed_abs, tag = 'smem constant byte address 0x4 - core index']
  #allocation1 [shape = 'u32[72,128]{1,0:T(1,128)}', space=vmem, size = 0x9000, scoped, tag = 'internal scratch']
  #allocation2 [shape = 'f32[2,8,1]{2,1,0:T(8,128)}', space=vmem, size = 0x2000, scoped, tag = 'scratch operand']
  #allocation3 [shape = 'f32[2,8,1]{2,1,0:T(8,128)}', space=vmem, size = 0x2000, scoped, tag = 'scratch operand']
  #allocation4 [shape = 'f32[8,128]{1,0:T(8,128)}', space=vmem, size = 0x1000, scoped, tag = 'scratch operand']
  %s0 = inlined_call_operand.vmem [shape: bf16[2,8,384], index: 0, kind: input, shape index: {}, may-alias: {0,1,2}]
  %s1 = inlined_call_operand.vmem [shape: bf16[2,8,384], index: 1, kind: input, shape index: {}, may-alias: {0,1,2}]
  %s2 = inlined_call_operand.vmem [shape: bf16[2,8,384], index: 2, kind: input, shape index: {}, may-alias: {0,1,2}]
  %s3 = inlined_call_operand.vmem [shape: f32[2,1,8], index: 3, kind: input, shape index: {}]
  %s4 = inlined_call_operand.vmem [shape: bf16[2,8,128], index: 4, kind: output, shape index: {}]
  %s5 = sld [smem:[#allocation0]]
  $region57: #{model_forward.13} parent=0
    _
  %s7 = ssub.s32 1, %s5
  %s8 = scalar_select 0, %s7, %s5
  loop: start=0, step=1, limit=4
  $region2: #{model_forward.13} parent=0 // loop_pre_header
    _
  $region3: #{model_forward.13} parent=0 // loop_header
    %s10 = sphi 0, %s14
    %p11 = scmp.ge.s32.totalorder %s10, 4
    %s17 = sphi 0, %s36
    %s18 = sphi 0, %s32
    %s19 = sphi 0, %s28
    %s20 = sphi 0, %s17
    %s21 = sphi 0, %s18
    %s22 = sphi 0, %s19
    %s23 = sphi 0, %s20
    %s24 = sphi 0, %s21
    %s25 = sphi 0, %s22
    %s41 = sphi 0, %s43
    %s44 = sphi 0, %s41
    %s45 = sphi 0, %s44
    %s61 = sphi 0, %s45
    %s69 = sphi 0, %s71
    %s72 = sphi 0, %s69
    %s73 = sphi 0, %s72
    %s89 = sphi 0, %s73
    %s97 = sphi 0, %s99
    %s100 = sphi 0, %s97
    %s101 = sphi 0, %s100
    %s117 = sphi 0, %s101
    %s125 = sphi 0, %s127
    %s128 = sphi 0, %s125
    %s129 = sphi 0, %s128
    %s145 = sphi 0, %s129
    %s153 = sphi 0, %s155
    %s156 = sphi 0, %s153
    %s157 = sphi 0, %s156
    %s173 = sphi 0, %s157
  $region4: #{model_forward.13} parent=0 // loop_header_branch
    %13 = sbr.rel (%p11) target = $region8
  $region5: #{model_forward.13} parent=0 // loop_body
    %s15 = ssub.s32 %s10, 1
    %s16 = ssub.s32 %s10, 2
    %s26 = sadd.s32 1, %s19
    %p27 = scmp.ge.s32.totalorder %s26, 1
    %s28 = scalar_select %p27, 0, %s26
    %s29 = sadd.s32 1, %s18
    %s30 = scalar_select %p27, %s29, %s18
    %p31 = scmp.ge.s32.totalorder %s30, 1
    %s32 = scalar_select %p31, 0, %s30
    %s33 = sadd.s32 1, %s17
    %s34 = scalar_select %p31, %s33, %s17
    %p35 = scmp.ge.s32.totalorder %s34, 2
    %s36 = scalar_select %p35, 0, %s34
    %s37 = ssub.s32 %s17, %s36
    %s38 = ssub.s32 %s18, %s32
    %s39 = sor.u32 %s37, %s38
    %p40 = scmp.eq.s32.totalorder %s39, 0
    %s42 = sadd.s32 %s41, 1
    %s43 = scalar_select %p40, %s41, %s42
    %p46 = pneg %p40
    %p47 = scmp.eq.s32.totalorder %s10, 1
    %p48 = por %p46, %p47
    %p49 = scmp.ne.s32.totalorder %s41, %s44
    %p50 = scmp.eq.s32.totalorder %s10, 0
    %p51 = por %p49, %p50
    %p52 = scmp.ne.s32.totalorder %s41, %s44
    %p53 = scmp.eq.s32.totalorder %s15, 1
    %p54 = por %p52, %p53
    %p55 = scmp.ne.s32.totalorder %s44, %s45
    %p56 = scmp.eq.s32.totalorder %s15, 0
    %p57 = por %p55, %p56
    %p58 = scmp.ne.s32.totalorder %s44, %s45
    %p59 = scmp.eq.s32.totalorder %s16, 1
    %p60 = por %p58, %p59
    %p62 = scmp.ne.s32.totalorder %s45, %s61
    %p63 = scmp.eq.s32.totalorder %s16, 0
    %p64 = por %p62, %p63
    %s65 = ssub.s32 %s17, %s36
    %s66 = ssub.s32 %s19, %s28
    %s67 = sor.u32 %s65, %s66
    %p68 = scmp.eq.s32.totalorder %s67, 0
    %s70 = sadd.s32 %s69, 1
    %s71 = scalar_select %p68, %s69, %s70
    %p74 = pneg %p68
    %p75 = scmp.eq.s32.totalorder %s10, 1
    %p76 = por %p74, %p75
    %p77 = scmp.ne.s32.totalorder %s69, %s72
    %p78 = scmp.eq.s32.totalorder %s10, 0
    %p79 = por %p77, %p78
    %p80 = scmp.ne.s32.totalorder %s69, %s72
    %p81 = scmp.eq.s32.totalorder %s15, 1
    %p82 = por %p80, %p81
    %p83 = scmp.ne.s32.totalorder %s72, %s73
    %p84 = scmp.eq.s32.totalorder %s15, 0
    %p85 = por %p83, %p84
    %p86 = scmp.ne.s32.totalorder %s72, %s73
    %p87 = scmp.eq.s32.totalorder %s16, 1
    %p88 = por %p86, %p87
    %p90 = scmp.ne.s32.totalorder %s73, %s89
    %p91 = scmp.eq.s32.totalorder %s16, 0
    %p92 = por %p90, %p91
    %s93 = ssub.s32 %s17, %s36
    %s94 = ssub.s32 %s19, %s28
    %s95 = sor.u32 %s93, %s94
    %p96 = scmp.eq.s32.totalorder %s95, 0
    %s98 = sadd.s32 %s97, 1
    %s99 = scalar_select %p96, %s97, %s98
    %p102 = pneg %p96
    %p103 = scmp.eq.s32.totalorder %s10, 1
    %p104 = por %p102, %p103
    %p105 = scmp.ne.s32.totalorder %s97, %s100
    %p106 = scmp.eq.s32.totalorder %s10, 0
    %p107 = por %p105, %p106
    %p108 = scmp.ne.s32.totalorder %s97, %s100
    %p109 = scmp.eq.s32.totalorder %s15, 1
    %p110 = por %p108, %p109
    %p111 = scmp.ne.s32.totalorder %s100, %s101
    %p112 = scmp.eq.s32.totalorder %s15, 0
    %p113 = por %p111, %p112
    %p114 = scmp.ne.s32.totalorder %s100, %s101
    %p115 = scmp.eq.s32.totalorder %s16, 1
    %p116 = por %p114, %p115
    %p118 = scmp.ne.s32.totalorder %s101, %s117
    %p119 = scmp.eq.s32.totalorder %s16, 0
    %p120 = por %p118, %p119
    %s121 = ssub.s32 %s17, %s36
    %s122 = ssub.s32 %s19, %s28
    %s123 = sor.u32 %s121, %s122
    %p124 = scmp.eq.s32.totalorder %s123, 0
    %s126 = sadd.s32 %s125, 1
    %s127 = scalar_select %p124, %s125, %s126
    %p130 = pneg %p124
    %p131 = scmp.eq.s32.totalorder %s10, 1
    %p132 = por %p130, %p131
    %p133 = scmp.ne.s32.totalorder %s125, %s128
    %p134 = scmp.eq.s32.totalorder %s10, 0
    %p135 = por %p133, %p134
    %p136 = scmp.ne.s32.totalorder %s125, %s128
    %p137 = scmp.eq.s32.totalorder %s15, 1
    %p138 = por %p136, %p137
    %p139 = scmp.ne.s32.totalorder %s128, %s129
    %p140 = scmp.eq.s32.totalorder %s15, 0
    %p141 = por %p139, %p140
    %p142 = scmp.ne.s32.totalorder %s128, %s129
    %p143 = scmp.eq.s32.totalorder %s16, 1
    %p144 = por %p142, %p143
    %p146 = scmp.ne.s32.totalorder %s129, %s145
    %p147 = scmp.eq.s32.totalorder %s16, 0
    %p148 = por %p146, %p147
    %s149 = ssub.s32 %s17, %s36
    %s150 = ssub.s32 %s18, %s32
    %s151 = sor.u32 %s149, %s150
    %p152 = scmp.eq.s32.totalorder %s151, 0
    %s154 = sadd.s32 %s153, 1
    %s155 = scalar_select %p152, %s153, %s154
    %p158 = pneg %p152
    %p159 = scmp.eq.s32.totalorder %s10, 1
    %p160 = por %p158, %p159
    %p161 = scmp.ne.s32.totalorder %s153, %s156
    %p162 = scmp.eq.s32.totalorder %s10, 0
    %p163 = por %p161, %p162
    %p164 = scmp.ne.s32.totalorder %s153, %s156
    %p165 = scmp.eq.s32.totalorder %s15, 1
    %p166 = por %p164, %p165
    %p167 = scmp.ne.s32.totalorder %s156, %s157
    %p168 = scmp.eq.s32.totalorder %s15, 0
    %p169 = por %p167, %p168
    %p170 = scmp.ne.s32.totalorder %s156, %s157
    %p171 = scmp.eq.s32.totalorder %s16, 1
    %p172 = por %p170, %p171
    %p174 = scmp.ne.s32.totalorder %s157, %s173
    %p175 = scmp.eq.s32.totalorder %s16, 0
    %p176 = por %p174, %p175
    %p177 = scmp.le.s32.totalorder 1, %s10
    %p178 = scmp.lt.s32.totalorder %s10, 3
    %p179 = pnand %p177, %p178
    %p180 = pneg %p179
    // Predicated region
    $region9: #{model_forward.13} parent=5 // pred_check
      _
    $region10: #{model_forward.13} parent=5 // pred_check_branch
      %182 = sbr.rel (%p179) target = $region12
    $region11: #{model_forward.13} parent=5 // pred_region
      %s183 = ssub.s32 %s10, 1
    $region12: #{model_forward.13} parent=5 // pred_fallthru
      _
    %p184 = scmp.lt.s32.totalorder %s10, 2
    // Predicated region
    $region13: #{model_forward.13} parent=5 // pred_check
      %p185 = pneg %p184
    $region14: #{model_forward.13} parent=5 // pred_check_branch
      %187 = sbr.rel (%p185) target = $region16
    $region15: #{model_forward.13} parent=5 // pred_region
      // Predicated region
      $region17: #{model_forward.13} parent=15 // pred_check
        %p188 = pneg %p51
      $region18: #{model_forward.13} parent=15 // pred_check_branch
        %190 = sbr.rel (%p188) target = $region20
      $region19: #{model_forward.13} parent=15 // pred_region
        %p191 = scmp.lt.s32.totalorder %s17, 1
        %s192 = scalar_select %p191, %s17, 1
        %p193 = scmp.lt.s32.totalorder %s18, 0
        %s194 = scalar_select %p193, %s18, 0
        %s195 = smul.addr %s194, 3
        %s196 = smul.addr %s192, 3
        %s197 = sadd.s32 %s195, %s196
        %s198 = smul.addr %s197, 4
        %s199 = scalar_lea.vmem %s0, %s198
      $region20: #{model_forward.13} parent=15 // pred_fallthru
        _
      // Predicated region
      $region21: #{model_forward.13} parent=15 // pred_check
        %p200 = pneg %p79
      $region22: #{model_forward.13} parent=15 // pred_check_branch
        %202 = sbr.rel (%p200) target = $region24
      $region23: #{model_forward.13} parent=15 // pred_region
        %p203 = scmp.lt.s32.totalorder %s17, 1
        %s204 = scalar_select %p203, %s17, 1
        %p205 = scmp.lt.s32.totalorder %s19, 0
        %s206 = scalar_select %p205, %s19, 0
        %s207 = smul.addr %s206, 3
        %s208 = sadd.s32 1, %s207
        %s209 = smul.addr %s204, 3
        %s210 = sadd.s32 %s208, %s209
        %s211 = smul.addr %s210, 4
        %s212 = scalar_lea.vmem %s1, %s211
      $region24: #{model_forward.13} parent=15 // pred_fallthru
        _
      // Predicated region
      $region25: #{model_forward.13} parent=15 // pred_check
        %p213 = pneg %p107
      $region26: #{model_forward.13} parent=15 // pred_check_branch
        %215 = sbr.rel (%p213) target = $region28
      $region27: #{model_forward.13} parent=15 // pred_region
        %p216 = scmp.lt.s32.totalorder %s17, 1
        %s217 = scalar_select %p216, %s17, 1
        %p218 = scmp.lt.s32.totalorder %s19, 0
        %s219 = scalar_select %p218, %s19, 0
        %s220 = smul.addr %s219, 3
        %s221 = sadd.s32 2, %s220
        %s222 = smul.addr %s217, 3
        %s223 = sadd.s32 %s221, %s222
        %s224 = smul.addr %s223, 4
        %s225 = scalar_lea.vmem %s2, %s224
      $region28: #{model_forward.13} parent=15 // pred_fallthru
        _
      // Predicated region
      $region29: #{model_forward.13} parent=15 // pred_check
        %p226 = pneg %p135
      $region30: #{model_forward.13} parent=15 // pred_check_branch
        %228 = sbr.rel (%p226) target = $region32
      $region31: #{model_forward.13} parent=15 // pred_region
        %p229 = scmp.lt.s32.totalorder %s17, 1
        %s230 = scalar_select %p229, %s17, 1
        %p231 = scmp.lt.s32.totalorder %s19, 0
        %s232 = scalar_select %p231, %s19, 0
        %s233 = sadd.s32 %s232, %s230
        %s234 = scalar_lea.vmem %s3, %s233
      $region32: #{model_forward.13} parent=15 // pred_fallthru
        _
    $region16: #{model_forward.13} parent=5 // pred_fallthru
      _
    %p235 = scmp.le.s32.totalorder 1, %s10
    %p236 = scmp.lt.s32.totalorder %s10, 3
    %p237 = pnand %p235, %p236
    %p238 = pneg %p237
    // Predicated region
    $region33: #{model_forward.13} parent=5 // pred_check
      _
    $region34: #{model_forward.13} parent=5 // pred_check_branch
      %240 = sbr.rel (%p237) target = $region36
    $region35: #{model_forward.13} parent=5 // pred_region
      %s241 = ssub.s32 %s10, 1
      %p242 = scmp.lt.s32.totalorder %s20, 1
      %s243 = scalar_select %p242, %s20, 1
      %p244 = scmp.lt.s32.totalorder %s21, 0
      %s245 = scalar_select %p244, %s21, 0
      %s246 = smul.addr %s245, 3
      %s247 = smul.addr %s243, 3
      %s248 = sadd.s32 %s246, %s247
      %s249 = smul.addr %s248, 4
      %s250 = scalar_lea.vmem %s0, %s249
      %p251 = pneg %p57
      %p252 = pneg %p54
      %p253 = scmp.lt.s32.totalorder %s20, 1
      %s254 = scalar_select %p253, %s20, 1
      %p255 = scmp.lt.s32.totalorder %s22, 0
      %s256 = scalar_select %p255, %s22, 0
      %s257 = smul.addr %s256, 3
      %s258 = sadd.s32 1, %s257
      %s259 = smul.addr %s254, 3
      %s260 = sadd.s32 %s258, %s259
      %s261 = smul.addr %s260, 4
      %s262 = scalar_lea.vmem %s1, %s261
      %p263 = pneg %p85
      %p264 = pneg %p82
      %p265 = scmp.lt.s32.totalorder %s20, 1
      %s266 = scalar_select %p265, %s20, 1
      %p267 = scmp.lt.s32.totalorder %s22, 0
      %s268 = scalar_select %p267, %s22, 0
      %s269 = smul.addr %s268, 3
      %s270 = sadd.s32 2, %s269
      %s271 = smul.addr %s266, 3
      %s272 = sadd.s32 %s270, %s271
      %s273 = smul.addr %s272, 4
      %s274 = scalar_lea.vmem %s2, %s273
      %p275 = pneg %p113
      %p276 = pneg %p110
      %p277 = scmp.lt.s32.totalorder %s20, 1
      %s278 = scalar_select %p277, %s20, 1
      %p279 = scmp.lt.s32.totalorder %s22, 0
      %s280 = scalar_select %p279, %s22, 0
      %s281 = sadd.s32 %s280, %s278
      %s282 = scalar_lea.vmem %s3, %s281
      %p283 = pneg %p141
      %p284 = pneg %p138
      %p285 = pneg %p169
      %p286 = pneg %p166
      %p287 = scmp.lt.s32.totalorder %s20, 1
      %s288 = scalar_select %p287, %s20, 1
      %p289 = scmp.lt.s32.totalorder %s21, 0
      %s290 = scalar_select %p289, %s21, 0
      %s291 = sadd.s32 %s290, %s288
      %s292 = smul.addr %s291, 4
      %s293 = scalar_lea.vmem %s4, %s292
      %p294 = scmp.lt.s32.totalorder %s20, 1
      %s295 = scalar_select %p294, %s20, 1
      %p296 = scmp.lt.s32.totalorder %s21, 0
      %s297 = scalar_select %p296, %s21, 0
      %s298 = smul.addr %s297, 3
      %s299 = smul.addr %s295, 3
      %s300 = sadd.s32 %s298, %s299
      %s301 = smul.addr %s300, 4
      %s302 = scalar_lea.vmem %s0, %s301
      %p303 = scmp.lt.s32.totalorder %s20, 1
      %s304 = scalar_select %p303, %s20, 1
      %p305 = scmp.lt.s32.totalorder %s22, 0
      %s306 = scalar_select %p305, %s22, 0
      %s307 = smul.addr %s306, 3
      %s308 = sadd.s32 1, %s307
      %s309 = smul.addr %s304, 3
      %s310 = sadd.s32 %s308, %s309
      %s311 = smul.addr %s310, 4
      %s312 = scalar_lea.vmem %s1, %s311
      %p313 = scmp.lt.s32.totalorder %s20, 1
      %s314 = scalar_select %p313, %s20, 1
      %p315 = scmp.lt.s32.totalorder %s22, 0
      %s316 = scalar_select %p315, %s22, 0
      %s317 = smul.addr %s316, 3
      %s318 = sadd.s32 2, %s317
      %s319 = smul.addr %s314, 3
      %s320 = sadd.s32 %s318, %s319
      %s321 = smul.addr %s320, 4
      %s322 = scalar_lea.vmem %s2, %s321
      %p323 = scmp.lt.s32.totalorder %s20, 1
      %s324 = scalar_select %p323, %s20, 1
      %p325 = scmp.lt.s32.totalorder %s22, 0
      %s326 = scalar_select %p325, %s22, 0
      %s327 = sadd.s32 %s326, %s324
      %s328 = scalar_lea.vmem %s3, %s327
      %p329 = scmp.lt.s32.totalorder %s20, 1
      %s330 = scalar_select %p329, %s20, 1
      %p331 = scmp.lt.s32.totalorder %s21, 0
      %s332 = scalar_select %p331, %s21, 0
      %s333 = sadd.s32 %s332, %s330
      %s334 = smul.addr %s333, 4
      %s335 = scalar_lea.vmem %s4, %s334
      %p337 = scmp.eq.s32.totalorder %s22, 0
      // Predicated region
      $region37: #{model_forward.13} parent=35 // pred_check
        %p338 = pneg %p337
      $region38: #{model_forward.13} parent=35 // pred_check_branch
        %340 = sbr.rel (%p338) target = $region40
      $region39: #{model_forward.13} parent=35 // pred_region
        %vm341 = vcmask 7168
        %342 = vst.msk [vmem:[#allocation2] sm:$0xff] %vm341, -1e+30
        %343 = vst.msk [vmem:[#allocation2 + $0x8] sm:$0xff] %vm341, -1e+30
        %344 = vst.msk [vmem:[#allocation3] sm:$0xff] %vm341, 0.0
        %345 = vst.msk [vmem:[#allocation3 + $0x8] sm:$0xff] %vm341, 0.0
        %346 = vst [vmem:[#allocation4] sm:$0xff] 0.0
      $region40: #{model_forward.13} parent=35 // pred_fallthru
        _
      %v347 = vld [vmem:[%s302] sm:$0xf]
      %v348 = vld [vmem:[%s312] sm:$0xf]
      %v349 = vld [vmem:[%s322] sm:$0xf]
      %v350 = vld [vmem:[%s328] sm:$0x1]
      %v352 = vperm.slane %v350, 0
      %vm354 = vcmask 523264
      %v356 = vsel %vm354, %v347, 0
      %v359 = vsel %vm354, %v348, 0
      %361 = vmatpush.bf16.xpose.msra.mxu0 0
      %362 = vmatpush.bf16.xpose.msra.mxu0 0
      %363 = vmatpush.bf16.xpose.msra.mxu0 0
      %364 = vmatpush.bf16.xpose.msra.mxu0 0
      %365 = vmatpush.bf16.xpose.msra.mxu0 0
      %366 = vmatpush.bf16.xpose.msra.mxu0 0
      %367 = vmatpush.bf16.xpose.msra.mxu0 0
      %368 = vmatpush.bf16.xpose.msra.mxu0 %v359
      %369 = vmatmul.bf16.gmra.mxu0 %v356
      %v370 = vpop.f32.mrf.mxu0
      %v371 = vadd.f32 %v352, %v370
      %v372 = vpop.f32.mrf.mxu0
      %373 = vdwg.mxu0
      %v374 = vld [vmem:[#allocation2] sm:$0xff]
      %vm375 = vcmask 64512
      %v376 = vsel %vm375, %v371, -inf
      %377 = vmax.xlane.f32.xlu0 %v376
      %v378 = vpop.xlane.xlu0 %377
      %v379 = vmax.f32 %v374, %v378
      %v380 = vsub.f32 %v374, %v379
      %v381 = vmul.f32 %v380, 1.442695
      %v382 = vpow.pop %v381
      %384 = vset.pattern.permute.xlu0 0
      %385 = vperm.xlu0 %384, %v379
      %v386 = vpop.permute.xlu0 %385
      %v388 = vsub.f32 %v371, %v386
      %v389 = vmul.f32 %v388, 1.442695
      %v390 = vpow.pop %v389
      %v391 = vld [vmem:[#allocation3] sm:$0xff]
      %v392 = vmul.f32 %v382, %v391
      %v393 = vsel %vm375, %v390, 0.0
      %394 = vadd.xlane.f32.xlu0 %v393
      %v395 = vpop.xlane.xlu0 %394
      %v396 = vadd.f32 %v392, %v395
      %vm397 = vcmask 7168
      %398 = vst.msk [vmem:[#allocation3] sm:$0xff] %vm397, %v396
      %v399 = vld [vmem:[#allocation4] sm:$0xff]
      %401 = vset.pattern.permute.xlu0 0
      %402 = vperm.xlu0 %401, %v382
      %v403 = vpop.permute.xlu0 %402
      %v405 = vmul.f32 %v403, %v399
      %v406 = vpack.c.bf16 %v390, %v390
      %v408 = vsel %vm375, %v406, 0
      %vm410 = vcmask 1043456
      %v412 = vsel %vm410, %v349, 0
      %414 = vmatpush.bf16.msra.mxu0 0
      %415 = vmatpush.bf16.msra.mxu0 0
      %416 = vmatpush.bf16.msra.mxu0 0
      %417 = vmatpush.bf16.msra.mxu0 0
      %418 = vmatpush.bf16.msra.mxu0 0
      %419 = vmatpush.bf16.msra.mxu0 0
      %420 = vmatpush.bf16.msra.mxu0 0
      %421 = vmatpush.bf16.msra.mxu0 %v412
      %422 = vmatmul.bf16.gmra.mxu0 %v408
      %v423 = vpop.f32.mrf.mxu0
      %v424 = vadd.f32 0.0, %v423
      %v425 = vpop.f32.mrf.mxu0
      %426 = vdwg.mxu0
      %v427 = vadd.f32 %v405, %v424
      %428 = vst.msk [vmem:[#allocation4] sm:$0xff] %vm354, %v427
      %429 = vst.msk [vmem:[#allocation2] sm:$0xff] %vm397, %v379
      %v431 = vunpack.c.l.b16 %v347
      %v432 = vpack.c.b16 %v431, %v431
      %433 = vrot.lane.b32.xlu0 %v432, 64
      %v434 = vpop.permute.xlu0 %433
      %v436 = vunpack.c.l.b16 %v348
      %v437 = vpack.c.b16 %v436, %v436
      %438 = vrot.lane.b32.xlu0 %v437, 64
      %v439 = vpop.permute.xlu0 %438
      %v441 = vsel %vm354, %v434, 0
      %v444 = vsel %vm354, %v439, 0
      %446 = vmatpush.bf16.xpose.msra.mxu0 0
      %447 = vmatpush.bf16.xpose.msra.mxu0 0
      %448 = vmatpush.bf16.xpose.msra.mxu0 0
      %449 = vmatpush.bf16.xpose.msra.mxu0 0
      %450 = vmatpush.bf16.xpose.msra.mxu0 0
      %451 = vmatpush.bf16.xpose.msra.mxu0 0
      %452 = vmatpush.bf16.xpose.msra.mxu0 0
      %453 = vmatpush.bf16.xpose.msra.mxu0 %v444
      %454 = vmatmul.bf16.gmra.mxu0 %v441
      %v455 = vpop.f32.mrf.mxu0
      %v456 = vadd.f32 %v352, %v455
      %v457 = vpop.f32.mrf.mxu0
      %458 = vdwg.mxu0
      %s459 = scalar_lea.vmem [#allocation2], 8
      %v460 = vld [vmem:[%s459] sm:$0xff]
      %v461 = vsel %vm375, %v456, -inf
      %462 = vmax.xlane.f32.xlu0 %v461
      %v463 = vpop.xlane.xlu0 %462
      %v464 = vmax.f32 %v460, %v463
      %v465 = vsub.f32 %v460, %v464
      %v466 = vmul.f32 %v465, 1.442695
      %v467 = vpow.pop %v466
      %469 = vset.pattern.permute.xlu0 0
      %470 = vperm.xlu0 %469, %v464
      %v471 = vpop.permute.xlu0 %470
      %v473 = vsub.f32 %v456, %v471
      %v474 = vmul.f32 %v473, 1.442695
      %v475 = vpow.pop %v474
      %s476 = scalar_lea.vmem [#allocation3], 8
      %v477 = vld [vmem:[%s476] sm:$0xff]
      %v478 = vmul.f32 %v467, %v477
      %v479 = vsel %vm375, %v475, 0.0
      %480 = vadd.xlane.f32.xlu0 %v479
      %v481 = vpop.xlane.xlu0 %480
      %v482 = vadd.f32 %v478, %v481
      %483 = vst.msk [vmem:[%s476] sm:$0xff] %vm397, %v482
      %v484 = vld [vmem:[#allocation4] sm:$0xff]
      %486 = vset.pattern.permute.xlu0 0
      %487 = vperm.xlu0 %486, %v467
      %v488 = vpop.permute.xlu0 %487
      %v490 = vmul.f32 %v488, %v484
      %v491 = vpack.c.bf16 %v475, %v475
      %v493 = vunpack.c.l.b16 %v349
      %v494 = vpack.c.b16 %v493, %v493
      %495 = vrot.lane.b32.xlu0 %v494, 64
      %v496 = vpop.permute.xlu0 %495
      %v498 = vsel %vm375, %v491, 0
      %v501 = vsel %vm410, %v496, 0
      %503 = vmatpush.bf16.msra.mxu0 0
      %504 = vmatpush.bf16.msra.mxu0 0
      %505 = vmatpush.bf16.msra.mxu0 0
      %506 = vmatpush.bf16.msra.mxu0 0
      %507 = vmatpush.bf16.msra.mxu0 0
      %508 = vmatpush.bf16.msra.mxu0 0
      %509 = vmatpush.bf16.msra.mxu0 0
      %510 = vmatpush.bf16.msra.mxu0 %v501
      %511 = vmatmul.bf16.gmra.mxu0 %v498
      %v512 = vpop.f32.mrf.mxu0
      %v513 = vadd.f32 0.0, %v512
      %v514 = vpop.f32.mrf.mxu0
      %515 = vdwg.mxu0
      %517 = vrot.lane.b32.xlu0 %v513, 64
      %v518 = vpop.permute.xlu0 %517
      %v520 = vadd.f32 %v490, %v518
      %vm521 = vcmask 1048064
      %522 = vst.msk [vmem:[#allocation4] sm:$0xff] %vm521, %v520
      %523 = vst.msk [vmem:[%s459] sm:$0xff] %vm397, %v464
      // Predicated region
      $region41: #{model_forward.13} parent=35 // pred_check
        %p524 = pneg %p337
      $region42: #{model_forward.13} parent=35 // pred_check_branch
        %526 = sbr.rel (%p524) target = $region44
      $region43: #{model_forward.13} parent=35 // pred_region
        %v527 = vld [vmem:[#allocation3] sm:$0xff]
        %v528 = vrcp.pop %v527
        %530 = vset.pattern.permute.xlu0 0
        %531 = vperm.xlu0 %530, %v528
        %v532 = vpop.permute.xlu0 %531
        %v534 = vld [vmem:[%s476] sm:$0xff]
        %v535 = vrcp.pop %v534
        %537 = vset.pattern.permute.xlu0 0
        %538 = vperm.xlu0 %537, %v535
        %v539 = vpop.permute.xlu0 %538
        %v541 = vsel %vm354, %v532, %v539
        %v542 = vld [vmem:[#allocation4] sm:$0xff]
        %v543 = vmul.f32 %v542, %v541
        %v544 = vpack.c.bf16 %v543, %v543
        %545 = vst [vmem:[%s335] sm:$0xf] %v544
      $region44: #{model_forward.13} parent=35 // pred_fallthru
        _
      %p546 = scmp.lt.s32.totalorder %s20, 1
      %s547 = scalar_select %p546, %s20, 1
      %p548 = scmp.lt.s32.totalorder %s21, 0
      %s549 = scalar_select %p548, %s21, 0
      %s550 = sadd.s32 %s549, %s547
      %s551 = smul.addr %s550, 4
      %s552 = scalar_lea.vmem %s4, %s551
      // Predicated region
      $region45: #{model_forward.13} parent=35 // pred_check
        %p553 = pneg %p166
      $region46: #{model_forward.13} parent=35 // pred_check_branch
        %555 = sbr.rel (%p553) target = $region48
      $region47: #{model_forward.13} parent=35 // pred_region
        _
      $region48: #{model_forward.13} parent=35 // pred_fallthru
        _
    $region36: #{model_forward.13} parent=5 // pred_fallthru
      _
    %p556 = scmp.le.s32.totalorder 2, %s10
    // Predicated region
    $region49: #{model_forward.13} parent=5 // pred_check
      %p557 = pneg %p556
    $region50: #{model_forward.13} parent=5 // pred_check_branch
      %559 = sbr.rel (%p557) target = $region52
    $region51: #{model_forward.13} parent=5 // pred_region
      %s560 = ssub.s32 %s10, 2
      // Predicated region
      $region53: #{model_forward.13} parent=51 // pred_check
        %p561 = pneg %p172
      $region54: #{model_forward.13} parent=51 // pred_check_branch
        %563 = sbr.rel (%p561) target = $region56
      $region55: #{model_forward.13} parent=51 // pred_region
        %p564 = scmp.lt.s32.totalorder %s23, 1
        %s565 = scalar_select %p564, %s23, 1
        %p566 = scmp.lt.s32.totalorder %s24, 0
        %s567 = scalar_select %p566, %s24, 0
        %s568 = sadd.s32 %s567, %s565
        %s569 = smul.addr %s568, 4
        %s570 = scalar_lea.vmem %s4, %s569
      $region56: #{model_forward.13} parent=51 // pred_fallthru
        _
    $region52: #{model_forward.13} parent=5 // pred_fallthru
      _
  $region6: #{model_forward.13} parent=0 // loop_footer
    %s14 = sadd.s32 1, %s10
  $region7: #{model_forward.13} parent=0 // loop_footer_branch
    %9 = sbr.rel target = $region3
  $region8: #{model_forward.13} parent=0 // loop_exit
    _

// kernel: model_forward.15
$region0: #{model_forward.15}
  #allocation0 [shape = 'u32[]', space=smem, size = 0x4, offset = 0x4, fixed_abs, tag = 'smem constant byte address 0x4 - core index']
  #allocation1 [shape = 'u32[72,128]{1,0:T(1,128)}', space=vmem, size = 0x9000, scoped, tag = 'internal scratch']
  %s0 = inlined_call_operand.vmem [shape: bf16[16,128], index: 0, kind: input, shape index: {}]
  %s1 = inlined_call_operand.vmem [shape: bf16[16,128], index: 1, kind: input, shape index: {}]
  %s2 = inlined_call_operand.vmem [shape: f32[1,128], index: 2, kind: input, shape index: {}]
  %s3 = inlined_call_operand.vmem [shape: f32[1,128], index: 3, kind: input, shape index: {}]
  %s4 = inlined_call_operand.vmem [shape: bf16[16,128], index: 4, kind: output, shape index: {}]
  %s5 = sld [smem:[#allocation0]]
  $region26: #{model_forward.15} parent=0
    _
  %s7 = ssub.s32 1, %s5
  %s8 = scalar_select 0, %s7, %s5
  // Predicated region
  $region2: #{model_forward.15} parent=0 // pred_check
    _
  $region3: #{model_forward.15} parent=0 // pred_check_branch
    %10 = sbr.rel (0) target = $region5
  $region4: #{model_forward.15} parent=0 // pred_region
    _
  $region5: #{model_forward.15} parent=0 // pred_fallthru
    _
  // Predicated region
  $region6: #{model_forward.15} parent=0 // pred_check
    _
  $region7: #{model_forward.15} parent=0 // pred_check_branch
    %12 = sbr.rel (0) target = $region9
  $region8: #{model_forward.15} parent=0 // pred_region
    _
  $region9: #{model_forward.15} parent=0 // pred_fallthru
    _
  // Predicated region
  $region10: #{model_forward.15} parent=0 // pred_check
    _
  $region11: #{model_forward.15} parent=0 // pred_check_branch
    %14 = sbr.rel (0) target = $region13
  $region12: #{model_forward.15} parent=0 // pred_region
    _
  $region13: #{model_forward.15} parent=0 // pred_fallthru
    _
  // Predicated region
  $region14: #{model_forward.15} parent=0 // pred_check
    _
  $region15: #{model_forward.15} parent=0 // pred_check_branch
    %16 = sbr.rel (0) target = $region17
  $region16: #{model_forward.15} parent=0 // pred_region
    _
  $region17: #{model_forward.15} parent=0 // pred_fallthru
    _
  %v17 = vld [vmem:[%s0] sm:$0xf]
  %v18 = vld [vmem:[%s0 + $0x4] sm:$0xf]
  %v19 = vunpack.c.l.bf16 %v17
  %v20 = vunpack.c.l.bf16 %v18
  %v21 = vld [vmem:[%s1] sm:$0xf]
  %v22 = vld [vmem:[%s1 + $0x4] sm:$0xf]
  %v23 = vunpack.c.l.bf16 %v21
  %v24 = vunpack.c.l.bf16 %v22
  %v25 = vadd.f32 %v19, %v23
  %v26 = vadd.f32 %v20, %v24
  %v27 = vld [vmem:[%s2] sm:$0x1]
  %v28 = vld [vmem:[%s3] sm:$0x1]
  %29 = vadd.xlane.f32.xlu0 %v25
  %v30 = vpop.xlane.xlu0 %29
  %31 = vadd.xlane.f32.xlu0 %v26
  %v32 = vpop.xlane.xlu0 %31
  %v33 = vrcp.pop 128.0
  %v34 = vmul.f32 128.0, %v33
  %v35 = vsub.f32 1.0, %v34
  %v36 = vmul.f32 %v33, %v35
  %v37 = vadd.f32 %v33, %v36
  %vm38 = vweird.f32 %v33
  %v39 = vsel %vm38, %v33, %v37
  %v40 = vmul.f32 %v30, %v39
  %v41 = vmul.f32 %v32, %v39
  %v42 = vsub.f32 %v25, %v40
  %v43 = vsub.f32 %v26, %v41
  %v44 = vmul.f32 %v42, %v42
  %v45 = vmul.f32 %v43, %v43
  %46 = vadd.xlane.f32.xlu0 %v44
  %v47 = vpop.xlane.xlu0 %46
  %48 = vadd.xlane.f32.xlu0 %v45
  %v49 = vpop.xlane.xlu0 %48
  %v50 = vmul.f32 %v47, %v39
  %v51 = vmul.f32 %v49, %v39
  %v52 = vadd.f32 %v50, 1e-06
  %v53 = vadd.f32 %v51, 1e-06
  %v54 = vrsqrt.pop %v52
  %v55 = vmul.f32 %v54, %v52
  %v56 = vmul.f32 %v55, %v54
  %v57 = vmul.f32 0.5, %v56
  %v58 = vsub.f32 1.5, %v57
  %v59 = vmul.f32 %v54, %v58
  %vm60 = vweird.f32 %v52
  %vm61 = vweird.f32 %v54
  %vm62 = vmor %vm60, %vm61
  %v63 = vsel %vm62, %v54, %v59
  %v64 = vrsqrt.pop %v53
  %v65 = vmul.f32 %v64, %v53
  %v66 = vmul.f32 %v65, %v64
  %v67 = vmul.f32 0.5, %v66
  %v68 = vsub.f32 1.5, %v67
  %v69 = vmul.f32 %v64, %v68
  %vm70 = vweird.f32 %v53
  %vm71 = vweird.f32 %v64
  %vm72 = vmor %vm70, %vm71
  %v73 = vsel %vm72, %v64, %v69
  %v74 = vmul.f32 %v42, %v63
  %v75 = vmul.f32 %v43, %v73
  %v77 = vperm.slane %v27, 0
  %v79 = vmul.f32 %v74, %v77
  %v80 = vmul.f32 %v75, %v77
  %v82 = vperm.slane %v28, 0
  %v84 = vadd.f32 %v79, %v82
  %v85 = vadd.f32 %v80, %v82
  %v86 = vpack.c.bf16 %v84, %v84
  %v87 = vpack.c.bf16 %v85, %v85
  %88 = vst [vmem:[%s4] sm:$0xf] %v86
  %89 = vst [vmem:[%s4 + $0x4] sm:$0xf] %v87
  // Predicated region
  $region18: #{model_forward.15} parent=0 // pred_check
    _
  $region19: #{model_forward.15} parent=0 // pred_check_branch
    %91 = sbr.rel (0) target = $region21
  $region20: #{model_forward.15} parent=0 // pred_region
    _
  $region21: #{model_forward.15} parent=0 // pred_fallthru
    _
  // Predicated region
  $region22: #{model_forward.15} parent=0 // pred_check
    _
  $region23: #{model_forward.15} parent=0 // pred_check_branch
    %93 = sbr.rel (0) target = $region25
  $region24: #{model_forward.15} parent=0 // pred_region
    _
  $region25: #{model_forward.15} parent=0 // pred_fallthru
    _

// kernel: model_forward.16
$region0: #{model_forward.16}
  #allocation0 [shape = 'u32[]', space=smem, size = 0x4, offset = 0x4, fixed_abs, tag = 'smem constant byte address 0x4 - core index']
  #allocation1 [shape = 'u32[72,128]{1,0:T(1,128)}', space=vmem, size = 0x9000, scoped, tag = 'internal scratch']
  #allocation2 [shape = 'f32[16,256]{1,0:T(8,128)}', space=vmem, size = 0x4000, scoped, tag = 'scratch operand']
  %s0 = inlined_call_operand.vmem [shape: bf16[16,128], index: 0, kind: input, shape index: {}]
  %s1 = inlined_call_operand.hbm [shape: bf16[128,256], index: 1, kind: input, shape index: {}]
  %s2 = inlined_call_operand.vmem [shape: f32[1,256], index: 2, kind: input, shape index: {}]
  %s3 = inlined_call_operand.vmem [shape: bf16[16,256], index: 3, kind: output, shape index: {}]
  %s4 = sld [smem:[#allocation0]]
  $region34: #{model_forward.16} parent=0
    _
  %s6 = ssub.s32 1, %s4
  %s7 = scalar_select 0, %s6, %s4
  $region1: #{model_forward.16} parent=0
    #allocation3 [shape = 'u8[65536]{0}', space=vmem, size = 0x10000, scoped, tag = 'input window, operand 1, single buffered']
    #allocation4 [shape = 's32[1]{0}', space=sflag, size = 0x4, scoped, tag = 'scoped memory for model_forward.16']
    %8 = vsyncpa [#allocation4], 0
    // Predicated region
    $region2: #{model_forward.16} parent=1 // pred_check
      _
    $region3: #{model_forward.16} parent=1 // pred_check_branch
      %10 = sbr.rel (0) target = $region5
    $region4: #{model_forward.16} parent=1 // pred_region
      _
    $region5: #{model_forward.16} parent=1 // pred_fallthru
      _
    // Predicated region
    $region6: #{model_forward.16} parent=1 // pred_check
      _
    $region7: #{model_forward.16} parent=1 // pred_check_branch
      %12 = sbr.rel (0) target = $region9
    $region8: #{model_forward.16} parent=1 // pred_region
      %14 = vsyncadd [#allocation4], 0
      %s15 = sshll.u32 %s1, 4
      %s16 = int_to_ptr.hbm [resolvable:$true] %s15
      %s17 = sshll.u32 [#allocation3], 4
      %s18 = int_to_ptr.vmem [resolvable:$true] %s17
      %23 = dma.hbm_to_vmem [thread:$0]  %s16, 2048, %s18, [#allocation4], 128, 128, 8
    $region9: #{model_forward.16} parent=1 // pred_fallthru
      _
    // Predicated region
    $region10: #{model_forward.16} parent=1 // pred_check
      _
    $region11: #{model_forward.16} parent=1 // pred_check_branch
      %25 = sbr.rel (0) target = $region13
    $region12: #{model_forward.16} parent=1 // pred_region
      _
    $region13: #{model_forward.16} parent=1 // pred_fallthru
      _
    // Predicated region
    $region14: #{model_forward.16} parent=1 // pred_check
      _
    $region15: #{model_forward.16} parent=1 // pred_check_branch
      %27 = sbr.rel (0) target = $region17
    $region16: #{model_forward.16} parent=1 // pred_region
      %29 = dma.done [#allocation4], 2048
    $region17: #{model_forward.16} parent=1 // pred_fallthru
      _
    %p30 = scmp.eq.s32.totalorder 0, 0
    // Predicated region
    $region18: #{model_forward.16} parent=1 // pred_check
      %p31 = pneg %p30
    $region19: #{model_forward.16} parent=1 // pred_check_branch
      %33 = sbr.rel (%p31) target = $region21
    $region20: #{model_forward.16} parent=1 // pred_region
      %34 = vst [vmem:[#allocation2] sm:$0xff] 0.0
      %35 = vst [vmem:[#allocation2 + $0x8] sm:$0xff] 0.0
      %36 = vst [vmem:[#allocation2 + $0x10] sm:$0xff] 0.0
      %37 = vst [vmem:[#allocation2 + $0x18] sm:$0xff] 0.0
    $region21: #{model_forward.16} parent=1 // pred_fallthru
      _
    %v38 = vld [vmem:[#allocation2] sm:$0xff]
    %v39 = vld [vmem:[#allocation2 + $0x8] sm:$0xff]
    %v40 = vld [vmem:[#allocation2 + $0x10] sm:$0xff]
    %v41 = vld [vmem:[#allocation2 + $0x18] sm:$0xff]
    %v42 = vld [vmem:[%s0] sm:$0xf]
    %v43 = vld [vmem:[%s0 + $0x4] sm:$0xf]
    %v44 = vld [vmem:[#allocation3] sm:$0xff]
    %v45 = vld [vmem:[#allocation3 + $0x8] sm:$0xff]
    %v46 = vld [vmem:[#allocation3 + $0x10] sm:$0xff]
    %v47 = vld [vmem:[#allocation3 + $0x18] sm:$0xff]
    %v48 = vld [vmem:[#allocation3 + $0x20] sm:$0xff]
    %v49 = vld [vmem:[#allocation3 + $0x28] sm:$0xff]
    %v50 = vld [vmem:[#allocation3 + $0x30] sm:$0xff]
    %v51 = vld [vmem:[#allocation3 + $0x38] sm:$0xff]
    %v52 = vld [vmem:[#allocation3 + $0x40] sm:$0xff]
    %v53 = vld [vmem:[#allocation3 + $0x48] sm:$0xff]
    %v54 = vld [vmem:[#allocation3 + $0x50] sm:$0xff]
    %v55 = vld [vmem:[#allocation3 + $0x58] sm:$0xff]
    %v56 = vld [vmem:[#allocation3 + $0x60] sm:$0xff]
    %v57 = vld [vmem:[#allocation3 + $0x68] sm:$0xff]
    %v58 = vld [vmem:[#allocation3 + $0x70] sm:$0xff]
    %v59 = vld [vmem:[#allocation3 + $0x78] sm:$0xff]
    %v62 = vunpack.c.l.b16 %v42
    %v63 = vunpack.c.l.b16 %v43
    %v64 = vpack.c.b16 %v63, %v62
    %v82 = vunpack.c.l.b16 %v44
    %v83 = vunpack.c.h.b16 %v44
    %v84 = vunpack.c.l.b16 %v45
    %v85 = vunpack.c.h.b16 %v45
    %v86 = vunpack.c.l.b16 %v46
    %v87 = vunpack.c.h.b16 %v46
    %v88 = vunpack.c.l.b16 %v47
    %v89 = vunpack.c.h.b16 %v47
    %v90 = vunpack.c.l.b16 %v48
    %v91 = vunpack.c.h.b16 %v48
    %v92 = vunpack.c.l.b16 %v49
    %v93 = vunpack.c.h.b16 %v49
    %v94 = vunpack.c.l.b16 %v50
    %v95 = vunpack.c.h.b16 %v50
    %v96 = vunpack.c.l.b16 %v51
    %v97 = vunpack.c.h.b16 %v51
    %v98 = vunpack.c.l.b16 %v52
    %v99 = vunpack.c.h.b16 %v52
    %v100 = vunpack.c.l.b16 %v53
    %v101 = vunpack.c.h.b16 %v53
    %v102 = vunpack.c.l.b16 %v54
    %v103 = vunpack.c.h.b16 %v54
    %v104 = vunpack.c.l.b16 %v55
    %v105 = vunpack.c.h.b16 %v55
    %v106 = vunpack.c.l.b16 %v56
    %v107 = vunpack.c.h.b16 %v56
    %v108 = vunpack.c.l.b16 %v57
    %v109 = vunpack.c.h.b16 %v57
    %v110 = vunpack.c.l.b16 %v58
    %v111 = vunpack.c.h.b16 %v58
    %v112 = vunpack.c.l.b16 %v59
    %v113 = vunpack.c.h.b16 %v59
    %v114 = vpack.c.b16 %v84, %v82
    %v115 = vpack.c.b16 %v85, %v83
    %v116 = vpack.c.b16 %v88, %v86
    %v117 = vpack.c.b16 %v89, %v87
    %v118 = vpack.c.b16 %v92, %v90
    %v119 = vpack.c.b16 %v93, %v91
    %v120 = vpack.c.b16 %v96, %v94
    %v121 = vpack.c.b16 %v97, %v95
    %v122 = vpack.c.b16 %v100, %v98
    %v123 = vpack.c.b16 %v101, %v99
    %v124 = vpack.c.b16 %v104, %v102
    %v125 = vpack.c.b16 %v105, %v103
    %v126 = vpack.c.b16 %v108, %v106
    %v127 = vpack.c.b16 %v109, %v107
    %v128 = vpack.c.b16 %v112, %v110
    %v129 = vpack.c.b16 %v113, %v111
    %146 = vmatpush.bf16.msra.mxu0 %v128
    %147 = vmatpush.bf16.msra.mxu0 %v126
    %148 = vmatpush.bf16.msra.mxu0 %v124
    %149 = vmatpush.bf16.msra.mxu0 %v122
    %150 = vmatpush.bf16.msra.mxu0 %v120
    %151 = vmatpush.bf16.msra.mxu0 %v118
    %152 = vmatpush.bf16.msra.mxu0 %v116
    %153 = vmatpush.bf16.msra.mxu0 %v114
    %154 = vmatmul.bf16.gmra.mxu0 %v64
    %v155 = vpop.f32.mrf.mxu0
    %v156 = vadd.f32 0.0, %v155
    %v157 = vpop.f32.mrf.mxu0
    %v158 = vadd.f32 0.0, %v157
    %159 = vdwg.mxu0
    %160 = vmatpush.bf16.msra.mxu0 %v129
    %161 = vmatpush.bf16.msra.mxu0 %v127
    %162 = vmatpush.bf16.msra.mxu0 %v125
    %163 = vmatpush.bf16.msra.mxu0 %v123
    %164 = vmatpush.bf16.msra.mxu0 %v121
    %165 = vmatpush.bf16.msra.mxu0 %v119
    %166 = vmatpush.bf16.msra.mxu0 %v117
    %167 = vmatpush.bf16.msra.mxu0 %v115
    %168 = vmatmul.bf16.gmra.mxu0 %v64
    %v169 = vpop.f32.mrf.mxu0
    %v170 = vadd.f32 0.0, %v169
    %v171 = vpop.f32.mrf.mxu0
    %v172 = vadd.f32 0.0, %v171
    %173 = vdwg.mxu0
    %v174 = vadd.f32 %v38, %v156
    %v175 = vadd.f32 %v39, %v170
    %v176 = vadd.f32 %v40, %v158
    %v177 = vadd.f32 %v41, %v172
    %178 = vst [vmem:[#allocation2] sm:$0xff] %v174
    %179 = vst [vmem:[#allocation2 + $0x8] sm:$0xff] %v175
    %180 = vst [vmem:[#allocation2 + $0x10] sm:$0xff] %v176
    %181 = vst [vmem:[#allocation2 + $0x18] sm:$0xff] %v177
    // Predicated region
    $region22: #{model_forward.16} parent=1 // pred_check
      %p182 = pneg %p30
    $region23: #{model_forward.16} parent=1 // pred_check_branch
      %184 = sbr.rel (%p182) target = $region25
    $region24: #{model_forward.16} parent=1 // pred_region
      %v185 = vld [vmem:[#allocation2] sm:$0xff]
      %v186 = vld [vmem:[#allocation2 + $0x8] sm:$0xff]
      %v187 = vld [vmem:[#allocation2 + $0x10] sm:$0xff]
      %v188 = vld [vmem:[#allocation2 + $0x18] sm:$0xff]
      %v189 = vld [vmem:[%s2] sm:$0x3]
      %v191 = vperm.slane %v189, 0
      %v192 = vperm.slane %v189, 1
      %v195 = vadd.f32 %v185, %v191
      %v196 = vadd.f32 %v186, %v192
      %v197 = vadd.f32 %v187, %v191
      %v198 = vadd.f32 %v188, %v192
      %v199 = vmul.f32 %v195, 0.5
      %v200 = vmul.f32 %v196, 0.5
      %v201 = vmul.f32 %v197, 0.5
      %v202 = vmul.f32 %v198, 0.5
      %v203 = vmul.f32 %v195, 0.044715
      %v204 = vmul.f32 %v196, 0.044715
      %v205 = vmul.f32 %v197, 0.044715
      %v206 = vmul.f32 %v198, 0.044715
      %v207 = vmul.f32 %v203, %v195
      %v208 = vmul.f32 %v204, %v196
      %v209 = vmul.f32 %v205, %v197
      %v210 = vmul.f32 %v206, %v198
      %v211 = vmul.f32 %v207, %v195
      %v212 = vmul.f32 %v208, %v196
      %v213 = vmul.f32 %v209, %v197
      %v214 = vmul.f32 %v210, %v198
      %v215 = vadd.f32 %v195, %v211
      %v216 = vadd.f32 %v196, %v212
      %v217 = vadd.f32 %v197, %v213
      %v218 = vadd.f32 %v198, %v214
      %v219 = vmul.f32 %v215, 0.7978846
      %v220 = vmul.f32 %v216, 0.7978846
      %v221 = vmul.f32 %v217, 0.7978846
      %v222 = vmul.f32 %v218, 0.7978846
      %v223 = vtanh.pop %v219
      %v224 = vtanh.pop %v220
      %v225 = vtanh.pop %v221
      %v226 = vtanh.pop %v222
      %v227 = vadd.f32 %v223, 1.0
      %v228 = vadd.f32 %v224, 1.0
      %v229 = vadd.f32 %v225, 1.0
      %v230 = vadd.f32 %v226, 1.0
      %v231 = vmul.f32 %v199, %v227
      %v232 = vmul.f32 %v200, %v228
      %v233 = vmul.f32 %v201, %v229
      %v234 = vmul.f32 %v202, %v230
      %v235 = vpack.c.bf16 %v232, %v231
      %v236 = vpack.c.bf16 %v234, %v233
      %237 = vst [vmem:[%s3] sm:$0xff] %v235
      %238 = vst [vmem:[%s3 + $0x8] sm:$0xff] %v236
    $region25: #{model_forward.16} parent=1 // pred_fallthru
      _
    // Predicated region
    $region26: #{model_forward.16} parent=1 // pred_check
      _
    $region27: #{model_forward.16} parent=1 // pred_check_branch
      %240 = sbr.rel (0) target = $region29
    $region28: #{model_forward.16} parent=1 // pred_region
      _
    $region29: #{model_forward.16} parent=1 // pred_fallthru
      _
    // Predicated region
    $region30: #{model_forward.16} parent=1 // pred_check
      _
    $region31: #{model_forward.16} parent=1 // pred_check_branch
      %242 = sbr.rel (0) target = $region33
    $region32: #{model_forward.16} parent=1 // pred_region
      _
    $region33: #{model_forward.16} parent=1 // pred_fallthru
      _
    %243 = vsyncpa [#allocation4], 1

// kernel: model_forward.17
$region0: #{model_forward.17}
  #allocation0 [shape = 'u32[]', space=smem, size = 0x4, offset = 0x4, fixed_abs, tag = 'smem constant byte address 0x4 - core index']
  #allocation1 [shape = 'u32[72,128]{1,0:T(1,128)}', space=vmem, size = 0x9000, scoped, tag = 'internal scratch']
  #allocation2 [shape = 'f32[16,128]{1,0:T(8,128)}', space=vmem, size = 0x2000, scoped, tag = 'scratch operand']
  %s0 = inlined_call_operand.vmem [shape: bf16[16,256], index: 0, kind: input, shape index: {}]
  %s1 = inlined_call_operand.hbm [shape: bf16[256,128], index: 1, kind: input, shape index: {}]
  %s2 = inlined_call_operand.vmem [shape: f32[1,128], index: 2, kind: input, shape index: {}]
  %s3 = inlined_call_operand.vmem [shape: bf16[16,128], index: 3, kind: output, shape index: {}]
  %s4 = sld [smem:[#allocation0]]
  $region34: #{model_forward.17} parent=0
    _
  %s6 = ssub.s32 1, %s4
  %s7 = scalar_select 0, %s6, %s4
  $region1: #{model_forward.17} parent=0
    #allocation3 [shape = 'u8[65536]{0}', space=vmem, size = 0x10000, scoped, tag = 'input window, operand 1, single buffered']
    #allocation4 [shape = 's32[1]{0}', space=sflag, size = 0x4, scoped, tag = 'scoped memory for model_forward.17']
    %8 = vsyncpa [#allocation4], 0
    // Predicated region
    $region2: #{model_forward.17} parent=1 // pred_check
      _
    $region3: #{model_forward.17} parent=1 // pred_check_branch
      %10 = sbr.rel (0) target = $region5
    $region4: #{model_forward.17} parent=1 // pred_region
      _
    $region5: #{model_forward.17} parent=1 // pred_fallthru
      _
    // Predicated region
    $region6: #{model_forward.17} parent=1 // pred_check
      _
    $region7: #{model_forward.17} parent=1 // pred_check_branch
      %12 = sbr.rel (0) target = $region9
    $region8: #{model_forward.17} parent=1 // pred_region
      %14 = vsyncadd [#allocation4], 0
      %s15 = sshll.u32 %s1, 4
      %s16 = int_to_ptr.hbm [resolvable:$true] %s15
      %s17 = sshll.u32 [#allocation3], 4
      %s18 = int_to_ptr.vmem [resolvable:$true] %s17
      %23 = dma.hbm_to_vmem [thread:$0]  %s16, 2048, %s18, [#allocation4], 64, 64, 4
    $region9: #{model_forward.17} parent=1 // pred_fallthru
      _
    // Predicated region
    $region10: #{model_forward.17} parent=1 // pred_check
      _
    $region11: #{model_forward.17} parent=1 // pred_check_branch
      %25 = sbr.rel (0) target = $region13
    $region12: #{model_forward.17} parent=1 // pred_region
      _
    $region13: #{model_forward.17} parent=1 // pred_fallthru
      _
    // Predicated region
    $region14: #{model_forward.17} parent=1 // pred_check
      _
    $region15: #{model_forward.17} parent=1 // pred_check_branch
      %27 = sbr.rel (0) target = $region17
    $region16: #{model_forward.17} parent=1 // pred_region
      %29 = dma.done [#allocation4], 2048
    $region17: #{model_forward.17} parent=1 // pred_fallthru
      _
    %p30 = scmp.eq.s32.totalorder 0, 0
    // Predicated region
    $region18: #{model_forward.17} parent=1 // pred_check
      %p31 = pneg %p30
    $region19: #{model_forward.17} parent=1 // pred_check_branch
      %33 = sbr.rel (%p31) target = $region21
    $region20: #{model_forward.17} parent=1 // pred_region
      %34 = vst [vmem:[#allocation2] sm:$0xff] 0.0
      %35 = vst [vmem:[#allocation2 + $0x8] sm:$0xff] 0.0
    $region21: #{model_forward.17} parent=1 // pred_fallthru
      _
    %v36 = vld [vmem:[#allocation2] sm:$0xff]
    %v37 = vld [vmem:[#allocation2 + $0x8] sm:$0xff]
    %v38 = vld [vmem:[%s0] sm:$0xff]
    %v39 = vld [vmem:[%s0 + $0x8] sm:$0xff]
    %v40 = vld [vmem:[#allocation3] sm:$0xf]
    %v41 = vld [vmem:[#allocation3 + $0x4] sm:$0xf]
    %v42 = vld [vmem:[#allocation3 + $0x8] sm:$0xf]
    %v43 = vld [vmem:[#allocation3 + $0xc] sm:$0xf]
    %v44 = vld [vmem:[#allocation3 + $0x10] sm:$0xf]
    %v45 = vld [vmem:[#allocation3 + $0x14] sm:$0xf]
    %v46 = vld [vmem:[#allocation3 + $0x18] sm:$0xf]
    %v47 = vld [vmem:[#allocation3 + $0x1c] sm:$0xf]
    %v48 = vld [vmem:[#allocation3 + $0x20] sm:$0xf]
    %v49 = vld [vmem:[#allocation3 + $0x24] sm:$0xf]
    %v50 = vld [vmem:[#allocation3 + $0x28] sm:$0xf]
    %v51 = vld [vmem:[#allocation3 + $0x2c] sm:$0xf]
    %v52 = vld [vmem:[#allocation3 + $0x30] sm:$0xf]
    %v53 = vld [vmem:[#allocation3 + $0x34] sm:$0xf]
    %v54 = vld [vmem:[#allocation3 + $0x38] sm:$0xf]
    %v55 = vld [vmem:[#allocation3 + $0x3c] sm:$0xf]
    %v56 = vld [vmem:[#allocation3 + $0x40] sm:$0xf]
    %v57 = vld [vmem:[#allocation3 + $0x44] sm:$0xf]
    %v58 = vld [vmem:[#allocation3 + $0x48] sm:$0xf]
    %v59 = vld [vmem:[#allocation3 + $0x4c] sm:$0xf]
    %v60 = vld [vmem:[#allocation3 + $0x50] sm:$0xf]
    %v61 = vld [vmem:[#allocation3 + $0x54] sm:$0xf]
    %v62 = vld [vmem:[#allocation3 + $0x58] sm:$0xf]
    %v63 = vld [vmem:[#allocation3 + $0x5c] sm:$0xf]
    %v64 = vld [vmem:[#allocation3 + $0x60] sm:$0xf]
    %v65 = vld [vmem:[#allocation3 + $0x64] sm:$0xf]
    %v66 = vld [vmem:[#allocation3 + $0x68] sm:$0xf]
    %v67 = vld [vmem:[#allocation3 + $0x6c] sm:$0xf]
    %v68 = vld [vmem:[#allocation3 + $0x70] sm:$0xf]
    %v69 = vld [vmem:[#allocation3 + $0x74] sm:$0xf]
    %v70 = vld [vmem:[#allocation3 + $0x78] sm:$0xf]
    %v71 = vld [vmem:[#allocation3 + $0x7c] sm:$0xf]
    %v74 = vunpack.c.l.b16 %v38
    %v75 = vunpack.c.h.b16 %v38
    %v76 = vunpack.c.l.b16 %v39
    %v77 = vunpack.c.h.b16 %v39
    %v78 = vpack.c.b16 %v76, %v74
    %v79 = vpack.c.b16 %v77, %v75
    %v114 = vunpack.c.l.b16 %v40
    %v115 = vunpack.c.l.b16 %v41
    %v116 = vunpack.c.l.b16 %v42
    %v117 = vunpack.c.l.b16 %v43
    %v118 = vunpack.c.l.b16 %v44
    %v119 = vunpack.c.l.b16 %v45
    %v120 = vunpack.c.l.b16 %v46
    %v121 = vunpack.c.l.b16 %v47
    %v122 = vunpack.c.l.b16 %v48
    %v123 = vunpack.c.l.b16 %v49
    %v124 = vunpack.c.l.b16 %v50
    %v125 = vunpack.c.l.b16 %v51
    %v126 = vunpack.c.l.b16 %v52
    %v127 = vunpack.c.l.b16 %v53
    %v128 = vunpack.c.l.b16 %v54
    %v129 = vunpack.c.l.b16 %v55
    %v130 = vunpack.c.l.b16 %v56
    %v131 = vunpack.c.l.b16 %v57
    %v132 = vunpack.c.l.b16 %v58
    %v133 = vunpack.c.l.b16 %v59
    %v134 = vunpack.c.l.b16 %v60
    %v135 = vunpack.c.l.b16 %v61
    %v136 = vunpack.c.l.b16 %v62
    %v137 = vunpack.c.l.b16 %v63
    %v138 = vunpack.c.l.b16 %v64
    %v139 = vunpack.c.l.b16 %v65
    %v140 = vunpack.c.l.b16 %v66
    %v141 = vunpack.c.l.b16 %v67
    %v142 = vunpack.c.l.b16 %v68
    %v143 = vunpack.c.l.b16 %v69
    %v144 = vunpack.c.l.b16 %v70
    %v145 = vunpack.c.l.b16 %v71
    %v146 = vpack.c.b16 %v115, %v114
    %v147 = vpack.c.b16 %v117, %v116
    %v148 = vpack.c.b16 %v119, %v118
    %v149 = vpack.c.b16 %v121, %v120
    %v150 = vpack.c.b16 %v123, %v122
    %v151 = vpack.c.b16 %v125, %v124
    %v152 = vpack.c.b16 %v127, %v126
    %v153 = vpack.c.b16 %v129, %v128
    %v154 = vpack.c.b16 %v131, %v130
    %v155 = vpack.c.b16 %v133, %v132
    %v156 = vpack.c.b16 %v135, %v134
    %v157 = vpack.c.b16 %v137, %v136
    %v158 = vpack.c.b16 %v139, %v138
    %v159 = vpack.c.b16 %v141, %v140
    %v160 = vpack.c.b16 %v143, %v142
    %v161 = vpack.c.b16 %v145, %v144
    %178 = vmatpush.bf16.msra.mxu0 %v153
    %179 = vmatpush.bf16.msra.mxu0 %v152
    %180 = vmatpush.bf16.msra.mxu0 %v151
    %181 = vmatpush.bf16.msra.mxu0 %v150
    %182 = vmatpush.bf16.msra.mxu0 %v149
    %183 = vmatpush.bf16.msra.mxu0 %v148
    %184 = vmatpush.bf16.msra.mxu0 %v147
    %185 = vmatpush.bf16.msra.mxu0 %v146
    %186 = vmatmul.bf16.gmra.mxu0 %v78
    %v187 = vpop.f32.mrf.mxu0
    %v188 = vadd.f32 0.0, %v187
    %v189 = vpop.f32.mrf.mxu0
    %v190 = vadd.f32 0.0, %v189
    %191 = vdwg.mxu0
    %192 = vmatpush.bf16.msra.mxu0 %v161
    %193 = vmatpush.bf16.msra.mxu0 %v160
    %194 = vmatpush.bf16.msra.mxu0 %v159
    %195 = vmatpush.bf16.msra.mxu0 %v158
    %196 = vmatpush.bf16.msra.mxu0 %v157
    %197 = vmatpush.bf16.msra.mxu0 %v156
    %198 = vmatpush.bf16.msra.mxu0 %v155
    %199 = vmatpush.bf16.msra.mxu0 %v154
    %200 = vmatmul.bf16.gmra.mxu0 %v79
    %v201 = vpop.f32.mrf.mxu0
    %v202 = vadd.f32 %v188, %v201
    %v203 = vpop.f32.mrf.mxu0
    %v204 = vadd.f32 %v190, %v203
    %205 = vdwg.mxu0
    %v206 = vadd.f32 %v36, %v202
    %v207 = vadd.f32 %v37, %v204
    %208 = vst [vmem:[#allocation2] sm:$0xff] %v206
    %209 = vst [vmem:[#allocation2 + $0x8] sm:$0xff] %v207
    // Predicated region
    $region22: #{model_forward.17} parent=1 // pred_check
      %p210 = pneg %p30
    $region23: #{model_forward.17} parent=1 // pred_check_branch
      %212 = sbr.rel (%p210) target = $region25
    $region24: #{model_forward.17} parent=1 // pred_region
      %v213 = vld [vmem:[#allocation2] sm:$0xff]
      %v214 = vld [vmem:[#allocation2 + $0x8] sm:$0xff]
      %v215 = vld [vmem:[%s2] sm:$0x1]
      %v217 = vperm.slane %v215, 0
      %v219 = vadd.f32 %v213, %v217
      %v220 = vadd.f32 %v214, %v217
      %v221 = vpack.c.bf16 %v219, %v219
      %v222 = vpack.c.bf16 %v220, %v220
      %223 = vst [vmem:[%s3] sm:$0xf] %v221
      %224 = vst [vmem:[%s3 + $0x4] sm:$0xf] %v222
    $region25: #{model_forward.17} parent=1 // pred_fallthru
      _
    // Predicated region
    $region26: #{model_forward.17} parent=1 // pred_check
      _
    $region27: #{model_forward.17} parent=1 // pred_check_branch
      %226 = sbr.rel (0) target = $region29
    $region28: #{model_forward.17} parent=1 // pred_region
      _
    $region29: #{model_forward.17} parent=1 // pred_fallthru
      _
    // Predicated region
    $region30: #{model_forward.17} parent=1 // pred_check
      _
    $region31: #{model_forward.17} parent=1 // pred_check_branch
      %228 = sbr.rel (0) target = $region33
    $region32: #{model_forward.17} parent=1 // pred_region
      _
    $region33: #{model_forward.17} parent=1 // pred_fallthru
      _
    %229 = vsyncpa [#allocation4], 1

// kernel: model_forward.20
$region0: #{model_forward.20}
  #allocation0 [shape = 'u32[]', space=smem, size = 0x4, offset = 0x4, fixed_abs, tag = 'smem constant byte address 0x4 - core index']
  #allocation1 [shape = 'u32[72,128]{1,0:T(1,128)}', space=vmem, size = 0x9000, scoped, tag = 'internal scratch']
  %s0 = inlined_call_operand.vmem [shape: bf16[16,128], index: 0, kind: input, shape index: {}]
  %s1 = inlined_call_operand.vmem [shape: f32[1,128], index: 1, kind: input, shape index: {}]
  %s2 = inlined_call_operand.vmem [shape: f32[1,128], index: 2, kind: input, shape index: {}]
  %s3 = inlined_call_operand.vmem [shape: bf16[16,128], index: 3, kind: output, shape index: {}]
  %s4 = sld [smem:[#allocation0]]
  $region22: #{model_forward.20} parent=0
    _
  %s6 = ssub.s32 1, %s4
  %s7 = scalar_select 0, %s6, %s4
  // Predicated region
  $region2: #{model_forward.20} parent=0 // pred_check
    _
  $region3: #{model_forward.20} parent=0 // pred_check_branch
    %9 = sbr.rel (0) target = $region5
  $region4: #{model_forward.20} parent=0 // pred_region
    _
  $region5: #{model_forward.20} parent=0 // pred_fallthru
    _
  // Predicated region
  $region6: #{model_forward.20} parent=0 // pred_check
    _
  $region7: #{model_forward.20} parent=0 // pred_check_branch
    %11 = sbr.rel (0) target = $region9
  $region8: #{model_forward.20} parent=0 // pred_region
    _
  $region9: #{model_forward.20} parent=0 // pred_fallthru
    _
  // Predicated region
  $region10: #{model_forward.20} parent=0 // pred_check
    _
  $region11: #{model_forward.20} parent=0 // pred_check_branch
    %13 = sbr.rel (0) target = $region13
  $region12: #{model_forward.20} parent=0 // pred_region
    _
  $region13: #{model_forward.20} parent=0 // pred_fallthru
    _
  %v14 = vld [vmem:[%s0] sm:$0xf]
  %v15 = vld [vmem:[%s0 + $0x4] sm:$0xf]
  %v16 = vunpack.c.l.bf16 %v14
  %v17 = vunpack.c.l.bf16 %v15
  %v18 = vld [vmem:[%s1] sm:$0x1]
  %v19 = vld [vmem:[%s2] sm:$0x1]
  %20 = vadd.xlane.f32.xlu0 %v16
  %v21 = vpop.xlane.xlu0 %20
  %22 = vadd.xlane.f32.xlu0 %v17
  %v23 = vpop.xlane.xlu0 %22
  %v24 = vrcp.pop 128.0
  %v25 = vmul.f32 128.0, %v24
  %v26 = vsub.f32 1.0, %v25
  %v27 = vmul.f32 %v24, %v26
  %v28 = vadd.f32 %v24, %v27
  %vm29 = vweird.f32 %v24
  %v30 = vsel %vm29, %v24, %v28
  %v31 = vmul.f32 %v21, %v30
  %v32 = vmul.f32 %v23, %v30
  %v33 = vsub.f32 %v16, %v31
  %v34 = vsub.f32 %v17, %v32
  %v35 = vmul.f32 %v33, %v33
  %v36 = vmul.f32 %v34, %v34
  %37 = vadd.xlane.f32.xlu0 %v35
  %v38 = vpop.xlane.xlu0 %37
  %39 = vadd.xlane.f32.xlu0 %v36
  %v40 = vpop.xlane.xlu0 %39
  %v41 = vmul.f32 %v38, %v30
  %v42 = vmul.f32 %v40, %v30
  %v43 = vadd.f32 %v41, 1e-06
  %v44 = vadd.f32 %v42, 1e-06
  %v45 = vrsqrt.pop %v43
  %v46 = vmul.f32 %v45, %v43
  %v47 = vmul.f32 %v46, %v45
  %v48 = vmul.f32 0.5, %v47
  %v49 = vsub.f32 1.5, %v48
  %v50 = vmul.f32 %v45, %v49
  %vm51 = vweird.f32 %v43
  %vm52 = vweird.f32 %v45
  %vm53 = vmor %vm51, %vm52
  %v54 = vsel %vm53, %v45, %v50
  %v55 = vrsqrt.pop %v44
  %v56 = vmul.f32 %v55, %v44
  %v57 = vmul.f32 %v56, %v55
  %v58 = vmul.f32 0.5, %v57
  %v59 = vsub.f32 1.5, %v58
  %v60 = vmul.f32 %v55, %v59
  %vm61 = vweird.f32 %v44
  %vm62 = vweird.f32 %v55
  %vm63 = vmor %vm61, %vm62
  %v64 = vsel %vm63, %v55, %v60
  %v65 = vmul.f32 %v33, %v54
  %v66 = vmul.f32 %v34, %v64
  %v68 = vperm.slane %v18, 0
  %v70 = vmul.f32 %v65, %v68
  %v71 = vmul.f32 %v66, %v68
  %v73 = vperm.slane %v19, 0
  %v75 = vadd.f32 %v70, %v73
  %v76 = vadd.f32 %v71, %v73
  %v77 = vpack.c.bf16 %v75, %v75
  %v78 = vpack.c.bf16 %v76, %v76
  %79 = vst [vmem:[%s3] sm:$0xf] %v77
  %80 = vst [vmem:[%s3 + $0x4] sm:$0xf] %v78
  // Predicated region
  $region14: #{model_forward.20} parent=0 // pred_check
    _
  $region15: #{model_forward.20} parent=0 // pred_check_branch
    %82 = sbr.rel (0) target = $region17
  $region16: #{model_forward.20} parent=0 // pred_region
    _
  $region17: #{model_forward.20} parent=0 // pred_fallthru
    _
  // Predicated region
  $region18: #{model_forward.20} parent=0 // pred_check
    _
  $region19: #{model_forward.20} parent=0 // pred_check_branch
    %84 = sbr.rel (0) target = $region21
  $region20: #{model_forward.20} parent=0 // pred_region
    _
  $region21: #{model_forward.20} parent=0 // pred_fallthru
    _

// kernel: model_forward.19
$region0: #{model_forward.19}
  #allocation0 [shape = 'u32[]', space=smem, size = 0x4, offset = 0x4, fixed_abs, tag = 'smem constant byte address 0x4 - core index']
  #allocation1 [shape = 'u32[72,128]{1,0:T(1,128)}', space=vmem, size = 0x9000, scoped, tag = 'internal scratch']
  #allocation2 [shape = 'f32[16,128]{1,0:T(8,128)}', space=vmem, size = 0x2000, scoped, tag = 'scratch operand']
  %s0 = inlined_call_operand.vmem [shape: bf16[16,128], index: 0, kind: input, shape index: {}]
  %s1 = inlined_call_operand.hbm [shape: bf16[128,128], index: 1, kind: input, shape index: {}]
  %s2 = inlined_call_operand.vmem [shape: f32[1,128], index: 2, kind: input, shape index: {}]
  %s3 = inlined_call_operand.vmem [shape: bf16[16,128], index: 3, kind: output, shape index: {}]
  %s4 = sld [smem:[#allocation0]]
  $region34: #{model_forward.19} parent=0
    _
  %s6 = ssub.s32 1, %s4
  %s7 = scalar_select 0, %s6, %s4
  $region1: #{model_forward.19} parent=0
    #allocation3 [shape = 'u8[32768]{0}', space=vmem, size = 0x8000, scoped, tag = 'input window, operand 1, single buffered']
    #allocation4 [shape = 's32[1]{0}', space=sflag, size = 0x4, scoped, tag = 'scoped memory for model_forward.19']
    %8 = vsyncpa [#allocation4], 0
    // Predicated region
    $region2: #{model_forward.19} parent=1 // pred_check
      _
    $region3: #{model_forward.19} parent=1 // pred_check_branch
      %10 = sbr.rel (0) target = $region5
    $region4: #{model_forward.19} parent=1 // pred_region
      _
    $region5: #{model_forward.19} parent=1 // pred_fallthru
      _
    // Predicated region
    $region6: #{model_forward.19} parent=1 // pred_check
      _
    $region7: #{model_forward.19} parent=1 // pred_check_branch
      %12 = sbr.rel (0) target = $region9
    $region8: #{model_forward.19} parent=1 // pred_region
      %14 = vsyncadd [#allocation4], 0
      %s15 = sshll.u32 %s1, 4
      %s16 = int_to_ptr.hbm [resolvable:$true] %s15
      %s17 = sshll.u32 [#allocation3], 4
      %s18 = int_to_ptr.vmem [resolvable:$true] %s17
      %23 = dma.hbm_to_vmem [thread:$0]  %s16, 1024, %s18, [#allocation4], 64, 64, 4
    $region9: #{model_forward.19} parent=1 // pred_fallthru
      _
    // Predicated region
    $region10: #{model_forward.19} parent=1 // pred_check
      _
    $region11: #{model_forward.19} parent=1 // pred_check_branch
      %25 = sbr.rel (0) target = $region13
    $region12: #{model_forward.19} parent=1 // pred_region
      _
    $region13: #{model_forward.19} parent=1 // pred_fallthru
      _
    // Predicated region
    $region14: #{model_forward.19} parent=1 // pred_check
      _
    $region15: #{model_forward.19} parent=1 // pred_check_branch
      %27 = sbr.rel (0) target = $region17
    $region16: #{model_forward.19} parent=1 // pred_region
      %29 = dma.done [#allocation4], 1024
    $region17: #{model_forward.19} parent=1 // pred_fallthru
      _
    %p30 = scmp.eq.s32.totalorder 0, 0
    // Predicated region
    $region18: #{model_forward.19} parent=1 // pred_check
      %p31 = pneg %p30
    $region19: #{model_forward.19} parent=1 // pred_check_branch
      %33 = sbr.rel (%p31) target = $region21
    $region20: #{model_forward.19} parent=1 // pred_region
      %34 = vst [vmem:[#allocation2] sm:$0xff] 0.0
      %35 = vst [vmem:[#allocation2 + $0x8] sm:$0xff] 0.0
    $region21: #{model_forward.19} parent=1 // pred_fallthru
      _
    %v36 = vld [vmem:[#allocation2] sm:$0xff]
    %v37 = vld [vmem:[#allocation2 + $0x8] sm:$0xff]
    %v38 = vld [vmem:[%s0] sm:$0xf]
    %v39 = vld [vmem:[%s0 + $0x4] sm:$0xf]
    %v40 = vld [vmem:[#allocation3] sm:$0xf]
    %v41 = vld [vmem:[#allocation3 + $0x4] sm:$0xf]
    %v42 = vld [vmem:[#allocation3 + $0x8] sm:$0xf]
    %v43 = vld [vmem:[#allocation3 + $0xc] sm:$0xf]
    %v44 = vld [vmem:[#allocation3 + $0x10] sm:$0xf]
    %v45 = vld [vmem:[#allocation3 + $0x14] sm:$0xf]
    %v46 = vld [vmem:[#allocation3 + $0x18] sm:$0xf]
    %v47 = vld [vmem:[#allocation3 + $0x1c] sm:$0xf]
    %v48 = vld [vmem:[#allocation3 + $0x20] sm:$0xf]
    %v49 = vld [vmem:[#allocation3 + $0x24] sm:$0xf]
    %v50 = vld [vmem:[#allocation3 + $0x28] sm:$0xf]
    %v51 = vld [vmem:[#allocation3 + $0x2c] sm:$0xf]
    %v52 = vld [vmem:[#allocation3 + $0x30] sm:$0xf]
    %v53 = vld [vmem:[#allocation3 + $0x34] sm:$0xf]
    %v54 = vld [vmem:[#allocation3 + $0x38] sm:$0xf]
    %v55 = vld [vmem:[#allocation3 + $0x3c] sm:$0xf]
    %v58 = vunpack.c.l.b16 %v38
    %v59 = vunpack.c.l.b16 %v39
    %v60 = vpack.c.b16 %v59, %v58
    %v78 = vunpack.c.l.b16 %v40
    %v79 = vunpack.c.l.b16 %v41
    %v80 = vunpack.c.l.b16 %v42
    %v81 = vunpack.c.l.b16 %v43
    %v82 = vunpack.c.l.b16 %v44
    %v83 = vunpack.c.l.b16 %v45
    %v84 = vunpack.c.l.b16 %v46
    %v85 = vunpack.c.l.b16 %v47
    %v86 = vunpack.c.l.b16 %v48
    %v87 = vunpack.c.l.b16 %v49
    %v88 = vunpack.c.l.b16 %v50
    %v89 = vunpack.c.l.b16 %v51
    %v90 = vunpack.c.l.b16 %v52
    %v91 = vunpack.c.l.b16 %v53
    %v92 = vunpack.c.l.b16 %v54
    %v93 = vunpack.c.l.b16 %v55
    %v94 = vpack.c.b16 %v79, %v78
    %v95 = vpack.c.b16 %v81, %v80
    %v96 = vpack.c.b16 %v83, %v82
    %v97 = vpack.c.b16 %v85, %v84
    %v98 = vpack.c.b16 %v87, %v86
    %v99 = vpack.c.b16 %v89, %v88
    %v100 = vpack.c.b16 %v91, %v90
    %v101 = vpack.c.b16 %v93, %v92
    %110 = vmatpush.bf16.msra.mxu0 %v101
    %111 = vmatpush.bf16.msra.mxu0 %v100
    %112 = vmatpush.bf16.msra.mxu0 %v99
    %113 = vmatpush.bf16.msra.mxu0 %v98
    %114 = vmatpush.bf16.msra.mxu0 %v97
    %115 = vmatpush.bf16.msra.mxu0 %v96
    %116 = vmatpush.bf16.msra.mxu0 %v95
    %117 = vmatpush.bf16.msra.mxu0 %v94
    %118 = vmatmul.bf16.gmra.mxu0 %v60
    %v119 = vpop.f32.mrf.mxu0
    %v120 = vadd.f32 0.0, %v119
    %v121 = vpop.f32.mrf.mxu0
    %v122 = vadd.f32 0.0, %v121
    %123 = vdwg.mxu0
    %v124 = vadd.f32 %v36, %v120
    %v125 = vadd.f32 %v37, %v122
    %126 = vst [vmem:[#allocation2] sm:$0xff] %v124
    %127 = vst [vmem:[#allocation2 + $0x8] sm:$0xff] %v125
    // Predicated region
    $region22: #{model_forward.19} parent=1 // pred_check
      %p128 = pneg %p30
    $region23: #{model_forward.19} parent=1 // pred_check_branch
      %130 = sbr.rel (%p128) target = $region25
    $region24: #{model_forward.19} parent=1 // pred_region
      %v131 = vld [vmem:[#allocation2] sm:$0xff]
      %v132 = vld [vmem:[#allocation2 + $0x8] sm:$0xff]
      %v133 = vld [vmem:[%s2] sm:$0x1]
      %v135 = vperm.slane %v133, 0
      %v137 = vadd.f32 %v131, %v135
      %v138 = vadd.f32 %v132, %v135
      %v139 = vmul.f32 %v137, 0.5
      %v140 = vmul.f32 %v138, 0.5
      %v141 = vmul.f32 %v137, 0.044715
      %v142 = vmul.f32 %v138, 0.044715
      %v143 = vmul.f32 %v141, %v137
      %v144 = vmul.f32 %v142, %v138
      %v145 = vmul.f32 %v143, %v137
      %v146 = vmul.f32 %v144, %v138
      %v147 = vadd.f32 %v137, %v145
      %v148 = vadd.f32 %v138, %v146
      %v149 = vmul.f32 %v147, 0.7978846
      %v150 = vmul.f32 %v148, 0.7978846
      %v151 = vtanh.pop %v149
      %v152 = vtanh.pop %v150
      %v153 = vadd.f32 %v151, 1.0
      %v154 = vadd.f32 %v152, 1.0
      %v155 = vmul.f32 %v139, %v153
      %v156 = vmul.f32 %v140, %v154
      %v157 = vpack.c.bf16 %v155, %v155
      %v158 = vpack.c.bf16 %v156, %v156
      %159 = vst [vmem:[%s3] sm:$0xf] %v157
      %160 = vst [vmem:[%s3 + $0x4] sm:$0xf] %v158
    $region25: #{model_forward.19} parent=1 // pred_fallthru
      _
    // Predicated region
    $region26: #{model_forward.19} parent=1 // pred_check
      _
    $region27: #{model_forward.19} parent=1 // pred_check_branch
      %162 = sbr.rel (0) target = $region29
    $region28: #{model_forward.19} parent=1 // pred_region
      _
    $region29: #{model_forward.19} parent=1 // pred_fallthru
      _
    // Predicated region
    $region30: #{model_forward.19} parent=1 // pred_check
      _
    $region31: #{model_forward.19} parent=1 // pred_check_branch
      %164 = sbr.rel (0) target = $region33
    $region32: #{model_forward.19} parent=1 // pred_region
      _
    $region33: #{model_forward.19} parent=1 // pred_fallthru
      _
    %165 = vsyncpa [#allocation4], 1

// kernel: model_forward.21
$region0: #{model_forward.21}
  #allocation0 [shape = 'u32[]', space=smem, size = 0x4, offset = 0x4, fixed_abs, tag = 'smem constant byte address 0x4 - core index']
  #allocation1 [shape = 'u32[72,128]{1,0:T(1,128)}', space=vmem, size = 0x9000, scoped, tag = 'internal scratch']
  #allocation2 [shape = 'f32[16,1]{1,0:T(8,128)}', space=vmem, size = 0x2000, scoped, tag = 'scratch operand']
  #allocation3 [shape = 'f32[16,1]{1,0:T(8,128)}', space=vmem, size = 0x2000, scoped, tag = 'scratch operand']
  #allocation4 [shape = 'f32[16,1]{1,0:T(8,128)}', space=vmem, size = 0x2000, scoped, tag = 'scratch operand']
  #allocation5 [shape = 'f32[16,1]{1,0:T(8,128)}', space=vmem, size = 0x2000, scoped, tag = 'scratch operand']
  %s0 = inlined_call_operand.vmem [shape: bf16[16,128], index: 0, kind: input, shape index: {}]
  %s1 = inlined_call_operand.vmem [shape: bf16[128,256], index: 1, kind: input, shape index: {}]
  %s2 = inlined_call_operand.vmem [shape: f32[1,256], index: 2, kind: input, shape index: {}]
  %s3 = inlined_call_operand.vmem [shape: s32[16,1], index: 3, kind: input, shape index: {}]
  %s4 = inlined_call_operand.vmem [shape: f32[16,1], index: 4, kind: output, shape index: {0}]
  %s5 = inlined_call_operand.vmem [shape: f32[16,1], index: 5, kind: output, shape index: {1}]
  %6 = xla_tuple %s4, %s5
  %s7 = sld [smem:[#allocation0]]
  $region42: #{model_forward.21} parent=0
    _
  %s9 = ssub.s32 1, %s7
  %s10 = scalar_select 0, %s9, %s7
  // Predicated region
  $region2: #{model_forward.21} parent=0 // pred_check
    _
  $region3: #{model_forward.21} parent=0 // pred_check_branch
    %12 = sbr.rel (0) target = $region5
  $region4: #{model_forward.21} parent=0 // pred_region
    _
  $region5: #{model_forward.21} parent=0 // pred_fallthru
    _
  // Predicated region
  $region6: #{model_forward.21} parent=0 // pred_check
    _
  $region7: #{model_forward.21} parent=0 // pred_check_branch
    %14 = sbr.rel (0) target = $region9
  $region8: #{model_forward.21} parent=0 // pred_region
    _
  $region9: #{model_forward.21} parent=0 // pred_fallthru
    _
  // Predicated region
  $region10: #{model_forward.21} parent=0 // pred_check
    _
  $region11: #{model_forward.21} parent=0 // pred_check_branch
    %16 = sbr.rel (0) target = $region13
  $region12: #{model_forward.21} parent=0 // pred_region
    _
  $region13: #{model_forward.21} parent=0 // pred_fallthru
    _
  // Predicated region
  $region14: #{model_forward.21} parent=0 // pred_check
    _
  $region15: #{model_forward.21} parent=0 // pred_check_branch
    %18 = sbr.rel (0) target = $region17
  $region16: #{model_forward.21} parent=0 // pred_region
    _
  $region17: #{model_forward.21} parent=0 // pred_fallthru
    _
  %p19 = scmp.eq.s32.totalorder 0, 0
  // Predicated region
  $region18: #{model_forward.21} parent=0 // pred_check
    %p20 = pneg %p19
  $region19: #{model_forward.21} parent=0 // pred_check_branch
    %22 = sbr.rel (%p20) target = $region21
  $region20: #{model_forward.21} parent=0 // pred_region
    %vm23 = vcmask 7168
    %24 = vst.msk [vmem:[#allocation2] sm:$0xff] %vm23, -1e+30
    %25 = vst.msk [vmem:[#allocation2 + $0x8] sm:$0xff] %vm23, -1e+30
    %26 = vst.msk [vmem:[#allocation3] sm:$0xff] %vm23, 0.0
    %27 = vst.msk [vmem:[#allocation3 + $0x8] sm:$0xff] %vm23, 0.0
    %28 = vst.msk [vmem:[#allocation4] sm:$0xff] %vm23, 0.0
    %29 = vst.msk [vmem:[#allocation4 + $0x8] sm:$0xff] %vm23, 0.0
    %30 = vst.msk [vmem:[#allocation5] sm:$0xff] %vm23, 0.0
    %31 = vst.msk [vmem:[#allocation5 + $0x8] sm:$0xff] %vm23, 0.0
  $region21: #{model_forward.21} parent=0 // pred_fallthru
    _
  %v32 = vld [vmem:[%s0] sm:$0xf]
  %v33 = vld [vmem:[%s0 + $0x4] sm:$0xf]
  %v34 = vld [vmem:[%s1] sm:$0xff]
  %v35 = vld [vmem:[%s1 + $0x8] sm:$0xff]
  %v36 = vld [vmem:[%s1 + $0x10] sm:$0xff]
  %v37 = vld [vmem:[%s1 + $0x18] sm:$0xff]
  %v38 = vld [vmem:[%s1 + $0x20] sm:$0xff]
  %v39 = vld [vmem:[%s1 + $0x28] sm:$0xff]
  %v40 = vld [vmem:[%s1 + $0x30] sm:$0xff]
  %v41 = vld [vmem:[%s1 + $0x38] sm:$0xff]
  %v42 = vld [vmem:[%s1 + $0x40] sm:$0xff]
  %v43 = vld [vmem:[%s1 + $0x48] sm:$0xff]
  %v44 = vld [vmem:[%s1 + $0x50] sm:$0xff]
  %v45 = vld [vmem:[%s1 + $0x58] sm:$0xff]
  %v46 = vld [vmem:[%s1 + $0x60] sm:$0xff]
  %v47 = vld [vmem:[%s1 + $0x68] sm:$0xff]
  %v48 = vld [vmem:[%s1 + $0x70] sm:$0xff]
  %v49 = vld [vmem:[%s1 + $0x78] sm:$0xff]
  %v50 = vld [vmem:[%s2] sm:$0x3]
  %v52 = vperm.slane %v50, 0
  %v53 = vperm.slane %v50, 1
  %v58 = vunpack.c.l.b16 %v32
  %v59 = vunpack.c.l.b16 %v33
  %v60 = vpack.c.b16 %v59, %v58
  %v78 = vunpack.c.l.b16 %v34
  %v79 = vunpack.c.h.b16 %v34
  %v80 = vunpack.c.l.b16 %v35
  %v81 = vunpack.c.h.b16 %v35
  %v82 = vunpack.c.l.b16 %v36
  %v83 = vunpack.c.h.b16 %v36
  %v84 = vunpack.c.l.b16 %v37
  %v85 = vunpack.c.h.b16 %v37
  %v86 = vunpack.c.l.b16 %v38
  %v87 = vunpack.c.h.b16 %v38
  %v88 = vunpack.c.l.b16 %v39
  %v89 = vunpack.c.h.b16 %v39
  %v90 = vunpack.c.l.b16 %v40
  %v91 = vunpack.c.h.b16 %v40
  %v92 = vunpack.c.l.b16 %v41
  %v93 = vunpack.c.h.b16 %v41
  %v94 = vunpack.c.l.b16 %v42
  %v95 = vunpack.c.h.b16 %v42
  %v96 = vunpack.c.l.b16 %v43
  %v97 = vunpack.c.h.b16 %v43
  %v98 = vunpack.c.l.b16 %v44
  %v99 = vunpack.c.h.b16 %v44
  %v100 = vunpack.c.l.b16 %v45
  %v101 = vunpack.c.h.b16 %v45
  %v102 = vunpack.c.l.b16 %v46
  %v103 = vunpack.c.h.b16 %v46
  %v104 = vunpack.c.l.b16 %v47
  %v105 = vunpack.c.h.b16 %v47
  %v106 = vunpack.c.l.b16 %v48
  %v107 = vunpack.c.h.b16 %v48
  %v108 = vunpack.c.l.b16 %v49
  %v109 = vunpack.c.h.b16 %v49
  %v110 = vpack.c.b16 %v80, %v78
  %v111 = vpack.c.b16 %v81, %v79
  %v112 = vpack.c.b16 %v84, %v82
  %v113 = vpack.c.b16 %v85, %v83
  %v114 = vpack.c.b16 %v88, %v86
  %v115 = vpack.c.b16 %v89, %v87
  %v116 = vpack.c.b16 %v92, %v90
  %v117 = vpack.c.b16 %v93, %v91
  %v118 = vpack.c.b16 %v96, %v94
  %v119 = vpack.c.b16 %v97, %v95
  %v120 = vpack.c.b16 %v100, %v98
  %v121 = vpack.c.b16 %v101, %v99
  %v122 = vpack.c.b16 %v104, %v102
  %v123 = vpack.c.b16 %v105, %v103
  %v124 = vpack.c.b16 %v108, %v106
  %v125 = vpack.c.b16 %v109, %v107
  %142 = vmatpush.bf16.msra.mxu0 %v124
  %143 = vmatpush.bf16.msra.mxu0 %v122
  %144 = vmatpush.bf16.msra.mxu0 %v120
  %145 = vmatpush.bf16.msra.mxu0 %v118
  %146 = vmatpush.bf16.msra.mxu0 %v116
  %147 = vmatpush.bf16.msra.mxu0 %v114
  %148 = vmatpush.bf16.msra.mxu0 %v112
  %149 = vmatpush.bf16.msra.mxu0 %v110
  %150 = vmatmul.bf16.gmra.mxu0 %v60
  %v151 = vpop.f32.mrf.mxu0
  %v152 = vadd.f32 %v52, %v151
  %v153 = vpop.f32.mrf.mxu0
  %v154 = vadd.f32 %v52, %v153
  %155 = vdwg.mxu0
  %156 = vmatpush.bf16.msra.mxu0 %v125
  %157 = vmatpush.bf16.msra.mxu0 %v123
  %158 = vmatpush.bf16.msra.mxu0 %v121
  %159 = vmatpush.bf16.msra.mxu0 %v119
  %160 = vmatpush.bf16.msra.mxu0 %v117
  %161 = vmatpush.bf16.msra.mxu0 %v115
  %162 = vmatpush.bf16.msra.mxu0 %v113
  %163 = vmatpush.bf16.msra.mxu0 %v111
  %164 = vmatmul.bf16.gmra.mxu0 %v60
  %v165 = vpop.f32.mrf.mxu0
  %v166 = vadd.f32 %v53, %v165
  %v167 = vpop.f32.mrf.mxu0
  %v168 = vadd.f32 %v53, %v167
  %169 = vdwg.mxu0
  %s170 = smul.u32 0, 256
  %v171 = vlaneseq
  %v172 = vand.u32 %v171, 127
  %v173 = vadd.s32 %v172, 128
  %v174 = vstv %s170
  %v175 = vadd.s32 %v174, %v172
  %v176 = vadd.s32 %v174, %v173
  %v177 = vld [vmem:[%s3] sm:$0xff]
  %v178 = vld [vmem:[%s3 + $0x8] sm:$0xff]
  %179 = vset.pattern.permute.xlu0 0
  %180 = vperm.xlu0 %179, %v177
  %v181 = vpop.permute.xlu0 %180
  %182 = vset.pattern.permute.xlu0 0
  %183 = vperm.xlu0 %182, %v178
  %v184 = vpop.permute.xlu0 %183
  %vm185 = vcmp.eq.s32.totalorder %v175, %v181
  %vm186 = vcmp.eq.s32.totalorder %v176, %v181
  %vm187 = vcmp.eq.s32.totalorder %v175, %v184
  %vm188 = vcmp.eq.s32.totalorder %v176, %v184
  %v189 = vld [vmem:[#allocation4] sm:$0xff]
  %v190 = vld [vmem:[#allocation4 + $0x8] sm:$0xff]
  %v191 = vsel %vm185, %v152, 0.0
  %v192 = vsel %vm186, %v166, 0.0
  %v193 = vsel %vm187, %v154, 0.0
  %v194 = vsel %vm188, %v168, 0.0
  %v195 = vadd.f32 %v191, %v192
  %196 = vadd.xlane.f32.xlu0 %v195
  %v197 = vpop.xlane.xlu0 %196
  %v198 = vadd.f32 %v193, %v194
  %199 = vadd.xlane.f32.xlu0 %v198
  %v200 = vpop.xlane.xlu0 %199
  %v201 = vadd.f32 %v189, %v197
  %v202 = vadd.f32 %v190, %v200
  %vm203 = vcmask 7168
  %204 = vst.msk [vmem:[#allocation4] sm:$0xff] %vm203, %v201
  %205 = vst.msk [vmem:[#allocation4 + $0x8] sm:$0xff] %vm203, %v202
  %v206 = vmax.f32 %v152, %v166
  %207 = vmax.xlane.f32.xlu0 %v206
  %v208 = vpop.xlane.xlu0 %207
  %v209 = vmax.f32 %v154, %v168
  %210 = vmax.xlane.f32.xlu0 %v209
  %v211 = vpop.xlane.xlu0 %210
  %v212 = vcvt.s32.f32 %v175
  %v213 = vcvt.s32.f32 %v176
  %vm214 = vcmp.eq.f32.partialorder %v152, %v208
  %vm215 = vcmp.eq.f32.partialorder %v166, %v208
  %vm216 = vcmp.eq.f32.partialorder %v154, %v211
  %vm217 = vcmp.eq.f32.partialorder %v168, %v211
  %v218 = vsel %vm214, %v212, 1e+30
  %v219 = vsel %vm215, %v213, 1e+30
  %v220 = vsel %vm216, %v212, 1e+30
  %v221 = vsel %vm217, %v213, 1e+30
  %v222 = vmin.f32 %v218, %v219
  %223 = vmin.xlane.f32.xlu0 %v222
  %v224 = vpop.xlane.xlu0 %223
  %v225 = vmin.f32 %v220, %v221
  %226 = vmin.xlane.f32.xlu0 %v225
  %v227 = vpop.xlane.xlu0 %226
  %v228 = vld [vmem:[#allocation2] sm:$0xff]
  %v229 = vld [vmem:[#allocation2 + $0x8] sm:$0xff]
  %v230 = vmax.f32 %v228, %v208
  %v231 = vmax.f32 %v229, %v211
  %v232 = vld [vmem:[#allocation3] sm:$0xff]
  %v233 = vld [vmem:[#allocation3 + $0x8] sm:$0xff]
  %v234 = vsub.f32 %v228, %v230
  %v235 = vsub.f32 %v229, %v231
  %v236 = vmul.f32 %v234, 1.442695
  %v237 = vpow.pop %v236
  %v238 = vmul.f32 %v235, 1.442695
  %v239 = vpow.pop %v238
  %v240 = vmul.f32 %v232, %v237
  %v241 = vmul.f32 %v233, %v239
  %243 = vset.pattern.permute.xlu0 0
  %244 = vperm.xlu0 %243, %v230
  %v245 = vpop.permute.xlu0 %244
  %248 = vset.pattern.permute.xlu0 0
  %249 = vperm.xlu0 %248, %v231
  %v250 = vpop.permute.xlu0 %249
  %v252 = vsub.f32 %v152, %v245
  %v253 = vsub.f32 %v166, %v245
  %v254 = vsub.f32 %v154, %v250
  %v255 = vsub.f32 %v168, %v250
  %v256 = vmul.f32 %v252, 1.442695
  %v257 = vpow.pop %v256
  %v258 = vmul.f32 %v253, 1.442695
  %v259 = vpow.pop %v258
  %v260 = vmul.f32 %v254, 1.442695
  %v261 = vpow.pop %v260
  %v262 = vmul.f32 %v255, 1.442695
  %v263 = vpow.pop %v262
  %v264 = vadd.f32 %v257, %v259
  %265 = vadd.xlane.f32.xlu0 %v264
  %v266 = vpop.xlane.xlu0 %265
  %v267 = vadd.f32 %v261, %v263
  %268 = vadd.xlane.f32.xlu0 %v267
  %v269 = vpop.xlane.xlu0 %268
  %v270 = vadd.f32 %v240, %v266
  %v271 = vadd.f32 %v241, %v269
  %272 = vst.msk [vmem:[#allocation3] sm:$0xff] %vm203, %v270
  %273 = vst.msk [vmem:[#allocation3 + $0x8] sm:$0xff] %vm203, %v271
  %vm274 = vcmp.gt.f32.partialorder %v208, %v228
  %vm275 = vcmp.gt.f32.partialorder %v211, %v229
  %v276 = vld [vmem:[#allocation5] sm:$0xff]
  %v277 = vld [vmem:[#allocation5 + $0x8] sm:$0xff]
  %v278 = vsel %vm274, %v224, %v276
  %v279 = vsel %vm275, %v227, %v277
  %280 = vst.msk [vmem:[#allocation5] sm:$0xff] %vm203, %v278
  %281 = vst.msk [vmem:[#allocation5 + $0x8] sm:$0xff] %vm203, %v279
  %282 = vst.msk [vmem:[#allocation2] sm:$0xff] %vm203, %v230
  %283 = vst.msk [vmem:[#allocation2 + $0x8] sm:$0xff] %vm203, %v231
  // Predicated region
  $region22: #{model_forward.21} parent=0 // pred_check
    %p284 = pneg %p19
  $region23: #{model_forward.21} parent=0 // pred_check_branch
    %286 = sbr.rel (%p284) target = $region25
  $region24: #{model_forward.21} parent=0 // pred_region
    %v287 = vld [vmem:[#allocation2] sm:$0xff]
    %v288 = vld [vmem:[#allocation2 + $0x8] sm:$0xff]
    %v289 = vld [vmem:[#allocation3] sm:$0xff]
    %v290 = vld [vmem:[#allocation3 + $0x8] sm:$0xff]
    %v291 = vlog2.pop %v289
    %v292 = vmul.f32 %v291, 0.6931472
    %v293 = vlog2.pop %v290
    %v294 = vmul.f32 %v293, 0.6931472
    %v295 = vadd.f32 %v287, %v292
    %v296 = vadd.f32 %v288, %v294
    %v297 = vld [vmem:[#allocation4] sm:$0xff]
    %v298 = vld [vmem:[#allocation4 + $0x8] sm:$0xff]
    %v299 = vsub.f32 %v295, %v297
    %v300 = vsub.f32 %v296, %v298
    %301 = vst.msk [vmem:[%s4] sm:$0xff] %vm203, %v299
    %302 = vst.msk [vmem:[%s4 + $0x8] sm:$0xff] %vm203, %v300
    %v303 = vld [vmem:[#allocation5] sm:$0xff]
    %v304 = vld [vmem:[#allocation5 + $0x8] sm:$0xff]
    %v305 = vld [vmem:[%s3] sm:$0xff]
    %v306 = vld [vmem:[%s3 + $0x8] sm:$0xff]
    %v307 = vcvt.s32.f32 %v305
    %v308 = vcvt.s32.f32 %v306
    %vm309 = vcmp.eq.f32.partialorder %v303, %v307
    %vm310 = vcmp.eq.f32.partialorder %v304, %v308
    %v311 = vsel %vm309, 1, 0
    %v312 = vsel %vm310, 1, 0
    %v313 = vcvt.s32.f32 %v311
    %v314 = vcvt.s32.f32 %v312
    %315 = vst.msk [vmem:[%s5] sm:$0xff] %vm203, %v313
    %316 = vst.msk [vmem:[%s5 + $0x8] sm:$0xff] %vm203, %v314
  $region25: #{model_forward.21} parent=0 // pred_fallthru
    _
  // Predicated region
  $region26: #{model_forward.21} parent=0 // pred_check
    _
  $region27: #{model_forward.21} parent=0 // pred_check_branch
    %318 = sbr.rel (0) target = $region29
  $region28: #{model_forward.21} parent=0 // pred_region
    _
  $region29: #{model_forward.21} parent=0 // pred_fallthru
    _
  // Predicated region
  $region30: #{model_forward.21} parent=0 // pred_check
    _
  $region31: #{model_forward.21} parent=0 // pred_check_branch
    %320 = sbr.rel (0) target = $region33
  $region32: #{model_forward.21} parent=0 // pred_region
    _
  $region33: #{model_forward.21} parent=0 // pred_fallthru
    _
  // Predicated region
  $region34: #{model_forward.21} parent=0 // pred_check
    _
  $region35: #{model_forward.21} parent=0 // pred_check_branch
    %322 = sbr.rel (0) target = $region37
  $region36: #{model_forward.21} parent=0 // pred_region
    _
  $region37: #{model_forward.21} parent=0 // pred_fallthru
    _
  // Predicated region
  $region38: #{model_forward.21} parent=0 // pred_check
    _
  $region39: #{model_forward.21} parent=0 // pred_check_branch
    %324 = sbr.rel (0) target = $region41
  $region40: #{model_forward.21} parent=0 // pred_region
    _
  $region41: #{model_forward.21} parent=0 // pred_fallthru
    _

</llo_original>
